<compile_context>
chip_gen: v5e
topology: v5e:2x2
jax: 0.10.0
libtpu: 0.0.40
codegen_flags: <defaults>
</compile_context>

<pallas_src>
import jax
import jax.numpy as jnp
from jax.experimental import pallas as pl
from jax.experimental.pallas import tpu as pltpu

LEAKY_SLOPE = 0.01
BN_EPS = 1e-5
HIDDEN = (500, 400, 300, 200, 100, 50, 25)
LANE = 128
SUBLANE = 8


def _round_up(n, m):
    return ((n + m - 1) // m) * m


def make_mlp_kernel(num_hidden, output_size, batch_real, batch_pad):
    need_row_mask = batch_pad != batch_real
    inv_b = 1.0 / float(batch_real)

    def mlp_kernel(x_ref, *refs):
        """refs = [w, b, gamma, beta] * num_hidden, then [w_out, b_out], then out_ref."""
        out_ref = refs[-1]
        p = refs[:-1]

        h = x_ref[...]  # f32, (B_pad, 128) — input zero-padded on lanes (and rows)

        if need_row_mask:
            row = jax.lax.broadcasted_iota(jnp.int32, (batch_pad, 1), 0)
            row_mask = (row < batch_real).astype(jnp.float32)  # hoisted, reused per layer

        idx = 0
        for _ in range(num_hidden):
            w = p[idx][...]          # bf16, (in_pad, out_pad)
            b = p[idx + 1][...]      # f32,  (1, out_pad)
            gamma = p[idx + 2][...]  # f32,  (1, out_pad)
            beta = p[idx + 3][...]   # f32,  (1, out_pad)
            idx += 4

            # Linear: bf16 MXU matmul, f32 accumulation, f32 bias add.
            h = jnp.dot(h.astype(jnp.bfloat16), w,
                        preferred_element_type=jnp.float32) + b

            # LeakyReLU(0.01): mul + max on the VPU (no compare/select).
            h = jnp.maximum(h, LEAKY_SLOPE * h)

            # BatchNorm1d, training-mode batch statistics (biased variance),
            # folded into one scale/offset application.  When the batch was
            # padded, statistics only count the real rows.
            if need_row_mask:
                hm = h * row_mask
                mean = jnp.sum(hm, axis=0, keepdims=True) * inv_b
                c = h - mean
                cm = c * row_mask
                var = jnp.sum(cm * cm, axis=0, keepdims=True) * inv_b
            else:
                mean = jnp.mean(h, axis=0, keepdims=True)
                c = h - mean
                var = jnp.mean(c * c, axis=0, keepdims=True)
            s = gamma * jax.lax.rsqrt(var + BN_EPS)   # rsqrt -> EUP slot
            h = c * s + beta

        # Output layer (no BN / activation), then LogSoftmax over the last axis.
        w = p[idx][...]
        b = p[idx + 1][...]
        logits = jnp.dot(h.astype(jnp.bfloat16), w,
                         preferred_element_type=jnp.float32) + b

        # Mask padded logit lanes so they contribute exp() = 0 to the denominator.
        col = jax.lax.broadcasted_iota(jnp.int32, logits.shape, 1)
        logits = jnp.where(col < output_size, logits, jnp.float32(-1e30))

        m = jnp.max(logits, axis=-1, keepdims=True)
        shifted = logits - m
        lse = jnp.log(jnp.sum(jnp.exp(shifted), axis=-1, keepdims=True))
        out_ref[...] = shifted - lse

    return mlp_kernel


def init_params(key, input_size, output_size):
    """Deterministic synthetic parameters at the true layer shapes, zero-padded to
    128-lane multiples.  Weights are stored in bf16; bias / BN affine stay f32."""
    dims = (input_size,) + HIDDEN + (output_size,)
    params = []
    for li in range(len(dims) - 1):
        d_in, d_out = dims[li], dims[li + 1]
        p_in, p_out = _round_up(d_in, LANE), _round_up(d_out, LANE)
        key, kw, kb = jax.random.split(key, 3)
        bound = 1.0 / float(d_in) ** 0.5
        w = jax.random.uniform(kw, (d_in, d_out), jnp.float32, -bound, bound)
        b = jax.random.uniform(kb, (d_out,), jnp.float32, -bound, bound)
        # Zero-pad: padded input rows and padded output cols contribute nothing.
        w_pad = jnp.zeros((p_in, p_out), jnp.float32).at[:d_in, :d_out].set(w)
        b_pad = jnp.zeros((1, p_out), jnp.float32).at[0, :d_out].set(b)
        params.append(w_pad.astype(jnp.bfloat16))
        params.append(b_pad)
        if li < len(dims) - 2:  # BatchNorm affine params for every hidden layer
            params.append(jnp.ones((1, p_out), jnp.float32))   # gamma
            params.append(jnp.zeros((1, p_out), jnp.float32))  # beta (0 on pad lanes)
    return params


def img_classifier_forward(x, params, output_size):
    B, F = x.shape
    b_pad = _round_up(B, SUBLANE)
    f_pad = _round_up(F, LANE)
    o_pad = _round_up(output_size, LANE)
    # Pad the contraction dim to a full 128 lanes and the batch to full sublanes.
    x_pad = jnp.pad(x, ((0, b_pad - B), (0, f_pad - F)))

    kernel = make_mlp_kernel(len(HIDDEN), output_size, B, b_pad)
    n_in = 1 + len(params)
    y_pad = pl.pallas_call(
        kernel,
        out_shape=jax.ShapeDtypeStruct((b_pad, o_pad), jnp.float32),
        in_specs=[pl.BlockSpec(memory_space=pltpu.MemorySpace.VMEM)] * n_in,
        out_specs=pl.BlockSpec(memory_space=pltpu.MemorySpace.VMEM),
        compiler_params=pltpu.CompilerParams(vmem_limit_bytes=64 << 20),
    )(x_pad, *params)
    # Drop padded rows and padded logit lanes.
    return y_pad[:B, :output_size]


if __name__ == "__main__":
    # Small, MNIST-flavored shapes: flattened image features -> class log-probs.
    B, INPUT_SIZE, OUTPUT_SIZE = 8, 64, 10

    key = jax.random.PRNGKey(0)
    kx, kp = jax.random.split(key)
    x = jax.random.normal(kx, (B, INPUT_SIZE), jnp.float32)
    params = init_params(kp, INPUT_SIZE, OUTPUT_SIZE)

    y = img_classifier_forward(x, params, OUTPUT_SIZE)
    jax.block_until_ready(y)

    assert y.shape == (B, OUTPUT_SIZE)
    assert bool(jnp.all(jnp.isfinite(y)))
    # Log-softmax rows must exponentiate-sum to 1.
    assert bool(jnp.allclose(jnp.sum(jnp.exp(y), axis=-1), 1.0, atol=1e-3))
    print("KERNEL_OK")
</pallas_src>

<mosaic_0001>
module attributes {stable_mosaic.version = 11 : i64} {
  func.func @mlp_kernel(%arg0: memref<8x128xf32, #tpu.memory_space<vmem>>, %arg1: memref<128x512xbf16, #tpu.memory_space<vmem>>, %arg2: memref<1x512xf32, #tpu.memory_space<vmem>>, %arg3: memref<1x512xf32, #tpu.memory_space<vmem>>, %arg4: memref<1x512xf32, #tpu.memory_space<vmem>>, %arg5: memref<512x512xbf16, #tpu.memory_space<vmem>>, %arg6: memref<1x512xf32, #tpu.memory_space<vmem>>, %arg7: memref<1x512xf32, #tpu.memory_space<vmem>>, %arg8: memref<1x512xf32, #tpu.memory_space<vmem>>, %arg9: memref<512x384xbf16, #tpu.memory_space<vmem>>, %arg10: memref<1x384xf32, #tpu.memory_space<vmem>>, %arg11: memref<1x384xf32, #tpu.memory_space<vmem>>, %arg12: memref<1x384xf32, #tpu.memory_space<vmem>>, %arg13: memref<384x256xbf16, #tpu.memory_space<vmem>>, %arg14: memref<1x256xf32, #tpu.memory_space<vmem>>, %arg15: memref<1x256xf32, #tpu.memory_space<vmem>>, %arg16: memref<1x256xf32, #tpu.memory_space<vmem>>, %arg17: memref<256x128xbf16, #tpu.memory_space<vmem>>, %arg18: memref<1x128xf32, #tpu.memory_space<vmem>>, %arg19: memref<1x128xf32, #tpu.memory_space<vmem>>, %arg20: memref<1x128xf32, #tpu.memory_space<vmem>>, %arg21: memref<128x128xbf16, #tpu.memory_space<vmem>>, %arg22: memref<1x128xf32, #tpu.memory_space<vmem>>, %arg23: memref<1x128xf32, #tpu.memory_space<vmem>>, %arg24: memref<1x128xf32, #tpu.memory_space<vmem>>, %arg25: memref<128x128xbf16, #tpu.memory_space<vmem>>, %arg26: memref<1x128xf32, #tpu.memory_space<vmem>>, %arg27: memref<1x128xf32, #tpu.memory_space<vmem>>, %arg28: memref<1x128xf32, #tpu.memory_space<vmem>>, %arg29: memref<128x128xbf16, #tpu.memory_space<vmem>>, %arg30: memref<1x128xf32, #tpu.memory_space<vmem>>, %arg31: memref<8x128xf32, #tpu.memory_space<vmem>>) attributes {dimension_semantics = [], scalar_prefetch = 0 : i64, scratch_operands = 0 : i64, tpu.core_type = #tpu.core_type<tc>} {
    %c0 = arith.constant 0 : index
    %c0_0 = arith.constant 0 : index
    %0 = vector.load %arg0[%c0, %c0_0] : memref<8x128xf32, #tpu.memory_space<vmem>>, vector<8x128xf32>
    %c0_1 = arith.constant 0 : index
    %c0_2 = arith.constant 0 : index
    %1 = vector.load %arg1[%c0_1, %c0_2] : memref<128x512xbf16, #tpu.memory_space<vmem>>, vector<128x512xbf16>
    %c0_3 = arith.constant 0 : index
    %c0_4 = arith.constant 0 : index
    %2 = vector.load %arg2[%c0_3, %c0_4] : memref<1x512xf32, #tpu.memory_space<vmem>>, vector<1x512xf32>
    %c0_5 = arith.constant 0 : index
    %c0_6 = arith.constant 0 : index
    %3 = vector.load %arg3[%c0_5, %c0_6] : memref<1x512xf32, #tpu.memory_space<vmem>>, vector<1x512xf32>
    %c0_7 = arith.constant 0 : index
    %c0_8 = arith.constant 0 : index
    %4 = vector.load %arg4[%c0_7, %c0_8] : memref<1x512xf32, #tpu.memory_space<vmem>>, vector<1x512xf32>
    %5 = arith.truncf %0 : vector<8x128xf32> to vector<8x128xbf16>
    %cst = arith.constant dense<0.000000e+00> : vector<8x512xf32>
    %6 = tpu.matmul %5, %1, %cst {dimension_numbers = #tpu.dot_dimension_numbers<[1], [0], [0], [1], [0, 0, 1, 1], [], []>} : vector<8x128xbf16>, vector<128x512xbf16>, vector<8x512xf32> -> vector<8x512xf32>
    %7 = vector.broadcast %2 : vector<1x512xf32> to vector<8x512xf32>
    %8 = arith.addf %6, %7 : vector<8x512xf32>
    %cst_9 = arith.constant 0.00999999977 : f32
    %9 = vector.broadcast %cst_9 : f32 to vector<8x512xf32>
    %10 = arith.mulf %9, %8 : vector<8x512xf32>
    %11 = arith.maximumf %8, %10 : vector<8x512xf32>
    %cst_10 = arith.constant dense<0.000000e+00> : vector<512xf32>
    %12 = vector.multi_reduction <add>, %11, %cst_10 [0] : vector<8x512xf32> to vector<512xf32>
    %13 = vector.shape_cast %12 : vector<512xf32> to vector<1x512xf32>
    %cst_11 = arith.constant 8.000000e+00 : f32
    %14 = vector.broadcast %cst_11 : f32 to vector<1x512xf32>
    %15 = arith.divf %13, %14 : vector<1x512xf32>
    %16 = vector.broadcast %15 : vector<1x512xf32> to vector<8x512xf32>
    %17 = arith.subf %11, %16 : vector<8x512xf32>
    %18 = arith.mulf %17, %17 : vector<8x512xf32>
    %cst_12 = arith.constant dense<0.000000e+00> : vector<512xf32>
    %19 = vector.multi_reduction <add>, %18, %cst_12 [0] : vector<8x512xf32> to vector<512xf32>
    %20 = vector.shape_cast %19 : vector<512xf32> to vector<1x512xf32>
    %cst_13 = arith.constant 8.000000e+00 : f32
    %21 = vector.broadcast %cst_13 : f32 to vector<1x512xf32>
    %22 = arith.divf %20, %21 : vector<1x512xf32>
    %cst_14 = arith.constant 9.99999974E-6 : f32
    %23 = vector.broadcast %cst_14 : f32 to vector<1x512xf32>
    %24 = arith.addf %22, %23 : vector<1x512xf32>
    %25 = math.rsqrt %24 : vector<1x512xf32>
    %26 = arith.mulf %3, %25 : vector<1x512xf32>
    %27 = vector.broadcast %26 : vector<1x512xf32> to vector<8x512xf32>
    %28 = arith.mulf %17, %27 : vector<8x512xf32>
    %29 = vector.broadcast %4 : vector<1x512xf32> to vector<8x512xf32>
    %30 = arith.addf %28, %29 : vector<8x512xf32>
    %c0_15 = arith.constant 0 : index
    %c0_16 = arith.constant 0 : index
    %31 = vector.load %arg5[%c0_15, %c0_16] : memref<512x512xbf16, #tpu.memory_space<vmem>>, vector<512x512xbf16>
    %c0_17 = arith.constant 0 : index
    %c0_18 = arith.constant 0 : index
    %32 = vector.load %arg6[%c0_17, %c0_18] : memref<1x512xf32, #tpu.memory_space<vmem>>, vector<1x512xf32>
    %c0_19 = arith.constant 0 : index
    %c0_20 = arith.constant 0 : index
    %33 = vector.load %arg7[%c0_19, %c0_20] : memref<1x512xf32, #tpu.memory_space<vmem>>, vector<1x512xf32>
    %c0_21 = arith.constant 0 : index
    %c0_22 = arith.constant 0 : index
    %34 = vector.load %arg8[%c0_21, %c0_22] : memref<1x512xf32, #tpu.memory_space<vmem>>, vector<1x512xf32>
    %35 = arith.truncf %30 : vector<8x512xf32> to vector<8x512xbf16>
    %cst_23 = arith.constant dense<0.000000e+00> : vector<8x512xf32>
    %36 = tpu.matmul %35, %31, %cst_23 {dimension_numbers = #tpu.dot_dimension_numbers<[1], [0], [0], [1], [0, 0, 1, 1], [], []>} : vector<8x512xbf16>, vector<512x512xbf16>, vector<8x512xf32> -> vector<8x512xf32>
    %37 = vector.broadcast %32 : vector<1x512xf32> to vector<8x512xf32>
    %38 = arith.addf %36, %37 : vector<8x512xf32>
    %cst_24 = arith.constant 0.00999999977 : f32
    %39 = vector.broadcast %cst_24 : f32 to vector<8x512xf32>
    %40 = arith.mulf %39, %38 : vector<8x512xf32>
    %41 = arith.maximumf %38, %40 : vector<8x512xf32>
    %cst_25 = arith.constant dense<0.000000e+00> : vector<512xf32>
    %42 = vector.multi_reduction <add>, %41, %cst_25 [0] : vector<8x512xf32> to vector<512xf32>
    %43 = vector.shape_cast %42 : vector<512xf32> to vector<1x512xf32>
    %cst_26 = arith.constant 8.000000e+00 : f32
    %44 = vector.broadcast %cst_26 : f32 to vector<1x512xf32>
    %45 = arith.divf %43, %44 : vector<1x512xf32>
    %46 = vector.broadcast %45 : vector<1x512xf32> to vector<8x512xf32>
    %47 = arith.subf %41, %46 : vector<8x512xf32>
    %48 = arith.mulf %47, %47 : vector<8x512xf32>
    %cst_27 = arith.constant dense<0.000000e+00> : vector<512xf32>
    %49 = vector.multi_reduction <add>, %48, %cst_27 [0] : vector<8x512xf32> to vector<512xf32>
    %50 = vector.shape_cast %49 : vector<512xf32> to vector<1x512xf32>
    %cst_28 = arith.constant 8.000000e+00 : f32
    %51 = vector.broadcast %cst_28 : f32 to vector<1x512xf32>
    %52 = arith.divf %50, %51 : vector<1x512xf32>
    %cst_29 = arith.constant 9.99999974E-6 : f32
    %53 = vector.broadcast %cst_29 : f32 to vector<1x512xf32>
    %54 = arith.addf %52, %53 : vector<1x512xf32>
    %55 = math.rsqrt %54 : vector<1x512xf32>
    %56 = arith.mulf %33, %55 : vector<1x512xf32>
    %57 = vector.broadcast %56 : vector<1x512xf32> to vector<8x512xf32>
    %58 = arith.mulf %47, %57 : vector<8x512xf32>
    %59 = vector.broadcast %34 : vector<1x512xf32> to vector<8x512xf32>
    %60 = arith.addf %58, %59 : vector<8x512xf32>
    %c0_30 = arith.constant 0 : index
    %c0_31 = arith.constant 0 : index
    %61 = vector.load %arg9[%c0_30, %c0_31] : memref<512x384xbf16, #tpu.memory_space<vmem>>, vector<512x384xbf16>
    %c0_32 = arith.constant 0 : index
    %c0_33 = arith.constant 0 : index
    %62 = vector.load %arg10[%c0_32, %c0_33] : memref<1x384xf32, #tpu.memory_space<vmem>>, vector<1x384xf32>
    %c0_34 = arith.constant 0 : index
    %c0_35 = arith.constant 0 : index
    %63 = vector.load %arg11[%c0_34, %c0_35] : memref<1x384xf32, #tpu.memory_space<vmem>>, vector<1x384xf32>
    %c0_36 = arith.constant 0 : index
    %c0_37 = arith.constant 0 : index
    %64 = vector.load %arg12[%c0_36, %c0_37] : memref<1x384xf32, #tpu.memory_space<vmem>>, vector<1x384xf32>
    %65 = arith.truncf %60 : vector<8x512xf32> to vector<8x512xbf16>
    %cst_38 = arith.constant dense<0.000000e+00> : vector<8x384xf32>
    %66 = tpu.matmul %65, %61, %cst_38 {dimension_numbers = #tpu.dot_dimension_numbers<[1], [0], [0], [1], [0, 0, 1, 1], [], []>} : vector<8x512xbf16>, vector<512x384xbf16>, vector<8x384xf32> -> vector<8x384xf32>
    %67 = vector.broadcast %62 : vector<1x384xf32> to vector<8x384xf32>
    %68 = arith.addf %66, %67 : vector<8x384xf32>
    %cst_39 = arith.constant 0.00999999977 : f32
    %69 = vector.broadcast %cst_39 : f32 to vector<8x384xf32>
    %70 = arith.mulf %69, %68 : vector<8x384xf32>
    %71 = arith.maximumf %68, %70 : vector<8x384xf32>
    %cst_40 = arith.constant dense<0.000000e+00> : vector<384xf32>
    %72 = vector.multi_reduction <add>, %71, %cst_40 [0] : vector<8x384xf32> to vector<384xf32>
    %73 = vector.shape_cast %72 : vector<384xf32> to vector<1x384xf32>
    %cst_41 = arith.constant 8.000000e+00 : f32
    %74 = vector.broadcast %cst_41 : f32 to vector<1x384xf32>
    %75 = arith.divf %73, %74 : vector<1x384xf32>
    %76 = vector.broadcast %75 : vector<1x384xf32> to vector<8x384xf32>
    %77 = arith.subf %71, %76 : vector<8x384xf32>
    %78 = arith.mulf %77, %77 : vector<8x384xf32>
    %cst_42 = arith.constant dense<0.000000e+00> : vector<384xf32>
    %79 = vector.multi_reduction <add>, %78, %cst_42 [0] : vector<8x384xf32> to vector<384xf32>
    %80 = vector.shape_cast %79 : vector<384xf32> to vector<1x384xf32>
    %cst_43 = arith.constant 8.000000e+00 : f32
    %81 = vector.broadcast %cst_43 : f32 to vector<1x384xf32>
    %82 = arith.divf %80, %81 : vector<1x384xf32>
    %cst_44 = arith.constant 9.99999974E-6 : f32
    %83 = vector.broadcast %cst_44 : f32 to vector<1x384xf32>
    %84 = arith.addf %82, %83 : vector<1x384xf32>
    %85 = math.rsqrt %84 : vector<1x384xf32>
    %86 = arith.mulf %63, %85 : vector<1x384xf32>
    %87 = vector.broadcast %86 : vector<1x384xf32> to vector<8x384xf32>
    %88 = arith.mulf %77, %87 : vector<8x384xf32>
    %89 = vector.broadcast %64 : vector<1x384xf32> to vector<8x384xf32>
    %90 = arith.addf %88, %89 : vector<8x384xf32>
    %c0_45 = arith.constant 0 : index
    %c0_46 = arith.constant 0 : index
    %91 = vector.load %arg13[%c0_45, %c0_46] : memref<384x256xbf16, #tpu.memory_space<vmem>>, vector<384x256xbf16>
    %c0_47 = arith.constant 0 : index
    %c0_48 = arith.constant 0 : index
    %92 = vector.load %arg14[%c0_47, %c0_48] : memref<1x256xf32, #tpu.memory_space<vmem>>, vector<1x256xf32>
    %c0_49 = arith.constant 0 : index
    %c0_50 = arith.constant 0 : index
    %93 = vector.load %arg15[%c0_49, %c0_50] : memref<1x256xf32, #tpu.memory_space<vmem>>, vector<1x256xf32>
    %c0_51 = arith.constant 0 : index
    %c0_52 = arith.constant 0 : index
    %94 = vector.load %arg16[%c0_51, %c0_52] : memref<1x256xf32, #tpu.memory_space<vmem>>, vector<1x256xf32>
    %95 = arith.truncf %90 : vector<8x384xf32> to vector<8x384xbf16>
    %cst_53 = arith.constant dense<0.000000e+00> : vector<8x256xf32>
    %96 = tpu.matmul %95, %91, %cst_53 {dimension_numbers = #tpu.dot_dimension_numbers<[1], [0], [0], [1], [0, 0, 1, 1], [], []>} : vector<8x384xbf16>, vector<384x256xbf16>, vector<8x256xf32> -> vector<8x256xf32>
    %97 = vector.broadcast %92 : vector<1x256xf32> to vector<8x256xf32>
    %98 = arith.addf %96, %97 : vector<8x256xf32>
    %cst_54 = arith.constant 0.00999999977 : f32
    %99 = vector.broadcast %cst_54 : f32 to vector<8x256xf32>
    %100 = arith.mulf %99, %98 : vector<8x256xf32>
    %101 = arith.maximumf %98, %100 : vector<8x256xf32>
    %cst_55 = arith.constant dense<0.000000e+00> : vector<256xf32>
    %102 = vector.multi_reduction <add>, %101, %cst_55 [0] : vector<8x256xf32> to vector<256xf32>
    %103 = vector.shape_cast %102 : vector<256xf32> to vector<1x256xf32>
    %cst_56 = arith.constant 8.000000e+00 : f32
    %104 = vector.broadcast %cst_56 : f32 to vector<1x256xf32>
    %105 = arith.divf %103, %104 : vector<1x256xf32>
    %106 = vector.broadcast %105 : vector<1x256xf32> to vector<8x256xf32>
    %107 = arith.subf %101, %106 : vector<8x256xf32>
    %108 = arith.mulf %107, %107 : vector<8x256xf32>
    %cst_57 = arith.constant dense<0.000000e+00> : vector<256xf32>
    %109 = vector.multi_reduction <add>, %108, %cst_57 [0] : vector<8x256xf32> to vector<256xf32>
    %110 = vector.shape_cast %109 : vector<256xf32> to vector<1x256xf32>
    %cst_58 = arith.constant 8.000000e+00 : f32
    %111 = vector.broadcast %cst_58 : f32 to vector<1x256xf32>
    %112 = arith.divf %110, %111 : vector<1x256xf32>
    %cst_59 = arith.constant 9.99999974E-6 : f32
    %113 = vector.broadcast %cst_59 : f32 to vector<1x256xf32>
    %114 = arith.addf %112, %113 : vector<1x256xf32>
    %115 = math.rsqrt %114 : vector<1x256xf32>
    %116 = arith.mulf %93, %115 : vector<1x256xf32>
    %117 = vector.broadcast %116 : vector<1x256xf32> to vector<8x256xf32>
    %118 = arith.mulf %107, %117 : vector<8x256xf32>
    %119 = vector.broadcast %94 : vector<1x256xf32> to vector<8x256xf32>
    %120 = arith.addf %118, %119 : vector<8x256xf32>
    %c0_60 = arith.constant 0 : index
    %c0_61 = arith.constant 0 : index
    %121 = vector.load %arg17[%c0_60, %c0_61] : memref<256x128xbf16, #tpu.memory_space<vmem>>, vector<256x128xbf16>
    %c0_62 = arith.constant 0 : index
    %c0_63 = arith.constant 0 : index
    %122 = vector.load %arg18[%c0_62, %c0_63] : memref<1x128xf32, #tpu.memory_space<vmem>>, vector<1x128xf32>
    %c0_64 = arith.constant 0 : index
    %c0_65 = arith.constant 0 : index
    %123 = vector.load %arg19[%c0_64, %c0_65] : memref<1x128xf32, #tpu.memory_space<vmem>>, vector<1x128xf32>
    %c0_66 = arith.constant 0 : index
    %c0_67 = arith.constant 0 : index
    %124 = vector.load %arg20[%c0_66, %c0_67] : memref<1x128xf32, #tpu.memory_space<vmem>>, vector<1x128xf32>
    %125 = arith.truncf %120 : vector<8x256xf32> to vector<8x256xbf16>
    %cst_68 = arith.constant dense<0.000000e+00> : vector<8x128xf32>
    %126 = tpu.matmul %125, %121, %cst_68 {dimension_numbers = #tpu.dot_dimension_numbers<[1], [0], [0], [1], [0, 0, 1, 1], [], []>} : vector<8x256xbf16>, vector<256x128xbf16>, vector<8x128xf32> -> vector<8x128xf32>
    %127 = vector.broadcast %122 : vector<1x128xf32> to vector<8x128xf32>
    %128 = arith.addf %126, %127 : vector<8x128xf32>
    %cst_69 = arith.constant 0.00999999977 : f32
    %129 = vector.broadcast %cst_69 : f32 to vector<8x128xf32>
    %130 = arith.mulf %129, %128 : vector<8x128xf32>
    %131 = arith.maximumf %128, %130 : vector<8x128xf32>
    %cst_70 = arith.constant dense<0.000000e+00> : vector<128xf32>
    %132 = vector.multi_reduction <add>, %131, %cst_70 [0] : vector<8x128xf32> to vector<128xf32>
    %133 = vector.shape_cast %132 : vector<128xf32> to vector<1x128xf32>
    %cst_71 = arith.constant 8.000000e+00 : f32
    %134 = vector.broadcast %cst_71 : f32 to vector<1x128xf32>
    %135 = arith.divf %133, %134 : vector<1x128xf32>
    %136 = vector.broadcast %135 : vector<1x128xf32> to vector<8x128xf32>
    %137 = arith.subf %131, %136 : vector<8x128xf32>
    %138 = arith.mulf %137, %137 : vector<8x128xf32>
    %cst_72 = arith.constant dense<0.000000e+00> : vector<128xf32>
    %139 = vector.multi_reduction <add>, %138, %cst_72 [0] : vector<8x128xf32> to vector<128xf32>
    %140 = vector.shape_cast %139 : vector<128xf32> to vector<1x128xf32>
    %cst_73 = arith.constant 8.000000e+00 : f32
    %141 = vector.broadcast %cst_73 : f32 to vector<1x128xf32>
    %142 = arith.divf %140, %141 : vector<1x128xf32>
    %cst_74 = arith.constant 9.99999974E-6 : f32
    %143 = vector.broadcast %cst_74 : f32 to vector<1x128xf32>
    %144 = arith.addf %142, %143 : vector<1x128xf32>
    %145 = math.rsqrt %144 : vector<1x128xf32>
    %146 = arith.mulf %123, %145 : vector<1x128xf32>
    %147 = vector.broadcast %146 : vector<1x128xf32> to vector<8x128xf32>
    %148 = arith.mulf %137, %147 : vector<8x128xf32>
    %149 = vector.broadcast %124 : vector<1x128xf32> to vector<8x128xf32>
    %150 = arith.addf %148, %149 : vector<8x128xf32>
    %c0_75 = arith.constant 0 : index
    %c0_76 = arith.constant 0 : index
    %151 = vector.load %arg21[%c0_75, %c0_76] : memref<128x128xbf16, #tpu.memory_space<vmem>>, vector<128x128xbf16>
    %c0_77 = arith.constant 0 : index
    %c0_78 = arith.constant 0 : index
    %152 = vector.load %arg22[%c0_77, %c0_78] : memref<1x128xf32, #tpu.memory_space<vmem>>, vector<1x128xf32>
    %c0_79 = arith.constant 0 : index
    %c0_80 = arith.constant 0 : index
    %153 = vector.load %arg23[%c0_79, %c0_80] : memref<1x128xf32, #tpu.memory_space<vmem>>, vector<1x128xf32>
    %c0_81 = arith.constant 0 : index
    %c0_82 = arith.constant 0 : index
    %154 = vector.load %arg24[%c0_81, %c0_82] : memref<1x128xf32, #tpu.memory_space<vmem>>, vector<1x128xf32>
    %155 = arith.truncf %150 : vector<8x128xf32> to vector<8x128xbf16>
    %cst_83 = arith.constant dense<0.000000e+00> : vector<8x128xf32>
    %156 = tpu.matmul %155, %151, %cst_83 {dimension_numbers = #tpu.dot_dimension_numbers<[1], [0], [0], [1], [0, 0, 1, 1], [], []>} : vector<8x128xbf16>, vector<128x128xbf16>, vector<8x128xf32> -> vector<8x128xf32>
    %157 = vector.broadcast %152 : vector<1x128xf32> to vector<8x128xf32>
    %158 = arith.addf %156, %157 : vector<8x128xf32>
    %cst_84 = arith.constant 0.00999999977 : f32
    %159 = vector.broadcast %cst_84 : f32 to vector<8x128xf32>
    %160 = arith.mulf %159, %158 : vector<8x128xf32>
    %161 = arith.maximumf %158, %160 : vector<8x128xf32>
    %cst_85 = arith.constant dense<0.000000e+00> : vector<128xf32>
    %162 = vector.multi_reduction <add>, %161, %cst_85 [0] : vector<8x128xf32> to vector<128xf32>
    %163 = vector.shape_cast %162 : vector<128xf32> to vector<1x128xf32>
    %cst_86 = arith.constant 8.000000e+00 : f32
    %164 = vector.broadcast %cst_86 : f32 to vector<1x128xf32>
    %165 = arith.divf %163, %164 : vector<1x128xf32>
    %166 = vector.broadcast %165 : vector<1x128xf32> to vector<8x128xf32>
    %167 = arith.subf %161, %166 : vector<8x128xf32>
    %168 = arith.mulf %167, %167 : vector<8x128xf32>
    %cst_87 = arith.constant dense<0.000000e+00> : vector<128xf32>
    %169 = vector.multi_reduction <add>, %168, %cst_87 [0] : vector<8x128xf32> to vector<128xf32>
    %170 = vector.shape_cast %169 : vector<128xf32> to vector<1x128xf32>
    %cst_88 = arith.constant 8.000000e+00 : f32
    %171 = vector.broadcast %cst_88 : f32 to vector<1x128xf32>
    %172 = arith.divf %170, %171 : vector<1x128xf32>
    %cst_89 = arith.constant 9.99999974E-6 : f32
    %173 = vector.broadcast %cst_89 : f32 to vector<1x128xf32>
    %174 = arith.addf %172, %173 : vector<1x128xf32>
    %175 = math.rsqrt %174 : vector<1x128xf32>
    %176 = arith.mulf %153, %175 : vector<1x128xf32>
    %177 = vector.broadcast %176 : vector<1x128xf32> to vector<8x128xf32>
    %178 = arith.mulf %167, %177 : vector<8x128xf32>
    %179 = vector.broadcast %154 : vector<1x128xf32> to vector<8x128xf32>
    %180 = arith.addf %178, %179 : vector<8x128xf32>
    %c0_90 = arith.constant 0 : index
    %c0_91 = arith.constant 0 : index
    %181 = vector.load %arg25[%c0_90, %c0_91] : memref<128x128xbf16, #tpu.memory_space<vmem>>, vector<128x128xbf16>
    %c0_92 = arith.constant 0 : index
    %c0_93 = arith.constant 0 : index
    %182 = vector.load %arg26[%c0_92, %c0_93] : memref<1x128xf32, #tpu.memory_space<vmem>>, vector<1x128xf32>
    %c0_94 = arith.constant 0 : index
    %c0_95 = arith.constant 0 : index
    %183 = vector.load %arg27[%c0_94, %c0_95] : memref<1x128xf32, #tpu.memory_space<vmem>>, vector<1x128xf32>
    %c0_96 = arith.constant 0 : index
    %c0_97 = arith.constant 0 : index
    %184 = vector.load %arg28[%c0_96, %c0_97] : memref<1x128xf32, #tpu.memory_space<vmem>>, vector<1x128xf32>
    %185 = arith.truncf %180 : vector<8x128xf32> to vector<8x128xbf16>
    %cst_98 = arith.constant dense<0.000000e+00> : vector<8x128xf32>
    %186 = tpu.matmul %185, %181, %cst_98 {dimension_numbers = #tpu.dot_dimension_numbers<[1], [0], [0], [1], [0, 0, 1, 1], [], []>} : vector<8x128xbf16>, vector<128x128xbf16>, vector<8x128xf32> -> vector<8x128xf32>
    %187 = vector.broadcast %182 : vector<1x128xf32> to vector<8x128xf32>
    %188 = arith.addf %186, %187 : vector<8x128xf32>
    %cst_99 = arith.constant 0.00999999977 : f32
    %189 = vector.broadcast %cst_99 : f32 to vector<8x128xf32>
    %190 = arith.mulf %189, %188 : vector<8x128xf32>
    %191 = arith.maximumf %188, %190 : vector<8x128xf32>
    %cst_100 = arith.constant dense<0.000000e+00> : vector<128xf32>
    %192 = vector.multi_reduction <add>, %191, %cst_100 [0] : vector<8x128xf32> to vector<128xf32>
    %193 = vector.shape_cast %192 : vector<128xf32> to vector<1x128xf32>
    %cst_101 = arith.constant 8.000000e+00 : f32
    %194 = vector.broadcast %cst_101 : f32 to vector<1x128xf32>
    %195 = arith.divf %193, %194 : vector<1x128xf32>
    %196 = vector.broadcast %195 : vector<1x128xf32> to vector<8x128xf32>
    %197 = arith.subf %191, %196 : vector<8x128xf32>
    %198 = arith.mulf %197, %197 : vector<8x128xf32>
    %cst_102 = arith.constant dense<0.000000e+00> : vector<128xf32>
    %199 = vector.multi_reduction <add>, %198, %cst_102 [0] : vector<8x128xf32> to vector<128xf32>
    %200 = vector.shape_cast %199 : vector<128xf32> to vector<1x128xf32>
    %cst_103 = arith.constant 8.000000e+00 : f32
    %201 = vector.broadcast %cst_103 : f32 to vector<1x128xf32>
    %202 = arith.divf %200, %201 : vector<1x128xf32>
    %cst_104 = arith.constant 9.99999974E-6 : f32
    %203 = vector.broadcast %cst_104 : f32 to vector<1x128xf32>
    %204 = arith.addf %202, %203 : vector<1x128xf32>
    %205 = math.rsqrt %204 : vector<1x128xf32>
    %206 = arith.mulf %183, %205 : vector<1x128xf32>
    %207 = vector.broadcast %206 : vector<1x128xf32> to vector<8x128xf32>
    %208 = arith.mulf %197, %207 : vector<8x128xf32>
    %209 = vector.broadcast %184 : vector<1x128xf32> to vector<8x128xf32>
    %210 = arith.addf %208, %209 : vector<8x128xf32>
    %c0_105 = arith.constant 0 : index
    %c0_106 = arith.constant 0 : index
    %211 = vector.load %arg29[%c0_105, %c0_106] : memref<128x128xbf16, #tpu.memory_space<vmem>>, vector<128x128xbf16>
    %c0_107 = arith.constant 0 : index
    %c0_108 = arith.constant 0 : index
    %212 = vector.load %arg30[%c0_107, %c0_108] : memref<1x128xf32, #tpu.memory_space<vmem>>, vector<1x128xf32>
    %213 = arith.truncf %210 : vector<8x128xf32> to vector<8x128xbf16>
    %cst_109 = arith.constant dense<0.000000e+00> : vector<8x128xf32>
    %214 = tpu.matmul %213, %211, %cst_109 {dimension_numbers = #tpu.dot_dimension_numbers<[1], [0], [0], [1], [0, 0, 1, 1], [], []>} : vector<8x128xbf16>, vector<128x128xbf16>, vector<8x128xf32> -> vector<8x128xf32>
    %215 = vector.broadcast %212 : vector<1x128xf32> to vector<8x128xf32>
    %216 = arith.addf %214, %215 : vector<8x128xf32>
    %217 = tpu.iota {dimensions = array<i32: 1>} : vector<8x128xi32>
    %c10_i32 = arith.constant 10 : i32
    %218 = vector.broadcast %c10_i32 : i32 to vector<8x128xi32>
    %219 = arith.cmpi slt, %217, %218 : vector<8x128xi32>
    %cst_110 = arith.constant -1.000000e+30 : f32
    %220 = vector.broadcast %cst_110 : f32 to vector<8x128xf32>
    %221 = arith.select %219, %216, %220 : vector<8x128xi1>, vector<8x128xf32>
    %cst_111 = arith.constant dense<0xFF800000> : vector<8xf32>
    %222 = vector.multi_reduction <maximumf>, %221, %cst_111 [1] : vector<8x128xf32> to vector<8xf32>
    %223 = vector.shape_cast %222 : vector<8xf32> to vector<8x1xf32>
    %224 = vector.broadcast %223 : vector<8x1xf32> to vector<8x128xf32>
    %225 = arith.subf %221, %224 : vector<8x128xf32>
    %226 = math.exp %225 : vector<8x128xf32>
    %cst_112 = arith.constant dense<0.000000e+00> : vector<8xf32>
    %227 = vector.multi_reduction <add>, %226, %cst_112 [1] : vector<8x128xf32> to vector<8xf32>
    %228 = vector.shape_cast %227 : vector<8xf32> to vector<8x1xf32>
    %229 = math.log %228 : vector<8x1xf32>
    %230 = vector.broadcast %229 : vector<8x1xf32> to vector<8x128xf32>
    %231 = arith.subf %225, %230 : vector<8x128xf32>
    %c0_113 = arith.constant 0 : index
    %c0_114 = arith.constant 0 : index
    %232 = vector.load %arg31[%c0_113, %c0_114] : memref<8x128xf32, #tpu.memory_space<vmem>>, vector<8x128xf32>
    tpu.vector_store %arg31[%c0_113, %c0_114], %231 {strides = array<i32>} : memref<8x128xf32, #tpu.memory_space<vmem>>, vector<8x128xf32>,
    return
  }
}

</mosaic_0001>

<llo_original>
// kernel: tpu_custom_call.1
$region0: #{tpu_custom_call.1}
  #allocation0 [shape = 'u32[]', space=smem, size = 0x4, offset = 0x4, fixed_abs, tag = 'smem constant byte address 0x4 - core index']
  #allocation1 [shape = 'u32[72,128]{1,0:T(1,128)}', space=vmem, size = 0x9000, scoped, tag = 'internal scratch']
  %s0 = inlined_call_operand.smem [shape: u32[32], index: -1, kind: input, shape index: {}]
  %s1 = sld [smem:[%s0]]
  %s2 = scalar_lea.smem %s0, 1
  %s3 = sld [smem:[%s2]]
  %s4 = scalar_lea.smem %s0, 2
  %s5 = sld [smem:[%s4]]
  %s6 = scalar_lea.smem %s0, 3
  %s7 = sld [smem:[%s6]]
  %s8 = scalar_lea.smem %s0, 4
  %s9 = sld [smem:[%s8]]
  %s10 = scalar_lea.smem %s0, 5
  %s11 = sld [smem:[%s10]]
  %s12 = scalar_lea.smem %s0, 6
  %s13 = sld [smem:[%s12]]
  %s14 = scalar_lea.smem %s0, 7
  %s15 = sld [smem:[%s14]]
  %s16 = scalar_lea.smem %s0, 8
  %s17 = sld [smem:[%s16]]
  %s18 = scalar_lea.smem %s0, 9
  %s19 = sld [smem:[%s18]]
  %s20 = scalar_lea.smem %s0, 10
  %s21 = sld [smem:[%s20]]
  %s22 = scalar_lea.smem %s0, 11
  %s23 = sld [smem:[%s22]]
  %s24 = scalar_lea.smem %s0, 12
  %s25 = sld [smem:[%s24]]
  %s26 = scalar_lea.smem %s0, 13
  %s27 = sld [smem:[%s26]]
  %s28 = scalar_lea.smem %s0, 14
  %s29 = sld [smem:[%s28]]
  %s30 = scalar_lea.smem %s0, 15
  %s31 = sld [smem:[%s30]]
  %s32 = scalar_lea.smem %s0, 16
  %s33 = sld [smem:[%s32]]
  %s34 = scalar_lea.smem %s0, 17
  %s35 = sld [smem:[%s34]]
  %s36 = scalar_lea.smem %s0, 18
  %s37 = sld [smem:[%s36]]
  %s38 = scalar_lea.smem %s0, 19
  %s39 = sld [smem:[%s38]]
  %s40 = scalar_lea.smem %s0, 20
  %s41 = sld [smem:[%s40]]
  %s42 = scalar_lea.smem %s0, 21
  %s43 = sld [smem:[%s42]]
  %s44 = scalar_lea.smem %s0, 22
  %s45 = sld [smem:[%s44]]
  %s46 = scalar_lea.smem %s0, 23
  %s47 = sld [smem:[%s46]]
  %s48 = scalar_lea.smem %s0, 24
  %s49 = sld [smem:[%s48]]
  %s50 = scalar_lea.smem %s0, 25
  %s51 = sld [smem:[%s50]]
  %s52 = scalar_lea.smem %s0, 26
  %s53 = sld [smem:[%s52]]
  %s54 = scalar_lea.smem %s0, 27
  %s55 = sld [smem:[%s54]]
  %s56 = scalar_lea.smem %s0, 28
  %s57 = sld [smem:[%s56]]
  %s58 = scalar_lea.smem %s0, 29
  %s59 = sld [smem:[%s58]]
  %s60 = scalar_lea.smem %s0, 30
  %s61 = sld [smem:[%s60]]
  %s62 = scalar_lea.smem %s0, 31
  %s63 = sld [smem:[%s62]]
  %s64 = sld [smem:[#allocation0]]
  $region198: #{tpu_custom_call.1} parent=0
    _
  %s66 = ssub.s32 1, %s64
  %s67 = scalar_select 0, %s66, %s64
  $region1: #{tpu_custom_call.1} parent=0
    #allocation2 [shape = 'u8[4096]{0}', space=vmem, size = 0x1000, scoped, tag = 'input window, operand 0, single buffered']
    #allocation3 [shape = 's32[1]{0}', space=sflag, size = 0x4, scoped, tag = 'scoped memory for tpu_custom_call.1']
    #allocation4 [shape = 's32[1]{0}', space=sflag, size = 0x4, scoped, tag = 'scoped memory for tpu_custom_call.1']
    #allocation5 [shape = 'u8[131072]{0}', space=vmem, size = 0x20000, scoped, tag = 'input window, operand 1, single buffered']
    #allocation6 [shape = 's32[1]{0}', space=sflag, size = 0x4, scoped, tag = 'scoped memory for tpu_custom_call.1']
    #allocation7 [shape = 'u8[2048]{0}', space=vmem, size = 0x800, scoped, tag = 'input window, operand 2, single buffered']
    #allocation8 [shape = 'u8[2048]{0}', space=vmem, size = 0x800, scoped, tag = 'input window, operand 3, single buffered']
    #allocation9 [shape = 's32[1]{0}', space=sflag, size = 0x4, scoped, tag = 'scoped memory for tpu_custom_call.1']
    #allocation10 [shape = 'u8[2048]{0}', space=vmem, size = 0x800, scoped, tag = 'input window, operand 4, single buffered']
    #allocation11 [shape = 'u8[524288]{0}', space=vmem, size = 0x80000, scoped, tag = 'input window, operand 5, single buffered']
    #allocation12 [shape = 's32[1]{0}', space=sflag, size = 0x4, scoped, tag = 'scoped memory for tpu_custom_call.1']
    #allocation13 [shape = 'u8[2048]{0}', space=vmem, size = 0x800, scoped, tag = 'input window, operand 7, single buffered']
    #allocation14 [shape = 'u8[2048]{0}', space=vmem, size = 0x800, scoped, tag = 'input window, operand 8, single buffered']
    #allocation15 [shape = 's32[1]{0}', space=sflag, size = 0x4, scoped, tag = 'scoped memory for tpu_custom_call.1']
    #allocation16 [shape = 'u8[393216]{0}', space=vmem, size = 0x60000, scoped, tag = 'input window, operand 9, single buffered']
    #allocation17 [shape = 'u8[1536]{0}', space=vmem, size = 0x800, scoped, tag = 'input window, operand 12, single buffered']
    #allocation18 [shape = 's32[1]{0}', space=sflag, size = 0x4, scoped, tag = 'scoped memory for tpu_custom_call.1']
    #allocation19 [shape = 'u8[196608]{0}', space=vmem, size = 0x30000, scoped, tag = 'input window, operand 13, single buffered']
    #allocation20 [shape = 'u8[1024]{0}', space=vmem, size = 0x400, scoped, tag = 'input window, operand 16, single buffered']
    #allocation21 [shape = 's32[1]{0}', space=sflag, size = 0x4, scoped, tag = 'scoped memory for tpu_custom_call.1']
    #allocation22 [shape = 'u8[65536]{0}', space=vmem, size = 0x10000, scoped, tag = 'input window, operand 17, single buffered']
    #allocation23 [shape = 'u8[32768]{0}', space=vmem, size = 0x8000, scoped, tag = 'input window, operand 21, single buffered']
    #allocation24 [shape = 's32[1]{0}', space=sflag, size = 0x4, scoped, tag = 'scoped memory for tpu_custom_call.1']
    #allocation25 [shape = 'u8[32768]{0}', space=vmem, size = 0x8000, scoped, tag = 'input window, operand 25, single buffered']
    #allocation26 [shape = 'u8[32768]{0}', space=vmem, size = 0x8000, scoped, tag = 'input window, operand 29, single buffered']
    #allocation27 [shape = 's32[1]{0}', space=sflag, size = 0x4, scoped, tag = 'scoped memory for tpu_custom_call.1']
    #allocation28 [shape = 'u8[4096]{0}', space=vmem, size = 0x1000, scoped, tag = 'output window, operand 0, single buffered']
    %68 = vsyncpa [#allocation3], 0
    %69 = vsyncpa [#allocation6], 0
    %70 = vsyncpa [#allocation9], 0
    %71 = vsyncpa [#allocation12], 0
    %72 = vsyncpa [#allocation15], 0
    %73 = vsyncpa [#allocation18], 0
    %74 = vsyncpa [#allocation21], 0
    %75 = vsyncpa [#allocation24], 0
    %76 = vsyncpa [#allocation27], 0
    %77 = vsyncpa [#allocation4], 0
    // Predicated region
    $region2: #{tpu_custom_call.1} parent=1 // pred_check
      _
    $region3: #{tpu_custom_call.1} parent=1 // pred_check_branch
      %79 = sbr.rel (0) target = $region5
    $region4: #{tpu_custom_call.1} parent=1 // pred_region
      %81 = vsyncadd [#allocation3], 0
      %s83 = sshll.u32 %s1, 4
      %s84 = int_to_ptr.hbm [resolvable:$true] %s83
      %s85 = sshll.u32 [#allocation2], 4
      %s86 = int_to_ptr.vmem [resolvable:$true] %s85
      %88 = dma.hbm_to_vmem [thread:$0]  %s84, 128, %s86, [#allocation3]
    $region5: #{tpu_custom_call.1} parent=1 // pred_fallthru
      _
    // Predicated region
    $region6: #{tpu_custom_call.1} parent=1 // pred_check
      _
    $region7: #{tpu_custom_call.1} parent=1 // pred_check_branch
      %90 = sbr.rel (0) target = $region9
    $region8: #{tpu_custom_call.1} parent=1 // pred_region
      %92 = vsyncadd [#allocation6], 0
      %s93 = sshll.u32 %s3, 4
      %s94 = int_to_ptr.hbm [resolvable:$true] %s93
      %s95 = sshll.u32 [#allocation5], 4
      %s96 = int_to_ptr.vmem [resolvable:$true] %s95
      %101 = dma.hbm_to_vmem [thread:$0]  %s94, 4096, %s96, [#allocation6], 256, 256, 16
    $region9: #{tpu_custom_call.1} parent=1 // pred_fallthru
      _
    // Predicated region
    $region10: #{tpu_custom_call.1} parent=1 // pred_check
      _
    $region11: #{tpu_custom_call.1} parent=1 // pred_check_branch
      %103 = sbr.rel (0) target = $region13
    $region12: #{tpu_custom_call.1} parent=1 // pred_region
      %105 = vsyncadd [#allocation6], 0
      %s107 = sshll.u32 %s5, 4
      %s108 = int_to_ptr.hbm [resolvable:$true] %s107
      %s109 = sshll.u32 [#allocation7], 4
      %s110 = int_to_ptr.vmem [resolvable:$true] %s109
      %112 = dma.hbm_to_vmem [thread:$0]  %s108, 64, %s110, [#allocation6]
    $region13: #{tpu_custom_call.1} parent=1 // pred_fallthru
      _
    // Predicated region
    $region14: #{tpu_custom_call.1} parent=1 // pred_check
      _
    $region15: #{tpu_custom_call.1} parent=1 // pred_check_branch
      %114 = sbr.rel (0) target = $region17
    $region16: #{tpu_custom_call.1} parent=1 // pred_region
      %116 = vsyncadd [#allocation9], 0
      %s118 = sshll.u32 %s7, 4
      %s119 = int_to_ptr.hbm [resolvable:$true] %s118
      %s120 = sshll.u32 [#allocation8], 4
      %s121 = int_to_ptr.vmem [resolvable:$true] %s120
      %123 = dma.hbm_to_vmem [thread:$0]  %s119, 64, %s121, [#allocation9]
    $region17: #{tpu_custom_call.1} parent=1 // pred_fallthru
      _
    // Predicated region
    $region18: #{tpu_custom_call.1} parent=1 // pred_check
      _
    $region19: #{tpu_custom_call.1} parent=1 // pred_check_branch
      %125 = sbr.rel (0) target = $region21
    $region20: #{tpu_custom_call.1} parent=1 // pred_region
      %127 = vsyncadd [#allocation9], 0
      %s129 = sshll.u32 %s9, 4
      %s130 = int_to_ptr.hbm [resolvable:$true] %s129
      %s131 = sshll.u32 [#allocation10], 4
      %s132 = int_to_ptr.vmem [resolvable:$true] %s131
      %134 = dma.hbm_to_vmem [thread:$0]  %s130, 64, %s132, [#allocation9]
    $region21: #{tpu_custom_call.1} parent=1 // pred_fallthru
      _
    // Predicated region
    $region22: #{tpu_custom_call.1} parent=1 // pred_check
      _
    $region23: #{tpu_custom_call.1} parent=1 // pred_check_branch
      %136 = sbr.rel (0) target = $region25
    $region24: #{tpu_custom_call.1} parent=1 // pred_region
      %138 = vsyncadd [#allocation12], 0
      %s139 = sshll.u32 %s11, 4
      %s140 = int_to_ptr.hbm [resolvable:$true] %s139
      %s141 = sshll.u32 [#allocation11], 4
      %s142 = int_to_ptr.vmem [resolvable:$true] %s141
      %147 = dma.hbm_to_vmem [thread:$0]  %s140, 16384, %s142, [#allocation12], 256, 256, 16
    $region25: #{tpu_custom_call.1} parent=1 // pred_fallthru
      _
    // Predicated region
    $region26: #{tpu_custom_call.1} parent=1 // pred_check
      _
    $region27: #{tpu_custom_call.1} parent=1 // pred_check_branch
      %149 = sbr.rel (0) target = $region29
    $region28: #{tpu_custom_call.1} parent=1 // pred_region
      _
    $region29: #{tpu_custom_call.1} parent=1 // pred_fallthru
      _
    // Predicated region
    $region30: #{tpu_custom_call.1} parent=1 // pred_check
      _
    $region31: #{tpu_custom_call.1} parent=1 // pred_check_branch
      %151 = sbr.rel (0) target = $region33
    $region32: #{tpu_custom_call.1} parent=1 // pred_region
      %153 = vsyncadd [#allocation12], 0
      %s155 = sshll.u32 %s15, 4
      %s156 = int_to_ptr.hbm [resolvable:$true] %s155
      %s157 = sshll.u32 [#allocation13], 4
      %s158 = int_to_ptr.vmem [resolvable:$true] %s157
      %160 = dma.hbm_to_vmem [thread:$0]  %s156, 64, %s158, [#allocation12]
    $region33: #{tpu_custom_call.1} parent=1 // pred_fallthru
      _
    // Predicated region
    $region34: #{tpu_custom_call.1} parent=1 // pred_check
      _
    $region35: #{tpu_custom_call.1} parent=1 // pred_check_branch
      %162 = sbr.rel (0) target = $region37
    $region36: #{tpu_custom_call.1} parent=1 // pred_region
      %164 = vsyncadd [#allocation15], 0
      %s166 = sshll.u32 %s17, 4
      %s167 = int_to_ptr.hbm [resolvable:$true] %s166
      %s168 = sshll.u32 [#allocation14], 4
      %s169 = int_to_ptr.vmem [resolvable:$true] %s168
      %171 = dma.hbm_to_vmem [thread:$0]  %s167, 64, %s169, [#allocation15]
    $region37: #{tpu_custom_call.1} parent=1 // pred_fallthru
      _
    // Predicated region
    $region38: #{tpu_custom_call.1} parent=1 // pred_check
      _
    $region39: #{tpu_custom_call.1} parent=1 // pred_check_branch
      %173 = sbr.rel (0) target = $region41
    $region40: #{tpu_custom_call.1} parent=1 // pred_region
      %175 = vsyncadd [#allocation15], 0
      %s176 = sshll.u32 %s19, 4
      %s177 = int_to_ptr.hbm [resolvable:$true] %s176
      %s178 = sshll.u32 [#allocation16], 4
      %s179 = int_to_ptr.vmem [resolvable:$true] %s178
      %184 = dma.hbm_to_vmem [thread:$0]  %s177, 12288, %s179, [#allocation15], 192, 192, 12
    $region41: #{tpu_custom_call.1} parent=1 // pred_fallthru
      _
    // Predicated region
    $region42: #{tpu_custom_call.1} parent=1 // pred_check
      _
    $region43: #{tpu_custom_call.1} parent=1 // pred_check_branch
      %186 = sbr.rel (0) target = $region45
    $region44: #{tpu_custom_call.1} parent=1 // pred_region
      _
    $region45: #{tpu_custom_call.1} parent=1 // pred_fallthru
      _
    // Predicated region
    $region46: #{tpu_custom_call.1} parent=1 // pred_check
      _
    $region47: #{tpu_custom_call.1} parent=1 // pred_check_branch
      %188 = sbr.rel (0) target = $region49
    $region48: #{tpu_custom_call.1} parent=1 // pred_region
      _
    $region49: #{tpu_custom_call.1} parent=1 // pred_fallthru
      _
    // Predicated region
    $region50: #{tpu_custom_call.1} parent=1 // pred_check
      _
    $region51: #{tpu_custom_call.1} parent=1 // pred_check_branch
      %190 = sbr.rel (0) target = $region53
    $region52: #{tpu_custom_call.1} parent=1 // pred_region
      %192 = vsyncadd [#allocation18], 0
      %s194 = sshll.u32 %s25, 4
      %s195 = int_to_ptr.hbm [resolvable:$true] %s194
      %s196 = sshll.u32 [#allocation17], 4
      %s197 = int_to_ptr.vmem [resolvable:$true] %s196
      %199 = dma.hbm_to_vmem [thread:$0]  %s195, 48, %s197, [#allocation18]
    $region53: #{tpu_custom_call.1} parent=1 // pred_fallthru
      _
    // Predicated region
    $region54: #{tpu_custom_call.1} parent=1 // pred_check
      _
    $region55: #{tpu_custom_call.1} parent=1 // pred_check_branch
      %201 = sbr.rel (0) target = $region57
    $region56: #{tpu_custom_call.1} parent=1 // pred_region
      %203 = vsyncadd [#allocation18], 0
      %s204 = sshll.u32 %s27, 4
      %s205 = int_to_ptr.hbm [resolvable:$true] %s204
      %s206 = sshll.u32 [#allocation19], 4
      %s207 = int_to_ptr.vmem [resolvable:$true] %s206
      %212 = dma.hbm_to_vmem [thread:$0]  %s205, 6144, %s207, [#allocation18], 128, 128, 8
    $region57: #{tpu_custom_call.1} parent=1 // pred_fallthru
      _
    // Predicated region
    $region58: #{tpu_custom_call.1} parent=1 // pred_check
      _
    $region59: #{tpu_custom_call.1} parent=1 // pred_check_branch
      %214 = sbr.rel (0) target = $region61
    $region60: #{tpu_custom_call.1} parent=1 // pred_region
      _
    $region61: #{tpu_custom_call.1} parent=1 // pred_fallthru
      _
    // Predicated region
    $region62: #{tpu_custom_call.1} parent=1 // pred_check
      _
    $region63: #{tpu_custom_call.1} parent=1 // pred_check_branch
      %216 = sbr.rel (0) target = $region65
    $region64: #{tpu_custom_call.1} parent=1 // pred_region
      _
    $region65: #{tpu_custom_call.1} parent=1 // pred_fallthru
      _
    // Predicated region
    $region66: #{tpu_custom_call.1} parent=1 // pred_check
      _
    $region67: #{tpu_custom_call.1} parent=1 // pred_check_branch
      %218 = sbr.rel (0) target = $region69
    $region68: #{tpu_custom_call.1} parent=1 // pred_region
      %220 = vsyncadd [#allocation21], 0
      %s222 = sshll.u32 %s33, 4
      %s223 = int_to_ptr.hbm [resolvable:$true] %s222
      %s224 = sshll.u32 [#allocation20], 4
      %s225 = int_to_ptr.vmem [resolvable:$true] %s224
      %227 = dma.hbm_to_vmem [thread:$0]  %s223, 32, %s225, [#allocation21]
    $region69: #{tpu_custom_call.1} parent=1 // pred_fallthru
      _
    // Predicated region
    $region70: #{tpu_custom_call.1} parent=1 // pred_check
      _
    $region71: #{tpu_custom_call.1} parent=1 // pred_check_branch
      %229 = sbr.rel (0) target = $region73
    $region72: #{tpu_custom_call.1} parent=1 // pred_region
      %231 = vsyncadd [#allocation21], 0
      %s232 = sshll.u32 %s35, 4
      %s233 = int_to_ptr.hbm [resolvable:$true] %s232
      %s234 = sshll.u32 [#allocation22], 4
      %s235 = int_to_ptr.vmem [resolvable:$true] %s234
      %240 = dma.hbm_to_vmem [thread:$0]  %s233, 2048, %s235, [#allocation21], 64, 64, 4
    $region73: #{tpu_custom_call.1} parent=1 // pred_fallthru
      _
    // Predicated region
    $region74: #{tpu_custom_call.1} parent=1 // pred_check
      _
    $region75: #{tpu_custom_call.1} parent=1 // pred_check_branch
      %242 = sbr.rel (0) target = $region77
    $region76: #{tpu_custom_call.1} parent=1 // pred_region
      _
    $region77: #{tpu_custom_call.1} parent=1 // pred_fallthru
      _
    // Predicated region
    $region78: #{tpu_custom_call.1} parent=1 // pred_check
      _
    $region79: #{tpu_custom_call.1} parent=1 // pred_check_branch
      %244 = sbr.rel (0) target = $region81
    $region80: #{tpu_custom_call.1} parent=1 // pred_region
      _
    $region81: #{tpu_custom_call.1} parent=1 // pred_fallthru
      _
    // Predicated region
    $region82: #{tpu_custom_call.1} parent=1 // pred_check
      _
    $region83: #{tpu_custom_call.1} parent=1 // pred_check_branch
      %246 = sbr.rel (0) target = $region85
    $region84: #{tpu_custom_call.1} parent=1 // pred_region
      _
    $region85: #{tpu_custom_call.1} parent=1 // pred_fallthru
      _
    // Predicated region
    $region86: #{tpu_custom_call.1} parent=1 // pred_check
      _
    $region87: #{tpu_custom_call.1} parent=1 // pred_check_branch
      %248 = sbr.rel (0) target = $region89
    $region88: #{tpu_custom_call.1} parent=1 // pred_region
      %250 = vsyncadd [#allocation24], 0
      %s251 = sshll.u32 %s43, 4
      %s252 = int_to_ptr.hbm [resolvable:$true] %s251
      %s253 = sshll.u32 [#allocation23], 4
      %s254 = int_to_ptr.vmem [resolvable:$true] %s253
      %259 = dma.hbm_to_vmem [thread:$0]  %s252, 1024, %s254, [#allocation24], 64, 64, 4
    $region89: #{tpu_custom_call.1} parent=1 // pred_fallthru
      _
    // Predicated region
    $region90: #{tpu_custom_call.1} parent=1 // pred_check
      _
    $region91: #{tpu_custom_call.1} parent=1 // pred_check_branch
      %261 = sbr.rel (0) target = $region93
    $region92: #{tpu_custom_call.1} parent=1 // pred_region
      _
    $region93: #{tpu_custom_call.1} parent=1 // pred_fallthru
      _
    // Predicated region
    $region94: #{tpu_custom_call.1} parent=1 // pred_check
      _
    $region95: #{tpu_custom_call.1} parent=1 // pred_check_branch
      %263 = sbr.rel (0) target = $region97
    $region96: #{tpu_custom_call.1} parent=1 // pred_region
      _
    $region97: #{tpu_custom_call.1} parent=1 // pred_fallthru
      _
    // Predicated region
    $region98: #{tpu_custom_call.1} parent=1 // pred_check
      _
    $region99: #{tpu_custom_call.1} parent=1 // pred_check_branch
      %265 = sbr.rel (0) target = $region101
    $region100: #{tpu_custom_call.1} parent=1 // pred_region
      _
    $region101: #{tpu_custom_call.1} parent=1 // pred_fallthru
      _
    // Predicated region
    $region102: #{tpu_custom_call.1} parent=1 // pred_check
      _
    $region103: #{tpu_custom_call.1} parent=1 // pred_check_branch
      %267 = sbr.rel (0) target = $region105
    $region104: #{tpu_custom_call.1} parent=1 // pred_region
      %269 = vsyncadd [#allocation24], 0
      %s270 = sshll.u32 %s51, 4
      %s271 = int_to_ptr.hbm [resolvable:$true] %s270
      %s272 = sshll.u32 [#allocation25], 4
      %s273 = int_to_ptr.vmem [resolvable:$true] %s272
      %278 = dma.hbm_to_vmem [thread:$0]  %s271, 1024, %s273, [#allocation24], 64, 64, 4
    $region105: #{tpu_custom_call.1} parent=1 // pred_fallthru
      _
    // Predicated region
    $region106: #{tpu_custom_call.1} parent=1 // pred_check
      _
    $region107: #{tpu_custom_call.1} parent=1 // pred_check_branch
      %280 = sbr.rel (0) target = $region109
    $region108: #{tpu_custom_call.1} parent=1 // pred_region
      _
    $region109: #{tpu_custom_call.1} parent=1 // pred_fallthru
      _
    // Predicated region
    $region110: #{tpu_custom_call.1} parent=1 // pred_check
      _
    $region111: #{tpu_custom_call.1} parent=1 // pred_check_branch
      %282 = sbr.rel (0) target = $region113
    $region112: #{tpu_custom_call.1} parent=1 // pred_region
      _
    $region113: #{tpu_custom_call.1} parent=1 // pred_fallthru
      _
    // Predicated region
    $region114: #{tpu_custom_call.1} parent=1 // pred_check
      _
    $region115: #{tpu_custom_call.1} parent=1 // pred_check_branch
      %284 = sbr.rel (0) target = $region117
    $region116: #{tpu_custom_call.1} parent=1 // pred_region
      _
    $region117: #{tpu_custom_call.1} parent=1 // pred_fallthru
      _
    // Predicated region
    $region118: #{tpu_custom_call.1} parent=1 // pred_check
      _
    $region119: #{tpu_custom_call.1} parent=1 // pred_check_branch
      %286 = sbr.rel (0) target = $region121
    $region120: #{tpu_custom_call.1} parent=1 // pred_region
      %288 = vsyncadd [#allocation27], 0
      %s289 = sshll.u32 %s59, 4
      %s290 = int_to_ptr.hbm [resolvable:$true] %s289
      %s291 = sshll.u32 [#allocation26], 4
      %s292 = int_to_ptr.vmem [resolvable:$true] %s291
      %297 = dma.hbm_to_vmem [thread:$0]  %s290, 1024, %s292, [#allocation27], 64, 64, 4
    $region121: #{tpu_custom_call.1} parent=1 // pred_fallthru
      _
    // Predicated region
    $region122: #{tpu_custom_call.1} parent=1 // pred_check
      _
    $region123: #{tpu_custom_call.1} parent=1 // pred_check_branch
      %299 = sbr.rel (0) target = $region125
    $region124: #{tpu_custom_call.1} parent=1 // pred_region
      _
    $region125: #{tpu_custom_call.1} parent=1 // pred_fallthru
      _
    // Predicated region
    $region126: #{tpu_custom_call.1} parent=1 // pred_check
      _
    $region127: #{tpu_custom_call.1} parent=1 // pred_check_branch
      %301 = sbr.rel (0) target = $region129
    $region128: #{tpu_custom_call.1} parent=1 // pred_region
      %303 = dma.done [#allocation3], 128
    $region129: #{tpu_custom_call.1} parent=1 // pred_fallthru
      _
    // Predicated region
    $region130: #{tpu_custom_call.1} parent=1 // pred_check
      _
    $region131: #{tpu_custom_call.1} parent=1 // pred_check_branch
      %305 = sbr.rel (0) target = $region133
    $region132: #{tpu_custom_call.1} parent=1 // pred_region
      %307 = dma.done [#allocation6], 4096
    $region133: #{tpu_custom_call.1} parent=1 // pred_fallthru
      _
    // Predicated region
    $region134: #{tpu_custom_call.1} parent=1 // pred_check
      _
    $region135: #{tpu_custom_call.1} parent=1 // pred_check_branch
      %309 = sbr.rel (0) target = $region137
    $region136: #{tpu_custom_call.1} parent=1 // pred_region
      %311 = dma.done [#allocation6], 64
    $region137: #{tpu_custom_call.1} parent=1 // pred_fallthru
      _
    // Predicated region
    $region138: #{tpu_custom_call.1} parent=1 // pred_check
      _
    $region139: #{tpu_custom_call.1} parent=1 // pred_check_branch
      %313 = sbr.rel (0) target = $region141
    $region140: #{tpu_custom_call.1} parent=1 // pred_region
      %315 = dma.done [#allocation9], 64
    $region141: #{tpu_custom_call.1} parent=1 // pred_fallthru
      _
    // Predicated region
    $region142: #{tpu_custom_call.1} parent=1 // pred_check
      _
    $region143: #{tpu_custom_call.1} parent=1 // pred_check_branch
      %317 = sbr.rel (0) target = $region145
    $region144: #{tpu_custom_call.1} parent=1 // pred_region
      %319 = dma.done [#allocation9], 64
    $region145: #{tpu_custom_call.1} parent=1 // pred_fallthru
      _
    // Predicated region
    $region146: #{tpu_custom_call.1} parent=1 // pred_check
      _
    $region147: #{tpu_custom_call.1} parent=1 // pred_check_branch
      %321 = sbr.rel (0) target = $region149
    $region148: #{tpu_custom_call.1} parent=1 // pred_region
      %323 = dma.done [#allocation12], 16384
    $region149: #{tpu_custom_call.1} parent=1 // pred_fallthru
      _
    // Predicated region
    $region150: #{tpu_custom_call.1} parent=1 // pred_check
      _
    $region151: #{tpu_custom_call.1} parent=1 // pred_check_branch
      %325 = sbr.rel (0) target = $region153
    $region152: #{tpu_custom_call.1} parent=1 // pred_region
      %327 = dma.done [#allocation12], 64
    $region153: #{tpu_custom_call.1} parent=1 // pred_fallthru
      _
    // Predicated region
    $region154: #{tpu_custom_call.1} parent=1 // pred_check
      _
    $region155: #{tpu_custom_call.1} parent=1 // pred_check_branch
      %329 = sbr.rel (0) target = $region157
    $region156: #{tpu_custom_call.1} parent=1 // pred_region
      %331 = dma.done [#allocation15], 64
    $region157: #{tpu_custom_call.1} parent=1 // pred_fallthru
      _
    // Predicated region
    $region158: #{tpu_custom_call.1} parent=1 // pred_check
      _
    $region159: #{tpu_custom_call.1} parent=1 // pred_check_branch
      %333 = sbr.rel (0) target = $region161
    $region160: #{tpu_custom_call.1} parent=1 // pred_region
      %335 = dma.done [#allocation15], 12288
    $region161: #{tpu_custom_call.1} parent=1 // pred_fallthru
      _
    // Predicated region
    $region162: #{tpu_custom_call.1} parent=1 // pred_check
      _
    $region163: #{tpu_custom_call.1} parent=1 // pred_check_branch
      %337 = sbr.rel (0) target = $region165
    $region164: #{tpu_custom_call.1} parent=1 // pred_region
      %339 = dma.done [#allocation18], 48
    $region165: #{tpu_custom_call.1} parent=1 // pred_fallthru
      _
    // Predicated region
    $region166: #{tpu_custom_call.1} parent=1 // pred_check
      _
    $region167: #{tpu_custom_call.1} parent=1 // pred_check_branch
      %341 = sbr.rel (0) target = $region169
    $region168: #{tpu_custom_call.1} parent=1 // pred_region
      %343 = dma.done [#allocation18], 6144
    $region169: #{tpu_custom_call.1} parent=1 // pred_fallthru
      _
    // Predicated region
    $region170: #{tpu_custom_call.1} parent=1 // pred_check
      _
    $region171: #{tpu_custom_call.1} parent=1 // pred_check_branch
      %345 = sbr.rel (0) target = $region173
    $region172: #{tpu_custom_call.1} parent=1 // pred_region
      %347 = dma.done [#allocation21], 32
    $region173: #{tpu_custom_call.1} parent=1 // pred_fallthru
      _
    // Predicated region
    $region174: #{tpu_custom_call.1} parent=1 // pred_check
      _
    $region175: #{tpu_custom_call.1} parent=1 // pred_check_branch
      %349 = sbr.rel (0) target = $region177
    $region176: #{tpu_custom_call.1} parent=1 // pred_region
      %351 = dma.done [#allocation21], 2048
    $region177: #{tpu_custom_call.1} parent=1 // pred_fallthru
      _
    // Predicated region
    $region178: #{tpu_custom_call.1} parent=1 // pred_check
      _
    $region179: #{tpu_custom_call.1} parent=1 // pred_check_branch
      %353 = sbr.rel (0) target = $region181
    $region180: #{tpu_custom_call.1} parent=1 // pred_region
      %355 = dma.done [#allocation24], 1024
    $region181: #{tpu_custom_call.1} parent=1 // pred_fallthru
      _
    // Predicated region
    $region182: #{tpu_custom_call.1} parent=1 // pred_check
      _
    $region183: #{tpu_custom_call.1} parent=1 // pred_check_branch
      %357 = sbr.rel (0) target = $region185
    $region184: #{tpu_custom_call.1} parent=1 // pred_region
      %359 = dma.done [#allocation24], 1024
    $region185: #{tpu_custom_call.1} parent=1 // pred_fallthru
      _
    // Predicated region
    $region186: #{tpu_custom_call.1} parent=1 // pred_check
      _
    $region187: #{tpu_custom_call.1} parent=1 // pred_check_branch
      %361 = sbr.rel (0) target = $region189
    $region188: #{tpu_custom_call.1} parent=1 // pred_region
      %363 = dma.done [#allocation27], 1024
    $region189: #{tpu_custom_call.1} parent=1 // pred_fallthru
      _
    %v364 = vld [vmem:[#allocation2] sm:$0xff]
    %v365 = vld [vmem:[#allocation5] sm:$0xff]
    %v366 = vld [vmem:[#allocation5 + $0x8] sm:$0xff]
    %v367 = vld [vmem:[#allocation5 + $0x10] sm:$0xff]
    %v368 = vld [vmem:[#allocation5 + $0x18] sm:$0xff]
    %v369 = vld [vmem:[#allocation5 + $0x20] sm:$0xff]
    %v370 = vld [vmem:[#allocation5 + $0x28] sm:$0xff]
    %v371 = vld [vmem:[#allocation5 + $0x30] sm:$0xff]
    %v372 = vld [vmem:[#allocation5 + $0x38] sm:$0xff]
    %v373 = vld [vmem:[#allocation5 + $0x40] sm:$0xff]
    %v374 = vld [vmem:[#allocation5 + $0x48] sm:$0xff]
    %v375 = vld [vmem:[#allocation5 + $0x50] sm:$0xff]
    %v376 = vld [vmem:[#allocation5 + $0x58] sm:$0xff]
    %v377 = vld [vmem:[#allocation5 + $0x60] sm:$0xff]
    %v378 = vld [vmem:[#allocation5 + $0x68] sm:$0xff]
    %v379 = vld [vmem:[#allocation5 + $0x70] sm:$0xff]
    %v380 = vld [vmem:[#allocation5 + $0x78] sm:$0xff]
    %v381 = vld [vmem:[#allocation5 + $0x80] sm:$0xff]
    %v382 = vld [vmem:[#allocation5 + $0x88] sm:$0xff]
    %v383 = vld [vmem:[#allocation5 + $0x90] sm:$0xff]
    %v384 = vld [vmem:[#allocation5 + $0x98] sm:$0xff]
    %v385 = vld [vmem:[#allocation5 + $0xa0] sm:$0xff]
    %v386 = vld [vmem:[#allocation5 + $0xa8] sm:$0xff]
    %v387 = vld [vmem:[#allocation5 + $0xb0] sm:$0xff]
    %v388 = vld [vmem:[#allocation5 + $0xb8] sm:$0xff]
    %v389 = vld [vmem:[#allocation5 + $0xc0] sm:$0xff]
    %v390 = vld [vmem:[#allocation5 + $0xc8] sm:$0xff]
    %v391 = vld [vmem:[#allocation5 + $0xd0] sm:$0xff]
    %v392 = vld [vmem:[#allocation5 + $0xd8] sm:$0xff]
    %v393 = vld [vmem:[#allocation5 + $0xe0] sm:$0xff]
    %v394 = vld [vmem:[#allocation5 + $0xe8] sm:$0xff]
    %v395 = vld [vmem:[#allocation5 + $0xf0] sm:$0xff]
    %v396 = vld [vmem:[#allocation5 + $0xf8] sm:$0xff]
    %v397 = vld [vmem:[#allocation7] sm:$0xf]
    %v398 = vld [vmem:[#allocation8] sm:$0xf]
    %v399 = vld [vmem:[#allocation10] sm:$0xf]
    %v400 = vpack.c.bf16 %v364, %v364
    %v402 = vperm.slane %v397, 0
    %v403 = vperm.slane %v397, 1
    %v404 = vperm.slane %v397, 2
    %v405 = vperm.slane %v397, 3
    %v442 = vunpack.c.l.b16 %v365
    %v443 = vunpack.c.h.b16 %v365
    %v444 = vunpack.c.l.b16 %v366
    %v445 = vunpack.c.h.b16 %v366
    %v446 = vunpack.c.l.b16 %v367
    %v447 = vunpack.c.h.b16 %v367
    %v448 = vunpack.c.l.b16 %v368
    %v449 = vunpack.c.h.b16 %v368
    %v450 = vunpack.c.l.b16 %v369
    %v451 = vunpack.c.h.b16 %v369
    %v452 = vunpack.c.l.b16 %v370
    %v453 = vunpack.c.h.b16 %v370
    %v454 = vunpack.c.l.b16 %v371
    %v455 = vunpack.c.h.b16 %v371
    %v456 = vunpack.c.l.b16 %v372
    %v457 = vunpack.c.h.b16 %v372
    %v458 = vunpack.c.l.b16 %v373
    %v459 = vunpack.c.h.b16 %v373
    %v460 = vunpack.c.l.b16 %v374
    %v461 = vunpack.c.h.b16 %v374
    %v462 = vunpack.c.l.b16 %v375
    %v463 = vunpack.c.h.b16 %v375
    %v464 = vunpack.c.l.b16 %v376
    %v465 = vunpack.c.h.b16 %v376
    %v466 = vunpack.c.l.b16 %v377
    %v467 = vunpack.c.h.b16 %v377
    %v468 = vunpack.c.l.b16 %v378
    %v469 = vunpack.c.h.b16 %v378
    %v470 = vunpack.c.l.b16 %v379
    %v471 = vunpack.c.h.b16 %v379
    %v472 = vunpack.c.l.b16 %v380
    %v473 = vunpack.c.h.b16 %v380
    %v474 = vunpack.c.l.b16 %v381
    %v475 = vunpack.c.h.b16 %v381
    %v476 = vunpack.c.l.b16 %v382
    %v477 = vunpack.c.h.b16 %v382
    %v478 = vunpack.c.l.b16 %v383
    %v479 = vunpack.c.h.b16 %v383
    %v480 = vunpack.c.l.b16 %v384
    %v481 = vunpack.c.h.b16 %v384
    %v482 = vunpack.c.l.b16 %v385
    %v483 = vunpack.c.h.b16 %v385
    %v484 = vunpack.c.l.b16 %v386
    %v485 = vunpack.c.h.b16 %v386
    %v486 = vunpack.c.l.b16 %v387
    %v487 = vunpack.c.h.b16 %v387
    %v488 = vunpack.c.l.b16 %v388
    %v489 = vunpack.c.h.b16 %v388
    %v490 = vunpack.c.l.b16 %v389
    %v491 = vunpack.c.h.b16 %v389
    %v492 = vunpack.c.l.b16 %v390
    %v493 = vunpack.c.h.b16 %v390
    %v494 = vunpack.c.l.b16 %v391
    %v495 = vunpack.c.h.b16 %v391
    %v496 = vunpack.c.l.b16 %v392
    %v497 = vunpack.c.h.b16 %v392
    %v498 = vunpack.c.l.b16 %v393
    %v499 = vunpack.c.h.b16 %v393
    %v500 = vunpack.c.l.b16 %v394
    %v501 = vunpack.c.h.b16 %v394
    %v502 = vunpack.c.l.b16 %v395
    %v503 = vunpack.c.h.b16 %v395
    %v504 = vunpack.c.l.b16 %v396
    %v505 = vunpack.c.h.b16 %v396
    %v506 = vpack.c.b16 %v446, %v442
    %v507 = vpack.c.b16 %v447, %v443
    %v508 = vpack.c.b16 %v448, %v444
    %v509 = vpack.c.b16 %v449, %v445
    %v510 = vpack.c.b16 %v454, %v450
    %v511 = vpack.c.b16 %v455, %v451
    %v512 = vpack.c.b16 %v456, %v452
    %v513 = vpack.c.b16 %v457, %v453
    %v514 = vpack.c.b16 %v462, %v458
    %v515 = vpack.c.b16 %v463, %v459
    %v516 = vpack.c.b16 %v464, %v460
    %v517 = vpack.c.b16 %v465, %v461
    %v518 = vpack.c.b16 %v470, %v466
    %v519 = vpack.c.b16 %v471, %v467
    %v520 = vpack.c.b16 %v472, %v468
    %v521 = vpack.c.b16 %v473, %v469
    %v522 = vpack.c.b16 %v478, %v474
    %v523 = vpack.c.b16 %v479, %v475
    %v524 = vpack.c.b16 %v480, %v476
    %v525 = vpack.c.b16 %v481, %v477
    %v526 = vpack.c.b16 %v486, %v482
    %v527 = vpack.c.b16 %v487, %v483
    %v528 = vpack.c.b16 %v488, %v484
    %v529 = vpack.c.b16 %v489, %v485
    %v530 = vpack.c.b16 %v494, %v490
    %v531 = vpack.c.b16 %v495, %v491
    %v532 = vpack.c.b16 %v496, %v492
    %v533 = vpack.c.b16 %v497, %v493
    %v534 = vpack.c.b16 %v502, %v498
    %v535 = vpack.c.b16 %v503, %v499
    %v536 = vpack.c.b16 %v504, %v500
    %v537 = vpack.c.b16 %v505, %v501
    %570 = vmatpush.bf16.msra.mxu0 %v534
    %571 = vmatpush.bf16.msra.mxu0 %v530
    %572 = vmatpush.bf16.msra.mxu0 %v526
    %573 = vmatpush.bf16.msra.mxu0 %v522
    %574 = vmatpush.bf16.msra.mxu0 %v518
    %575 = vmatpush.bf16.msra.mxu0 %v514
    %576 = vmatpush.bf16.msra.mxu0 %v510
    %577 = vmatpush.bf16.msra.mxu0 %v506
    %578 = vmatmul.bf16.gmra.mxu0 %v400
    %v579 = vpop.f32.mrf.mxu0
    %v580 = vadd.f32 %v402, %v579
    %v581 = vpop.f32.mrf.mxu0
    %582 = vdwg.mxu0
    %583 = vmatpush.bf16.msra.mxu0 %v535
    %584 = vmatpush.bf16.msra.mxu0 %v531
    %585 = vmatpush.bf16.msra.mxu0 %v527
    %586 = vmatpush.bf16.msra.mxu0 %v523
    %587 = vmatpush.bf16.msra.mxu0 %v519
    %588 = vmatpush.bf16.msra.mxu0 %v515
    %589 = vmatpush.bf16.msra.mxu0 %v511
    %590 = vmatpush.bf16.msra.mxu0 %v507
    %591 = vmatmul.bf16.gmra.mxu0 %v400
    %v592 = vpop.f32.mrf.mxu0
    %v593 = vadd.f32 %v403, %v592
    %v594 = vpop.f32.mrf.mxu0
    %595 = vdwg.mxu0
    %596 = vmatpush.bf16.msra.mxu0 %v536
    %597 = vmatpush.bf16.msra.mxu0 %v532
    %598 = vmatpush.bf16.msra.mxu0 %v528
    %599 = vmatpush.bf16.msra.mxu0 %v524
    %600 = vmatpush.bf16.msra.mxu0 %v520
    %601 = vmatpush.bf16.msra.mxu0 %v516
    %602 = vmatpush.bf16.msra.mxu0 %v512
    %603 = vmatpush.bf16.msra.mxu0 %v508
    %604 = vmatmul.bf16.gmra.mxu0 %v400
    %v605 = vpop.f32.mrf.mxu0
    %v606 = vadd.f32 %v404, %v605
    %v607 = vpop.f32.mrf.mxu0
    %608 = vdwg.mxu0
    %609 = vmatpush.bf16.msra.mxu0 %v537
    %610 = vmatpush.bf16.msra.mxu0 %v533
    %611 = vmatpush.bf16.msra.mxu0 %v529
    %612 = vmatpush.bf16.msra.mxu0 %v525
    %613 = vmatpush.bf16.msra.mxu0 %v521
    %614 = vmatpush.bf16.msra.mxu0 %v517
    %615 = vmatpush.bf16.msra.mxu0 %v513
    %616 = vmatpush.bf16.msra.mxu0 %v509
    %617 = vmatmul.bf16.gmra.mxu0 %v400
    %v618 = vpop.f32.mrf.mxu0
    %v619 = vadd.f32 %v405, %v618
    %v620 = vpop.f32.mrf.mxu0
    %621 = vdwg.mxu0
    %v622 = vmul.f32 %v580, 0.01
    %v623 = vmul.f32 %v593, 0.01
    %v624 = vmul.f32 %v606, 0.01
    %v625 = vmul.f32 %v619, 0.01
    %v626 = vmax.f32 %v580, %v622
    %v627 = vmax.f32 %v593, %v623
    %v628 = vmax.f32 %v606, %v624
    %v629 = vmax.f32 %v619, %v625
    %v630 = vrot.slane %v626, 4
    %v631 = vadd.f32 %v626, %v630
    %v632 = vrot.slane %v631, 2
    %v633 = vadd.f32 %v631, %v632
    %v634 = vrot.slane %v633, 1
    %v635 = vadd.f32 %v633, %v634
    %v636 = vrot.slane %v627, 4
    %v637 = vadd.f32 %v627, %v636
    %v638 = vrot.slane %v637, 2
    %v639 = vadd.f32 %v637, %v638
    %v640 = vrot.slane %v639, 1
    %v641 = vadd.f32 %v639, %v640
    %v642 = vrot.slane %v628, 4
    %v643 = vadd.f32 %v628, %v642
    %v644 = vrot.slane %v643, 2
    %v645 = vadd.f32 %v643, %v644
    %v646 = vrot.slane %v645, 1
    %v647 = vadd.f32 %v645, %v646
    %v648 = vrot.slane %v629, 4
    %v649 = vadd.f32 %v629, %v648
    %v650 = vrot.slane %v649, 2
    %v651 = vadd.f32 %v649, %v650
    %v652 = vrot.slane %v651, 1
    %v653 = vadd.f32 %v651, %v652
    %v654 = vrcp.pop 8.0
    %v655 = vmul.f32 8.0, %v654
    %v656 = vsub.f32 1.0, %v655
    %v657 = vmul.f32 %v654, %v656
    %v658 = vadd.f32 %v654, %v657
    %vm659 = vweird.f32 %v654
    %v660 = vsel %vm659, %v654, %v658
    %v661 = vmul.f32 %v635, %v660
    %v662 = vmul.f32 %v641, %v660
    %v663 = vmul.f32 %v647, %v660
    %v664 = vmul.f32 %v653, %v660
    %v665 = vsub.f32 %v626, %v661
    %v666 = vsub.f32 %v627, %v662
    %v667 = vsub.f32 %v628, %v663
    %v668 = vsub.f32 %v629, %v664
    %v669 = vmul.f32 %v665, %v665
    %v670 = vmul.f32 %v666, %v666
    %v671 = vmul.f32 %v667, %v667
    %v672 = vmul.f32 %v668, %v668
    %v673 = vrot.slane %v669, 4
    %v674 = vadd.f32 %v669, %v673
    %v675 = vrot.slane %v674, 2
    %v676 = vadd.f32 %v674, %v675
    %v677 = vrot.slane %v676, 1
    %v678 = vadd.f32 %v676, %v677
    %v679 = vrot.slane %v670, 4
    %v680 = vadd.f32 %v670, %v679
    %v681 = vrot.slane %v680, 2
    %v682 = vadd.f32 %v680, %v681
    %v683 = vrot.slane %v682, 1
    %v684 = vadd.f32 %v682, %v683
    %v685 = vrot.slane %v671, 4
    %v686 = vadd.f32 %v671, %v685
    %v687 = vrot.slane %v686, 2
    %v688 = vadd.f32 %v686, %v687
    %v689 = vrot.slane %v688, 1
    %v690 = vadd.f32 %v688, %v689
    %v691 = vrot.slane %v672, 4
    %v692 = vadd.f32 %v672, %v691
    %v693 = vrot.slane %v692, 2
    %v694 = vadd.f32 %v692, %v693
    %v695 = vrot.slane %v694, 1
    %v696 = vadd.f32 %v694, %v695
    %v697 = vmul.f32 %v678, %v660
    %v698 = vmul.f32 %v684, %v660
    %v699 = vmul.f32 %v690, %v660
    %v700 = vmul.f32 %v696, %v660
    %v701 = vadd.f32 %v697, 1e-05
    %v702 = vadd.f32 %v698, 1e-05
    %v703 = vadd.f32 %v699, 1e-05
    %v704 = vadd.f32 %v700, 1e-05
    %v705 = vrsqrt.pop %v701
    %v706 = vmul.f32 %v705, %v701
    %v707 = vmul.f32 %v706, %v705
    %v708 = vmul.f32 0.5, %v707
    %v709 = vsub.f32 1.5, %v708
    %v710 = vmul.f32 %v705, %v709
    %vm711 = vweird.f32 %v701
    %vm712 = vweird.f32 %v705
    %vm713 = vmor %vm711, %vm712
    %v714 = vsel %vm713, %v705, %v710
    %v715 = vrsqrt.pop %v702
    %v716 = vmul.f32 %v715, %v702
    %v717 = vmul.f32 %v716, %v715
    %v718 = vmul.f32 0.5, %v717
    %v719 = vsub.f32 1.5, %v718
    %v720 = vmul.f32 %v715, %v719
    %vm721 = vweird.f32 %v702
    %vm722 = vweird.f32 %v715
    %vm723 = vmor %vm721, %vm722
    %v724 = vsel %vm723, %v715, %v720
    %v725 = vrsqrt.pop %v703
    %v726 = vmul.f32 %v725, %v703
    %v727 = vmul.f32 %v726, %v725
    %v728 = vmul.f32 0.5, %v727
    %v729 = vsub.f32 1.5, %v728
    %v730 = vmul.f32 %v725, %v729
    %vm731 = vweird.f32 %v703
    %vm732 = vweird.f32 %v725
    %vm733 = vmor %vm731, %vm732
    %v734 = vsel %vm733, %v725, %v730
    %v735 = vrsqrt.pop %v704
    %v736 = vmul.f32 %v735, %v704
    %v737 = vmul.f32 %v736, %v735
    %v738 = vmul.f32 0.5, %v737
    %v739 = vsub.f32 1.5, %v738
    %v740 = vmul.f32 %v735, %v739
    %vm741 = vweird.f32 %v704
    %vm742 = vweird.f32 %v735
    %vm743 = vmor %vm741, %vm742
    %v744 = vsel %vm743, %v735, %v740
    %v749 = vrot.slane %v724, 7
    %v750 = vrot.slane %v734, 6
    %v751 = vrot.slane %v744, 5
    %vm752 = vcmask 1040384
    %v753 = vsel %vm752, %v714, %v749
    %vm754 = vcmask 1042434
    %v755 = vsel %vm754, %v750, %v751
    %vm756 = vcmask 1041408
    %v757 = vsel %vm756, %v753, %v755
    %v759 = vmul.f32 %v398, %v757
    %v761 = vperm.slane %v759, 0
    %v762 = vperm.slane %v759, 1
    %v763 = vperm.slane %v759, 2
    %v764 = vperm.slane %v759, 3
    %v769 = vmul.f32 %v665, %v761
    %v770 = vmul.f32 %v666, %v762
    %v771 = vmul.f32 %v667, %v763
    %v772 = vmul.f32 %v668, %v764
    %v774 = vperm.slane %v399, 0
    %v775 = vperm.slane %v399, 1
    %v776 = vperm.slane %v399, 2
    %v777 = vperm.slane %v399, 3
    %v782 = vadd.f32 %v769, %v774
    %v783 = vadd.f32 %v770, %v775
    %v784 = vadd.f32 %v771, %v776
    %v785 = vadd.f32 %v772, %v777
    %v786 = vld [vmem:[#allocation11] sm:$0xff]
    %v787 = vld [vmem:[#allocation11 + $0x8] sm:$0xff]
    %v788 = vld [vmem:[#allocation11 + $0x10] sm:$0xff]
    %v789 = vld [vmem:[#allocation11 + $0x18] sm:$0xff]
    %v790 = vld [vmem:[#allocation11 + $0x20] sm:$0xff]
    %v791 = vld [vmem:[#allocation11 + $0x28] sm:$0xff]
    %v792 = vld [vmem:[#allocation11 + $0x30] sm:$0xff]
    %v793 = vld [vmem:[#allocation11 + $0x38] sm:$0xff]
    %v794 = vld [vmem:[#allocation11 + $0x40] sm:$0xff]
    %v795 = vld [vmem:[#allocation11 + $0x48] sm:$0xff]
    %v796 = vld [vmem:[#allocation11 + $0x50] sm:$0xff]
    %v797 = vld [vmem:[#allocation11 + $0x58] sm:$0xff]
    %v798 = vld [vmem:[#allocation11 + $0x60] sm:$0xff]
    %v799 = vld [vmem:[#allocation11 + $0x68] sm:$0xff]
    %v800 = vld [vmem:[#allocation11 + $0x70] sm:$0xff]
    %v801 = vld [vmem:[#allocation11 + $0x78] sm:$0xff]
    %v802 = vld [vmem:[#allocation11 + $0x80] sm:$0xff]
    %v803 = vld [vmem:[#allocation11 + $0x88] sm:$0xff]
    %v804 = vld [vmem:[#allocation11 + $0x90] sm:$0xff]
    %v805 = vld [vmem:[#allocation11 + $0x98] sm:$0xff]
    %v806 = vld [vmem:[#allocation11 + $0xa0] sm:$0xff]
    %v807 = vld [vmem:[#allocation11 + $0xa8] sm:$0xff]
    %v808 = vld [vmem:[#allocation11 + $0xb0] sm:$0xff]
    %v809 = vld [vmem:[#allocation11 + $0xb8] sm:$0xff]
    %v810 = vld [vmem:[#allocation11 + $0xc0] sm:$0xff]
    %v811 = vld [vmem:[#allocation11 + $0xc8] sm:$0xff]
    %v812 = vld [vmem:[#allocation11 + $0xd0] sm:$0xff]
    %v813 = vld [vmem:[#allocation11 + $0xd8] sm:$0xff]
    %v814 = vld [vmem:[#allocation11 + $0xe0] sm:$0xff]
    %v815 = vld [vmem:[#allocation11 + $0xe8] sm:$0xff]
    %v816 = vld [vmem:[#allocation11 + $0xf0] sm:$0xff]
    %v817 = vld [vmem:[#allocation11 + $0xf8] sm:$0xff]
    %v818 = vld [vmem:[#allocation11 + $0x100] sm:$0xff]
    %v819 = vld [vmem:[#allocation11 + $0x108] sm:$0xff]
    %v820 = vld [vmem:[#allocation11 + $0x110] sm:$0xff]
    %v821 = vld [vmem:[#allocation11 + $0x118] sm:$0xff]
    %v822 = vld [vmem:[#allocation11 + $0x120] sm:$0xff]
    %v823 = vld [vmem:[#allocation11 + $0x128] sm:$0xff]
    %v824 = vld [vmem:[#allocation11 + $0x130] sm:$0xff]
    %v825 = vld [vmem:[#allocation11 + $0x138] sm:$0xff]
    %v826 = vld [vmem:[#allocation11 + $0x140] sm:$0xff]
    %v827 = vld [vmem:[#allocation11 + $0x148] sm:$0xff]
    %v828 = vld [vmem:[#allocation11 + $0x150] sm:$0xff]
    %v829 = vld [vmem:[#allocation11 + $0x158] sm:$0xff]
    %v830 = vld [vmem:[#allocation11 + $0x160] sm:$0xff]
    %v831 = vld [vmem:[#allocation11 + $0x168] sm:$0xff]
    %v832 = vld [vmem:[#allocation11 + $0x170] sm:$0xff]
    %v833 = vld [vmem:[#allocation11 + $0x178] sm:$0xff]
    %v834 = vld [vmem:[#allocation11 + $0x180] sm:$0xff]
    %v835 = vld [vmem:[#allocation11 + $0x188] sm:$0xff]
    %v836 = vld [vmem:[#allocation11 + $0x190] sm:$0xff]
    %v837 = vld [vmem:[#allocation11 + $0x198] sm:$0xff]
    %v838 = vld [vmem:[#allocation11 + $0x1a0] sm:$0xff]
    %v839 = vld [vmem:[#allocation11 + $0x1a8] sm:$0xff]
    %v840 = vld [vmem:[#allocation11 + $0x1b0] sm:$0xff]
    %v841 = vld [vmem:[#allocation11 + $0x1b8] sm:$0xff]
    %v842 = vld [vmem:[#allocation11 + $0x1c0] sm:$0xff]
    %v843 = vld [vmem:[#allocation11 + $0x1c8] sm:$0xff]
    %v844 = vld [vmem:[#allocation11 + $0x1d0] sm:$0xff]
    %v845 = vld [vmem:[#allocation11 + $0x1d8] sm:$0xff]
    %v846 = vld [vmem:[#allocation11 + $0x1e0] sm:$0xff]
    %v847 = vld [vmem:[#allocation11 + $0x1e8] sm:$0xff]
    %v848 = vld [vmem:[#allocation11 + $0x1f0] sm:$0xff]
    %v849 = vld [vmem:[#allocation11 + $0x1f8] sm:$0xff]
    %v850 = vld [vmem:[#allocation11 + $0x200] sm:$0xff]
    %v851 = vld [vmem:[#allocation11 + $0x208] sm:$0xff]
    %v852 = vld [vmem:[#allocation11 + $0x210] sm:$0xff]
    %v853 = vld [vmem:[#allocation11 + $0x218] sm:$0xff]
    %v854 = vld [vmem:[#allocation11 + $0x220] sm:$0xff]
    %v855 = vld [vmem:[#allocation11 + $0x228] sm:$0xff]
    %v856 = vld [vmem:[#allocation11 + $0x230] sm:$0xff]
    %v857 = vld [vmem:[#allocation11 + $0x238] sm:$0xff]
    %v858 = vld [vmem:[#allocation11 + $0x240] sm:$0xff]
    %v859 = vld [vmem:[#allocation11 + $0x248] sm:$0xff]
    %v860 = vld [vmem:[#allocation11 + $0x250] sm:$0xff]
    %v861 = vld [vmem:[#allocation11 + $0x258] sm:$0xff]
    %v862 = vld [vmem:[#allocation11 + $0x260] sm:$0xff]
    %v863 = vld [vmem:[#allocation11 + $0x268] sm:$0xff]
    %v864 = vld [vmem:[#allocation11 + $0x270] sm:$0xff]
    %v865 = vld [vmem:[#allocation11 + $0x278] sm:$0xff]
    %v866 = vld [vmem:[#allocation11 + $0x280] sm:$0xff]
    %v867 = vld [vmem:[#allocation11 + $0x288] sm:$0xff]
    %v868 = vld [vmem:[#allocation11 + $0x290] sm:$0xff]
    %v869 = vld [vmem:[#allocation11 + $0x298] sm:$0xff]
    %v870 = vld [vmem:[#allocation11 + $0x2a0] sm:$0xff]
    %v871 = vld [vmem:[#allocation11 + $0x2a8] sm:$0xff]
    %v872 = vld [vmem:[#allocation11 + $0x2b0] sm:$0xff]
    %v873 = vld [vmem:[#allocation11 + $0x2b8] sm:$0xff]
    %v874 = vld [vmem:[#allocation11 + $0x2c0] sm:$0xff]
    %v875 = vld [vmem:[#allocation11 + $0x2c8] sm:$0xff]
    %v876 = vld [vmem:[#allocation11 + $0x2d0] sm:$0xff]
    %v877 = vld [vmem:[#allocation11 + $0x2d8] sm:$0xff]
    %v878 = vld [vmem:[#allocation11 + $0x2e0] sm:$0xff]
    %v879 = vld [vmem:[#allocation11 + $0x2e8] sm:$0xff]
    %v880 = vld [vmem:[#allocation11 + $0x2f0] sm:$0xff]
    %v881 = vld [vmem:[#allocation11 + $0x2f8] sm:$0xff]
    %v882 = vld [vmem:[#allocation11 + $0x300] sm:$0xff]
    %v883 = vld [vmem:[#allocation11 + $0x308] sm:$0xff]
    %v884 = vld [vmem:[#allocation11 + $0x310] sm:$0xff]
    %v885 = vld [vmem:[#allocation11 + $0x318] sm:$0xff]
    %v886 = vld [vmem:[#allocation11 + $0x320] sm:$0xff]
    %v887 = vld [vmem:[#allocation11 + $0x328] sm:$0xff]
    %v888 = vld [vmem:[#allocation11 + $0x330] sm:$0xff]
    %v889 = vld [vmem:[#allocation11 + $0x338] sm:$0xff]
    %v890 = vld [vmem:[#allocation11 + $0x340] sm:$0xff]
    %v891 = vld [vmem:[#allocation11 + $0x348] sm:$0xff]
    %v892 = vld [vmem:[#allocation11 + $0x350] sm:$0xff]
    %v893 = vld [vmem:[#allocation11 + $0x358] sm:$0xff]
    %v894 = vld [vmem:[#allocation11 + $0x360] sm:$0xff]
    %v895 = vld [vmem:[#allocation11 + $0x368] sm:$0xff]
    %v896 = vld [vmem:[#allocation11 + $0x370] sm:$0xff]
    %v897 = vld [vmem:[#allocation11 + $0x378] sm:$0xff]
    %v898 = vld [vmem:[#allocation11 + $0x380] sm:$0xff]
    %v899 = vld [vmem:[#allocation11 + $0x388] sm:$0xff]
    %v900 = vld [vmem:[#allocation11 + $0x390] sm:$0xff]
    %v901 = vld [vmem:[#allocation11 + $0x398] sm:$0xff]
    %v902 = vld [vmem:[#allocation11 + $0x3a0] sm:$0xff]
    %v903 = vld [vmem:[#allocation11 + $0x3a8] sm:$0xff]
    %v904 = vld [vmem:[#allocation11 + $0x3b0] sm:$0xff]
    %v905 = vld [vmem:[#allocation11 + $0x3b8] sm:$0xff]
    %v906 = vld [vmem:[#allocation11 + $0x3c0] sm:$0xff]
    %v907 = vld [vmem:[#allocation11 + $0x3c8] sm:$0xff]
    %v908 = vld [vmem:[#allocation11 + $0x3d0] sm:$0xff]
    %v909 = vld [vmem:[#allocation11 + $0x3d8] sm:$0xff]
    %v910 = vld [vmem:[#allocation11 + $0x3e0] sm:$0xff]
    %v911 = vld [vmem:[#allocation11 + $0x3e8] sm:$0xff]
    %v912 = vld [vmem:[#allocation11 + $0x3f0] sm:$0xff]
    %v913 = vld [vmem:[#allocation11 + $0x3f8] sm:$0xff]
    %v914 = vld [vmem:[%s13] sm:$0xf]
    %v915 = vld [vmem:[#allocation13] sm:$0xf]
    %v916 = vld [vmem:[#allocation14] sm:$0xf]
    %v917 = vpack.c.bf16 %v782, %v782
    %v918 = vpack.c.bf16 %v783, %v783
    %v919 = vpack.c.bf16 %v784, %v784
    %v920 = vpack.c.bf16 %v785, %v785
    %v922 = vperm.slane %v914, 0
    %v923 = vperm.slane %v914, 1
    %v924 = vperm.slane %v914, 2
    %v925 = vperm.slane %v914, 3
    %v1058 = vunpack.c.l.b16 %v786
    %v1059 = vunpack.c.h.b16 %v786
    %v1060 = vunpack.c.l.b16 %v787
    %v1061 = vunpack.c.h.b16 %v787
    %v1062 = vunpack.c.l.b16 %v788
    %v1063 = vunpack.c.h.b16 %v788
    %v1064 = vunpack.c.l.b16 %v789
    %v1065 = vunpack.c.h.b16 %v789
    %v1066 = vunpack.c.l.b16 %v790
    %v1067 = vunpack.c.h.b16 %v790
    %v1068 = vunpack.c.l.b16 %v791
    %v1069 = vunpack.c.h.b16 %v791
    %v1070 = vunpack.c.l.b16 %v792
    %v1071 = vunpack.c.h.b16 %v792
    %v1072 = vunpack.c.l.b16 %v793
    %v1073 = vunpack.c.h.b16 %v793
    %v1074 = vunpack.c.l.b16 %v794
    %v1075 = vunpack.c.h.b16 %v794
    %v1076 = vunpack.c.l.b16 %v795
    %v1077 = vunpack.c.h.b16 %v795
    %v1078 = vunpack.c.l.b16 %v796
    %v1079 = vunpack.c.h.b16 %v796
    %v1080 = vunpack.c.l.b16 %v797
    %v1081 = vunpack.c.h.b16 %v797
    %v1082 = vunpack.c.l.b16 %v798
    %v1083 = vunpack.c.h.b16 %v798
    %v1084 = vunpack.c.l.b16 %v799
    %v1085 = vunpack.c.h.b16 %v799
    %v1086 = vunpack.c.l.b16 %v800
    %v1087 = vunpack.c.h.b16 %v800
    %v1088 = vunpack.c.l.b16 %v801
    %v1089 = vunpack.c.h.b16 %v801
    %v1090 = vunpack.c.l.b16 %v802
    %v1091 = vunpack.c.h.b16 %v802
    %v1092 = vunpack.c.l.b16 %v803
    %v1093 = vunpack.c.h.b16 %v803
    %v1094 = vunpack.c.l.b16 %v804
    %v1095 = vunpack.c.h.b16 %v804
    %v1096 = vunpack.c.l.b16 %v805
    %v1097 = vunpack.c.h.b16 %v805
    %v1098 = vunpack.c.l.b16 %v806
    %v1099 = vunpack.c.h.b16 %v806
    %v1100 = vunpack.c.l.b16 %v807
    %v1101 = vunpack.c.h.b16 %v807
    %v1102 = vunpack.c.l.b16 %v808
    %v1103 = vunpack.c.h.b16 %v808
    %v1104 = vunpack.c.l.b16 %v809
    %v1105 = vunpack.c.h.b16 %v809
    %v1106 = vunpack.c.l.b16 %v810
    %v1107 = vunpack.c.h.b16 %v810
    %v1108 = vunpack.c.l.b16 %v811
    %v1109 = vunpack.c.h.b16 %v811
    %v1110 = vunpack.c.l.b16 %v812
    %v1111 = vunpack.c.h.b16 %v812
    %v1112 = vunpack.c.l.b16 %v813
    %v1113 = vunpack.c.h.b16 %v813
    %v1114 = vunpack.c.l.b16 %v814
    %v1115 = vunpack.c.h.b16 %v814
    %v1116 = vunpack.c.l.b16 %v815
    %v1117 = vunpack.c.h.b16 %v815
    %v1118 = vunpack.c.l.b16 %v816
    %v1119 = vunpack.c.h.b16 %v816
    %v1120 = vunpack.c.l.b16 %v817
    %v1121 = vunpack.c.h.b16 %v817
    %v1122 = vunpack.c.l.b16 %v818
    %v1123 = vunpack.c.h.b16 %v818
    %v1124 = vunpack.c.l.b16 %v819
    %v1125 = vunpack.c.h.b16 %v819
    %v1126 = vunpack.c.l.b16 %v820
    %v1127 = vunpack.c.h.b16 %v820
    %v1128 = vunpack.c.l.b16 %v821
    %v1129 = vunpack.c.h.b16 %v821
    %v1130 = vunpack.c.l.b16 %v822
    %v1131 = vunpack.c.h.b16 %v822
    %v1132 = vunpack.c.l.b16 %v823
    %v1133 = vunpack.c.h.b16 %v823
    %v1134 = vunpack.c.l.b16 %v824
    %v1135 = vunpack.c.h.b16 %v824
    %v1136 = vunpack.c.l.b16 %v825
    %v1137 = vunpack.c.h.b16 %v825
    %v1138 = vunpack.c.l.b16 %v826
    %v1139 = vunpack.c.h.b16 %v826
    %v1140 = vunpack.c.l.b16 %v827
    %v1141 = vunpack.c.h.b16 %v827
    %v1142 = vunpack.c.l.b16 %v828
    %v1143 = vunpack.c.h.b16 %v828
    %v1144 = vunpack.c.l.b16 %v829
    %v1145 = vunpack.c.h.b16 %v829
    %v1146 = vunpack.c.l.b16 %v830
    %v1147 = vunpack.c.h.b16 %v830
    %v1148 = vunpack.c.l.b16 %v831
    %v1149 = vunpack.c.h.b16 %v831
    %v1150 = vunpack.c.l.b16 %v832
    %v1151 = vunpack.c.h.b16 %v832
    %v1152 = vunpack.c.l.b16 %v833
    %v1153 = vunpack.c.h.b16 %v833
    %v1154 = vunpack.c.l.b16 %v834
    %v1155 = vunpack.c.h.b16 %v834
    %v1156 = vunpack.c.l.b16 %v835
    %v1157 = vunpack.c.h.b16 %v835
    %v1158 = vunpack.c.l.b16 %v836
    %v1159 = vunpack.c.h.b16 %v836
    %v1160 = vunpack.c.l.b16 %v837
    %v1161 = vunpack.c.h.b16 %v837
    %v1162 = vunpack.c.l.b16 %v838
    %v1163 = vunpack.c.h.b16 %v838
    %v1164 = vunpack.c.l.b16 %v839
    %v1165 = vunpack.c.h.b16 %v839
    %v1166 = vunpack.c.l.b16 %v840
    %v1167 = vunpack.c.h.b16 %v840
    %v1168 = vunpack.c.l.b16 %v841
    %v1169 = vunpack.c.h.b16 %v841
    %v1170 = vunpack.c.l.b16 %v842
    %v1171 = vunpack.c.h.b16 %v842
    %v1172 = vunpack.c.l.b16 %v843
    %v1173 = vunpack.c.h.b16 %v843
    %v1174 = vunpack.c.l.b16 %v844
    %v1175 = vunpack.c.h.b16 %v844
    %v1176 = vunpack.c.l.b16 %v845
    %v1177 = vunpack.c.h.b16 %v845
    %v1178 = vunpack.c.l.b16 %v846
    %v1179 = vunpack.c.h.b16 %v846
    %v1180 = vunpack.c.l.b16 %v847
    %v1181 = vunpack.c.h.b16 %v847
    %v1182 = vunpack.c.l.b16 %v848
    %v1183 = vunpack.c.h.b16 %v848
    %v1184 = vunpack.c.l.b16 %v849
    %v1185 = vunpack.c.h.b16 %v849
    %v1186 = vunpack.c.l.b16 %v850
    %v1187 = vunpack.c.h.b16 %v850
    %v1188 = vunpack.c.l.b16 %v851
    %v1189 = vunpack.c.h.b16 %v851
    %v1190 = vunpack.c.l.b16 %v852
    %v1191 = vunpack.c.h.b16 %v852
    %v1192 = vunpack.c.l.b16 %v853
    %v1193 = vunpack.c.h.b16 %v853
    %v1194 = vunpack.c.l.b16 %v854
    %v1195 = vunpack.c.h.b16 %v854
    %v1196 = vunpack.c.l.b16 %v855
    %v1197 = vunpack.c.h.b16 %v855
    %v1198 = vunpack.c.l.b16 %v856
    %v1199 = vunpack.c.h.b16 %v856
    %v1200 = vunpack.c.l.b16 %v857
    %v1201 = vunpack.c.h.b16 %v857
    %v1202 = vunpack.c.l.b16 %v858
    %v1203 = vunpack.c.h.b16 %v858
    %v1204 = vunpack.c.l.b16 %v859
    %v1205 = vunpack.c.h.b16 %v859
    %v1206 = vunpack.c.l.b16 %v860
    %v1207 = vunpack.c.h.b16 %v860
    %v1208 = vunpack.c.l.b16 %v861
    %v1209 = vunpack.c.h.b16 %v861
    %v1210 = vunpack.c.l.b16 %v862
    %v1211 = vunpack.c.h.b16 %v862
    %v1212 = vunpack.c.l.b16 %v863
    %v1213 = vunpack.c.h.b16 %v863
    %v1214 = vunpack.c.l.b16 %v864
    %v1215 = vunpack.c.h.b16 %v864
    %v1216 = vunpack.c.l.b16 %v865
    %v1217 = vunpack.c.h.b16 %v865
    %v1218 = vunpack.c.l.b16 %v866
    %v1219 = vunpack.c.h.b16 %v866
    %v1220 = vunpack.c.l.b16 %v867
    %v1221 = vunpack.c.h.b16 %v867
    %v1222 = vunpack.c.l.b16 %v868
    %v1223 = vunpack.c.h.b16 %v868
    %v1224 = vunpack.c.l.b16 %v869
    %v1225 = vunpack.c.h.b16 %v869
    %v1226 = vunpack.c.l.b16 %v870
    %v1227 = vunpack.c.h.b16 %v870
    %v1228 = vunpack.c.l.b16 %v871
    %v1229 = vunpack.c.h.b16 %v871
    %v1230 = vunpack.c.l.b16 %v872
    %v1231 = vunpack.c.h.b16 %v872
    %v1232 = vunpack.c.l.b16 %v873
    %v1233 = vunpack.c.h.b16 %v873
    %v1234 = vunpack.c.l.b16 %v874
    %v1235 = vunpack.c.h.b16 %v874
    %v1236 = vunpack.c.l.b16 %v875
    %v1237 = vunpack.c.h.b16 %v875
    %v1238 = vunpack.c.l.b16 %v876
    %v1239 = vunpack.c.h.b16 %v876
    %v1240 = vunpack.c.l.b16 %v877
    %v1241 = vunpack.c.h.b16 %v877
    %v1242 = vunpack.c.l.b16 %v878
    %v1243 = vunpack.c.h.b16 %v878
    %v1244 = vunpack.c.l.b16 %v879
    %v1245 = vunpack.c.h.b16 %v879
    %v1246 = vunpack.c.l.b16 %v880
    %v1247 = vunpack.c.h.b16 %v880
    %v1248 = vunpack.c.l.b16 %v881
    %v1249 = vunpack.c.h.b16 %v881
    %v1250 = vunpack.c.l.b16 %v882
    %v1251 = vunpack.c.h.b16 %v882
    %v1252 = vunpack.c.l.b16 %v883
    %v1253 = vunpack.c.h.b16 %v883
    %v1254 = vunpack.c.l.b16 %v884
    %v1255 = vunpack.c.h.b16 %v884
    %v1256 = vunpack.c.l.b16 %v885
    %v1257 = vunpack.c.h.b16 %v885
    %v1258 = vunpack.c.l.b16 %v886
    %v1259 = vunpack.c.h.b16 %v886
    %v1260 = vunpack.c.l.b16 %v887
    %v1261 = vunpack.c.h.b16 %v887
    %v1262 = vunpack.c.l.b16 %v888
    %v1263 = vunpack.c.h.b16 %v888
    %v1264 = vunpack.c.l.b16 %v889
    %v1265 = vunpack.c.h.b16 %v889
    %v1266 = vunpack.c.l.b16 %v890
    %v1267 = vunpack.c.h.b16 %v890
    %v1268 = vunpack.c.l.b16 %v891
    %v1269 = vunpack.c.h.b16 %v891
    %v1270 = vunpack.c.l.b16 %v892
    %v1271 = vunpack.c.h.b16 %v892
    %v1272 = vunpack.c.l.b16 %v893
    %v1273 = vunpack.c.h.b16 %v893
    %v1274 = vunpack.c.l.b16 %v894
    %v1275 = vunpack.c.h.b16 %v894
    %v1276 = vunpack.c.l.b16 %v895
    %v1277 = vunpack.c.h.b16 %v895
    %v1278 = vunpack.c.l.b16 %v896
    %v1279 = vunpack.c.h.b16 %v896
    %v1280 = vunpack.c.l.b16 %v897
    %v1281 = vunpack.c.h.b16 %v897
    %v1282 = vunpack.c.l.b16 %v898
    %v1283 = vunpack.c.h.b16 %v898
    %v1284 = vunpack.c.l.b16 %v899
    %v1285 = vunpack.c.h.b16 %v899
    %v1286 = vunpack.c.l.b16 %v900
    %v1287 = vunpack.c.h.b16 %v900
    %v1288 = vunpack.c.l.b16 %v901
    %v1289 = vunpack.c.h.b16 %v901
    %v1290 = vunpack.c.l.b16 %v902
    %v1291 = vunpack.c.h.b16 %v902
    %v1292 = vunpack.c.l.b16 %v903
    %v1293 = vunpack.c.h.b16 %v903
    %v1294 = vunpack.c.l.b16 %v904
    %v1295 = vunpack.c.h.b16 %v904
    %v1296 = vunpack.c.l.b16 %v905
    %v1297 = vunpack.c.h.b16 %v905
    %v1298 = vunpack.c.l.b16 %v906
    %v1299 = vunpack.c.h.b16 %v906
    %v1300 = vunpack.c.l.b16 %v907
    %v1301 = vunpack.c.h.b16 %v907
    %v1302 = vunpack.c.l.b16 %v908
    %v1303 = vunpack.c.h.b16 %v908
    %v1304 = vunpack.c.l.b16 %v909
    %v1305 = vunpack.c.h.b16 %v909
    %v1306 = vunpack.c.l.b16 %v910
    %v1307 = vunpack.c.h.b16 %v910
    %v1308 = vunpack.c.l.b16 %v911
    %v1309 = vunpack.c.h.b16 %v911
    %v1310 = vunpack.c.l.b16 %v912
    %v1311 = vunpack.c.h.b16 %v912
    %v1312 = vunpack.c.l.b16 %v913
    %v1313 = vunpack.c.h.b16 %v913
    %v1314 = vpack.c.b16 %v1062, %v1058
    %v1315 = vpack.c.b16 %v1063, %v1059
    %v1316 = vpack.c.b16 %v1064, %v1060
    %v1317 = vpack.c.b16 %v1065, %v1061
    %v1318 = vpack.c.b16 %v1070, %v1066
    %v1319 = vpack.c.b16 %v1071, %v1067
    %v1320 = vpack.c.b16 %v1072, %v1068
    %v1321 = vpack.c.b16 %v1073, %v1069
    %v1322 = vpack.c.b16 %v1078, %v1074
    %v1323 = vpack.c.b16 %v1079, %v1075
    %v1324 = vpack.c.b16 %v1080, %v1076
    %v1325 = vpack.c.b16 %v1081, %v1077
    %v1326 = vpack.c.b16 %v1086, %v1082
    %v1327 = vpack.c.b16 %v1087, %v1083
    %v1328 = vpack.c.b16 %v1088, %v1084
    %v1329 = vpack.c.b16 %v1089, %v1085
    %v1330 = vpack.c.b16 %v1094, %v1090
    %v1331 = vpack.c.b16 %v1095, %v1091
    %v1332 = vpack.c.b16 %v1096, %v1092
    %v1333 = vpack.c.b16 %v1097, %v1093
    %v1334 = vpack.c.b16 %v1102, %v1098
    %v1335 = vpack.c.b16 %v1103, %v1099
    %v1336 = vpack.c.b16 %v1104, %v1100
    %v1337 = vpack.c.b16 %v1105, %v1101
    %v1338 = vpack.c.b16 %v1110, %v1106
    %v1339 = vpack.c.b16 %v1111, %v1107
    %v1340 = vpack.c.b16 %v1112, %v1108
    %v1341 = vpack.c.b16 %v1113, %v1109
    %v1342 = vpack.c.b16 %v1118, %v1114
    %v1343 = vpack.c.b16 %v1119, %v1115
    %v1344 = vpack.c.b16 %v1120, %v1116
    %v1345 = vpack.c.b16 %v1121, %v1117
    %v1346 = vpack.c.b16 %v1126, %v1122
    %v1347 = vpack.c.b16 %v1127, %v1123
    %v1348 = vpack.c.b16 %v1128, %v1124
    %v1349 = vpack.c.b16 %v1129, %v1125
    %v1350 = vpack.c.b16 %v1134, %v1130
    %v1351 = vpack.c.b16 %v1135, %v1131
    %v1352 = vpack.c.b16 %v1136, %v1132
    %v1353 = vpack.c.b16 %v1137, %v1133
    %v1354 = vpack.c.b16 %v1142, %v1138
    %v1355 = vpack.c.b16 %v1143, %v1139
    %v1356 = vpack.c.b16 %v1144, %v1140
    %v1357 = vpack.c.b16 %v1145, %v1141
    %v1358 = vpack.c.b16 %v1150, %v1146
    %v1359 = vpack.c.b16 %v1151, %v1147
    %v1360 = vpack.c.b16 %v1152, %v1148
    %v1361 = vpack.c.b16 %v1153, %v1149
    %v1362 = vpack.c.b16 %v1158, %v1154
    %v1363 = vpack.c.b16 %v1159, %v1155
    %v1364 = vpack.c.b16 %v1160, %v1156
    %v1365 = vpack.c.b16 %v1161, %v1157
    %v1366 = vpack.c.b16 %v1166, %v1162
    %v1367 = vpack.c.b16 %v1167, %v1163
    %v1368 = vpack.c.b16 %v1168, %v1164
    %v1369 = vpack.c.b16 %v1169, %v1165
    %v1370 = vpack.c.b16 %v1174, %v1170
    %v1371 = vpack.c.b16 %v1175, %v1171
    %v1372 = vpack.c.b16 %v1176, %v1172
    %v1373 = vpack.c.b16 %v1177, %v1173
    %v1374 = vpack.c.b16 %v1182, %v1178
    %v1375 = vpack.c.b16 %v1183, %v1179
    %v1376 = vpack.c.b16 %v1184, %v1180
    %v1377 = vpack.c.b16 %v1185, %v1181
    %v1378 = vpack.c.b16 %v1190, %v1186
    %v1379 = vpack.c.b16 %v1191, %v1187
    %v1380 = vpack.c.b16 %v1192, %v1188
    %v1381 = vpack.c.b16 %v1193, %v1189
    %v1382 = vpack.c.b16 %v1198, %v1194
    %v1383 = vpack.c.b16 %v1199, %v1195
    %v1384 = vpack.c.b16 %v1200, %v1196
    %v1385 = vpack.c.b16 %v1201, %v1197
    %v1386 = vpack.c.b16 %v1206, %v1202
    %v1387 = vpack.c.b16 %v1207, %v1203
    %v1388 = vpack.c.b16 %v1208, %v1204
    %v1389 = vpack.c.b16 %v1209, %v1205
    %v1390 = vpack.c.b16 %v1214, %v1210
    %v1391 = vpack.c.b16 %v1215, %v1211
    %v1392 = vpack.c.b16 %v1216, %v1212
    %v1393 = vpack.c.b16 %v1217, %v1213
    %v1394 = vpack.c.b16 %v1222, %v1218
    %v1395 = vpack.c.b16 %v1223, %v1219
    %v1396 = vpack.c.b16 %v1224, %v1220
    %v1397 = vpack.c.b16 %v1225, %v1221
    %v1398 = vpack.c.b16 %v1230, %v1226
    %v1399 = vpack.c.b16 %v1231, %v1227
    %v1400 = vpack.c.b16 %v1232, %v1228
    %v1401 = vpack.c.b16 %v1233, %v1229
    %v1402 = vpack.c.b16 %v1238, %v1234
    %v1403 = vpack.c.b16 %v1239, %v1235
    %v1404 = vpack.c.b16 %v1240, %v1236
    %v1405 = vpack.c.b16 %v1241, %v1237
    %v1406 = vpack.c.b16 %v1246, %v1242
    %v1407 = vpack.c.b16 %v1247, %v1243
    %v1408 = vpack.c.b16 %v1248, %v1244
    %v1409 = vpack.c.b16 %v1249, %v1245
    %v1410 = vpack.c.b16 %v1254, %v1250
    %v1411 = vpack.c.b16 %v1255, %v1251
    %v1412 = vpack.c.b16 %v1256, %v1252
    %v1413 = vpack.c.b16 %v1257, %v1253
    %v1414 = vpack.c.b16 %v1262, %v1258
    %v1415 = vpack.c.b16 %v1263, %v1259
    %v1416 = vpack.c.b16 %v1264, %v1260
    %v1417 = vpack.c.b16 %v1265, %v1261
    %v1418 = vpack.c.b16 %v1270, %v1266
    %v1419 = vpack.c.b16 %v1271, %v1267
    %v1420 = vpack.c.b16 %v1272, %v1268
    %v1421 = vpack.c.b16 %v1273, %v1269
    %v1422 = vpack.c.b16 %v1278, %v1274
    %v1423 = vpack.c.b16 %v1279, %v1275
    %v1424 = vpack.c.b16 %v1280, %v1276
    %v1425 = vpack.c.b16 %v1281, %v1277
    %v1426 = vpack.c.b16 %v1286, %v1282
    %v1427 = vpack.c.b16 %v1287, %v1283
    %v1428 = vpack.c.b16 %v1288, %v1284
    %v1429 = vpack.c.b16 %v1289, %v1285
    %v1430 = vpack.c.b16 %v1294, %v1290
    %v1431 = vpack.c.b16 %v1295, %v1291
    %v1432 = vpack.c.b16 %v1296, %v1292
    %v1433 = vpack.c.b16 %v1297, %v1293
    %v1434 = vpack.c.b16 %v1302, %v1298
    %v1435 = vpack.c.b16 %v1303, %v1299
    %v1436 = vpack.c.b16 %v1304, %v1300
    %v1437 = vpack.c.b16 %v1305, %v1301
    %v1438 = vpack.c.b16 %v1310, %v1306
    %v1439 = vpack.c.b16 %v1311, %v1307
    %v1440 = vpack.c.b16 %v1312, %v1308
    %v1441 = vpack.c.b16 %v1313, %v1309
    %1570 = vmatpush.bf16.msra.mxu0 %v1342
    %1571 = vmatpush.bf16.msra.mxu0 %v1338
    %1572 = vmatpush.bf16.msra.mxu0 %v1334
    %1573 = vmatpush.bf16.msra.mxu0 %v1330
    %1574 = vmatpush.bf16.msra.mxu0 %v1326
    %1575 = vmatpush.bf16.msra.mxu0 %v1322
    %1576 = vmatpush.bf16.msra.mxu0 %v1318
    %1577 = vmatpush.bf16.msra.mxu0 %v1314
    %1578 = vmatmul.bf16.gmra.mxu0 %v917
    %v1579 = vpop.f32.mrf.mxu0
    %v1580 = vadd.f32 %v922, %v1579
    %v1581 = vpop.f32.mrf.mxu0
    %1582 = vdwg.mxu0
    %1583 = vmatpush.bf16.msra.mxu0 %v1374
    %1584 = vmatpush.bf16.msra.mxu0 %v1370
    %1585 = vmatpush.bf16.msra.mxu0 %v1366
    %1586 = vmatpush.bf16.msra.mxu0 %v1362
    %1587 = vmatpush.bf16.msra.mxu0 %v1358
    %1588 = vmatpush.bf16.msra.mxu0 %v1354
    %1589 = vmatpush.bf16.msra.mxu0 %v1350
    %1590 = vmatpush.bf16.msra.mxu0 %v1346
    %1591 = vmatmul.bf16.gmra.mxu0 %v918
    %v1592 = vpop.f32.mrf.mxu0
    %v1593 = vadd.f32 %v1580, %v1592
    %v1594 = vpop.f32.mrf.mxu0
    %1595 = vdwg.mxu0
    %1596 = vmatpush.bf16.msra.mxu0 %v1406
    %1597 = vmatpush.bf16.msra.mxu0 %v1402
    %1598 = vmatpush.bf16.msra.mxu0 %v1398
    %1599 = vmatpush.bf16.msra.mxu0 %v1394
    %1600 = vmatpush.bf16.msra.mxu0 %v1390
    %1601 = vmatpush.bf16.msra.mxu0 %v1386
    %1602 = vmatpush.bf16.msra.mxu0 %v1382
    %1603 = vmatpush.bf16.msra.mxu0 %v1378
    %1604 = vmatmul.bf16.gmra.mxu0 %v919
    %v1605 = vpop.f32.mrf.mxu0
    %v1606 = vadd.f32 %v1593, %v1605
    %v1607 = vpop.f32.mrf.mxu0
    %1608 = vdwg.mxu0
    %1609 = vmatpush.bf16.msra.mxu0 %v1438
    %1610 = vmatpush.bf16.msra.mxu0 %v1434
    %1611 = vmatpush.bf16.msra.mxu0 %v1430
    %1612 = vmatpush.bf16.msra.mxu0 %v1426
    %1613 = vmatpush.bf16.msra.mxu0 %v1422
    %1614 = vmatpush.bf16.msra.mxu0 %v1418
    %1615 = vmatpush.bf16.msra.mxu0 %v1414
    %1616 = vmatpush.bf16.msra.mxu0 %v1410
    %1617 = vmatmul.bf16.gmra.mxu0 %v920
    %v1618 = vpop.f32.mrf.mxu0
    %v1619 = vadd.f32 %v1606, %v1618
    %v1620 = vpop.f32.mrf.mxu0
    %1621 = vdwg.mxu0
    %1622 = vmatpush.bf16.msra.mxu0 %v1343
    %1623 = vmatpush.bf16.msra.mxu0 %v1339
    %1624 = vmatpush.bf16.msra.mxu0 %v1335
    %1625 = vmatpush.bf16.msra.mxu0 %v1331
    %1626 = vmatpush.bf16.msra.mxu0 %v1327
    %1627 = vmatpush.bf16.msra.mxu0 %v1323
    %1628 = vmatpush.bf16.msra.mxu0 %v1319
    %1629 = vmatpush.bf16.msra.mxu0 %v1315
    %1630 = vmatmul.bf16.gmra.mxu0 %v917
    %v1631 = vpop.f32.mrf.mxu0
    %v1632 = vadd.f32 %v923, %v1631
    %v1633 = vpop.f32.mrf.mxu0
    %1634 = vdwg.mxu0
    %1635 = vmatpush.bf16.msra.mxu0 %v1375
    %1636 = vmatpush.bf16.msra.mxu0 %v1371
    %1637 = vmatpush.bf16.msra.mxu0 %v1367
    %1638 = vmatpush.bf16.msra.mxu0 %v1363
    %1639 = vmatpush.bf16.msra.mxu0 %v1359
    %1640 = vmatpush.bf16.msra.mxu0 %v1355
    %1641 = vmatpush.bf16.msra.mxu0 %v1351
    %1642 = vmatpush.bf16.msra.mxu0 %v1347
    %1643 = vmatmul.bf16.gmra.mxu0 %v918
    %v1644 = vpop.f32.mrf.mxu0
    %v1645 = vadd.f32 %v1632, %v1644
    %v1646 = vpop.f32.mrf.mxu0
    %1647 = vdwg.mxu0
    %1648 = vmatpush.bf16.msra.mxu0 %v1407
    %1649 = vmatpush.bf16.msra.mxu0 %v1403
    %1650 = vmatpush.bf16.msra.mxu0 %v1399
    %1651 = vmatpush.bf16.msra.mxu0 %v1395
    %1652 = vmatpush.bf16.msra.mxu0 %v1391
    %1653 = vmatpush.bf16.msra.mxu0 %v1387
    %1654 = vmatpush.bf16.msra.mxu0 %v1383
    %1655 = vmatpush.bf16.msra.mxu0 %v1379
    %1656 = vmatmul.bf16.gmra.mxu0 %v919
    %v1657 = vpop.f32.mrf.mxu0
    %v1658 = vadd.f32 %v1645, %v1657
    %v1659 = vpop.f32.mrf.mxu0
    %1660 = vdwg.mxu0
    %1661 = vmatpush.bf16.msra.mxu0 %v1439
    %1662 = vmatpush.bf16.msra.mxu0 %v1435
    %1663 = vmatpush.bf16.msra.mxu0 %v1431
    %1664 = vmatpush.bf16.msra.mxu0 %v1427
    %1665 = vmatpush.bf16.msra.mxu0 %v1423
    %1666 = vmatpush.bf16.msra.mxu0 %v1419
    %1667 = vmatpush.bf16.msra.mxu0 %v1415
    %1668 = vmatpush.bf16.msra.mxu0 %v1411
    %1669 = vmatmul.bf16.gmra.mxu0 %v920
    %v1670 = vpop.f32.mrf.mxu0
    %v1671 = vadd.f32 %v1658, %v1670
    %v1672 = vpop.f32.mrf.mxu0
    %1673 = vdwg.mxu0
    %1674 = vmatpush.bf16.msra.mxu0 %v1344
    %1675 = vmatpush.bf16.msra.mxu0 %v1340
    %1676 = vmatpush.bf16.msra.mxu0 %v1336
    %1677 = vmatpush.bf16.msra.mxu0 %v1332
    %1678 = vmatpush.bf16.msra.mxu0 %v1328
    %1679 = vmatpush.bf16.msra.mxu0 %v1324
    %1680 = vmatpush.bf16.msra.mxu0 %v1320
    %1681 = vmatpush.bf16.msra.mxu0 %v1316
    %1682 = vmatmul.bf16.gmra.mxu0 %v917
    %v1683 = vpop.f32.mrf.mxu0
    %v1684 = vadd.f32 %v924, %v1683
    %v1685 = vpop.f32.mrf.mxu0
    %1686 = vdwg.mxu0
    %1687 = vmatpush.bf16.msra.mxu0 %v1376
    %1688 = vmatpush.bf16.msra.mxu0 %v1372
    %1689 = vmatpush.bf16.msra.mxu0 %v1368
    %1690 = vmatpush.bf16.msra.mxu0 %v1364
    %1691 = vmatpush.bf16.msra.mxu0 %v1360
    %1692 = vmatpush.bf16.msra.mxu0 %v1356
    %1693 = vmatpush.bf16.msra.mxu0 %v1352
    %1694 = vmatpush.bf16.msra.mxu0 %v1348
    %1695 = vmatmul.bf16.gmra.mxu0 %v918
    %v1696 = vpop.f32.mrf.mxu0
    %v1697 = vadd.f32 %v1684, %v1696
    %v1698 = vpop.f32.mrf.mxu0
    %1699 = vdwg.mxu0
    %1700 = vmatpush.bf16.msra.mxu0 %v1408
    %1701 = vmatpush.bf16.msra.mxu0 %v1404
    %1702 = vmatpush.bf16.msra.mxu0 %v1400
    %1703 = vmatpush.bf16.msra.mxu0 %v1396
    %1704 = vmatpush.bf16.msra.mxu0 %v1392
    %1705 = vmatpush.bf16.msra.mxu0 %v1388
    %1706 = vmatpush.bf16.msra.mxu0 %v1384
    %1707 = vmatpush.bf16.msra.mxu0 %v1380
    %1708 = vmatmul.bf16.gmra.mxu0 %v919
    %v1709 = vpop.f32.mrf.mxu0
    %v1710 = vadd.f32 %v1697, %v1709
    %v1711 = vpop.f32.mrf.mxu0
    %1712 = vdwg.mxu0
    %1713 = vmatpush.bf16.msra.mxu0 %v1440
    %1714 = vmatpush.bf16.msra.mxu0 %v1436
    %1715 = vmatpush.bf16.msra.mxu0 %v1432
    %1716 = vmatpush.bf16.msra.mxu0 %v1428
    %1717 = vmatpush.bf16.msra.mxu0 %v1424
    %1718 = vmatpush.bf16.msra.mxu0 %v1420
    %1719 = vmatpush.bf16.msra.mxu0 %v1416
    %1720 = vmatpush.bf16.msra.mxu0 %v1412
    %1721 = vmatmul.bf16.gmra.mxu0 %v920
    %v1722 = vpop.f32.mrf.mxu0
    %v1723 = vadd.f32 %v1710, %v1722
    %v1724 = vpop.f32.mrf.mxu0
    %1725 = vdwg.mxu0
    %1726 = vmatpush.bf16.msra.mxu0 %v1345
    %1727 = vmatpush.bf16.msra.mxu0 %v1341
    %1728 = vmatpush.bf16.msra.mxu0 %v1337
    %1729 = vmatpush.bf16.msra.mxu0 %v1333
    %1730 = vmatpush.bf16.msra.mxu0 %v1329
    %1731 = vmatpush.bf16.msra.mxu0 %v1325
    %1732 = vmatpush.bf16.msra.mxu0 %v1321
    %1733 = vmatpush.bf16.msra.mxu0 %v1317
    %1734 = vmatmul.bf16.gmra.mxu0 %v917
    %v1735 = vpop.f32.mrf.mxu0
    %v1736 = vadd.f32 %v925, %v1735
    %v1737 = vpop.f32.mrf.mxu0
    %1738 = vdwg.mxu0
    %1739 = vmatpush.bf16.msra.mxu0 %v1377
    %1740 = vmatpush.bf16.msra.mxu0 %v1373
    %1741 = vmatpush.bf16.msra.mxu0 %v1369
    %1742 = vmatpush.bf16.msra.mxu0 %v1365
    %1743 = vmatpush.bf16.msra.mxu0 %v1361
    %1744 = vmatpush.bf16.msra.mxu0 %v1357
    %1745 = vmatpush.bf16.msra.mxu0 %v1353
    %1746 = vmatpush.bf16.msra.mxu0 %v1349
    %1747 = vmatmul.bf16.gmra.mxu0 %v918
    %v1748 = vpop.f32.mrf.mxu0
    %v1749 = vadd.f32 %v1736, %v1748
    %v1750 = vpop.f32.mrf.mxu0
    %1751 = vdwg.mxu0
    %1752 = vmatpush.bf16.msra.mxu0 %v1409
    %1753 = vmatpush.bf16.msra.mxu0 %v1405
    %1754 = vmatpush.bf16.msra.mxu0 %v1401
    %1755 = vmatpush.bf16.msra.mxu0 %v1397
    %1756 = vmatpush.bf16.msra.mxu0 %v1393
    %1757 = vmatpush.bf16.msra.mxu0 %v1389
    %1758 = vmatpush.bf16.msra.mxu0 %v1385
    %1759 = vmatpush.bf16.msra.mxu0 %v1381
    %1760 = vmatmul.bf16.gmra.mxu0 %v919
    %v1761 = vpop.f32.mrf.mxu0
    %v1762 = vadd.f32 %v1749, %v1761
    %v1763 = vpop.f32.mrf.mxu0
    %1764 = vdwg.mxu0
    %1765 = vmatpush.bf16.msra.mxu0 %v1441
    %1766 = vmatpush.bf16.msra.mxu0 %v1437
    %1767 = vmatpush.bf16.msra.mxu0 %v1433
    %1768 = vmatpush.bf16.msra.mxu0 %v1429
    %1769 = vmatpush.bf16.msra.mxu0 %v1425
    %1770 = vmatpush.bf16.msra.mxu0 %v1421
    %1771 = vmatpush.bf16.msra.mxu0 %v1417
    %1772 = vmatpush.bf16.msra.mxu0 %v1413
    %1773 = vmatmul.bf16.gmra.mxu0 %v920
    %v1774 = vpop.f32.mrf.mxu0
    %v1775 = vadd.f32 %v1762, %v1774
    %v1776 = vpop.f32.mrf.mxu0
    %1777 = vdwg.mxu0
    %v1778 = vmul.f32 %v1619, 0.01
    %v1779 = vmul.f32 %v1671, 0.01
    %v1780 = vmul.f32 %v1723, 0.01
    %v1781 = vmul.f32 %v1775, 0.01
    %v1782 = vmax.f32 %v1619, %v1778
    %v1783 = vmax.f32 %v1671, %v1779
    %v1784 = vmax.f32 %v1723, %v1780
    %v1785 = vmax.f32 %v1775, %v1781
    %v1786 = vrot.slane %v1782, 4
    %v1787 = vadd.f32 %v1782, %v1786
    %v1788 = vrot.slane %v1787, 2
    %v1789 = vadd.f32 %v1787, %v1788
    %v1790 = vrot.slane %v1789, 1
    %v1791 = vadd.f32 %v1789, %v1790
    %v1792 = vrot.slane %v1783, 4
    %v1793 = vadd.f32 %v1783, %v1792
    %v1794 = vrot.slane %v1793, 2
    %v1795 = vadd.f32 %v1793, %v1794
    %v1796 = vrot.slane %v1795, 1
    %v1797 = vadd.f32 %v1795, %v1796
    %v1798 = vrot.slane %v1784, 4
    %v1799 = vadd.f32 %v1784, %v1798
    %v1800 = vrot.slane %v1799, 2
    %v1801 = vadd.f32 %v1799, %v1800
    %v1802 = vrot.slane %v1801, 1
    %v1803 = vadd.f32 %v1801, %v1802
    %v1804 = vrot.slane %v1785, 4
    %v1805 = vadd.f32 %v1785, %v1804
    %v1806 = vrot.slane %v1805, 2
    %v1807 = vadd.f32 %v1805, %v1806
    %v1808 = vrot.slane %v1807, 1
    %v1809 = vadd.f32 %v1807, %v1808
    %v1810 = vmul.f32 %v1791, %v660
    %v1811 = vmul.f32 %v1797, %v660
    %v1812 = vmul.f32 %v1803, %v660
    %v1813 = vmul.f32 %v1809, %v660
    %v1814 = vsub.f32 %v1782, %v1810
    %v1815 = vsub.f32 %v1783, %v1811
    %v1816 = vsub.f32 %v1784, %v1812
    %v1817 = vsub.f32 %v1785, %v1813
    %v1818 = vmul.f32 %v1814, %v1814
    %v1819 = vmul.f32 %v1815, %v1815
    %v1820 = vmul.f32 %v1816, %v1816
    %v1821 = vmul.f32 %v1817, %v1817
    %v1822 = vrot.slane %v1818, 4
    %v1823 = vadd.f32 %v1818, %v1822
    %v1824 = vrot.slane %v1823, 2
    %v1825 = vadd.f32 %v1823, %v1824
    %v1826 = vrot.slane %v1825, 1
    %v1827 = vadd.f32 %v1825, %v1826
    %v1828 = vrot.slane %v1819, 4
    %v1829 = vadd.f32 %v1819, %v1828
    %v1830 = vrot.slane %v1829, 2
    %v1831 = vadd.f32 %v1829, %v1830
    %v1832 = vrot.slane %v1831, 1
    %v1833 = vadd.f32 %v1831, %v1832
    %v1834 = vrot.slane %v1820, 4
    %v1835 = vadd.f32 %v1820, %v1834
    %v1836 = vrot.slane %v1835, 2
    %v1837 = vadd.f32 %v1835, %v1836
    %v1838 = vrot.slane %v1837, 1
    %v1839 = vadd.f32 %v1837, %v1838
    %v1840 = vrot.slane %v1821, 4
    %v1841 = vadd.f32 %v1821, %v1840
    %v1842 = vrot.slane %v1841, 2
    %v1843 = vadd.f32 %v1841, %v1842
    %v1844 = vrot.slane %v1843, 1
    %v1845 = vadd.f32 %v1843, %v1844
    %v1846 = vmul.f32 %v1827, %v660
    %v1847 = vmul.f32 %v1833, %v660
    %v1848 = vmul.f32 %v1839, %v660
    %v1849 = vmul.f32 %v1845, %v660
    %v1850 = vadd.f32 %v1846, 1e-05
    %v1851 = vadd.f32 %v1847, 1e-05
    %v1852 = vadd.f32 %v1848, 1e-05
    %v1853 = vadd.f32 %v1849, 1e-05
    %v1854 = vrsqrt.pop %v1850
    %v1855 = vmul.f32 %v1854, %v1850
    %v1856 = vmul.f32 %v1855, %v1854
    %v1857 = vmul.f32 0.5, %v1856
    %v1858 = vsub.f32 1.5, %v1857
    %v1859 = vmul.f32 %v1854, %v1858
    %vm1860 = vweird.f32 %v1850
    %vm1861 = vweird.f32 %v1854
    %vm1862 = vmor %vm1860, %vm1861
    %v1863 = vsel %vm1862, %v1854, %v1859
    %v1864 = vrsqrt.pop %v1851
    %v1865 = vmul.f32 %v1864, %v1851
    %v1866 = vmul.f32 %v1865, %v1864
    %v1867 = vmul.f32 0.5, %v1866
    %v1868 = vsub.f32 1.5, %v1867
    %v1869 = vmul.f32 %v1864, %v1868
    %vm1870 = vweird.f32 %v1851
    %vm1871 = vweird.f32 %v1864
    %vm1872 = vmor %vm1870, %vm1871
    %v1873 = vsel %vm1872, %v1864, %v1869
    %v1874 = vrsqrt.pop %v1852
    %v1875 = vmul.f32 %v1874, %v1852
    %v1876 = vmul.f32 %v1875, %v1874
    %v1877 = vmul.f32 0.5, %v1876
    %v1878 = vsub.f32 1.5, %v1877
    %v1879 = vmul.f32 %v1874, %v1878
    %vm1880 = vweird.f32 %v1852
    %vm1881 = vweird.f32 %v1874
    %vm1882 = vmor %vm1880, %vm1881
    %v1883 = vsel %vm1882, %v1874, %v1879
    %v1884 = vrsqrt.pop %v1853
    %v1885 = vmul.f32 %v1884, %v1853
    %v1886 = vmul.f32 %v1885, %v1884
    %v1887 = vmul.f32 0.5, %v1886
    %v1888 = vsub.f32 1.5, %v1887
    %v1889 = vmul.f32 %v1884, %v1888
    %vm1890 = vweird.f32 %v1853
    %vm1891 = vweird.f32 %v1884
    %vm1892 = vmor %vm1890, %vm1891
    %v1893 = vsel %vm1892, %v1884, %v1889
    %v1898 = vrot.slane %v1873, 7
    %v1899 = vrot.slane %v1883, 6
    %v1900 = vrot.slane %v1893, 5
    %v1901 = vsel %vm752, %v1863, %v1898
    %v1902 = vsel %vm754, %v1899, %v1900
    %v1903 = vsel %vm756, %v1901, %v1902
    %v1905 = vmul.f32 %v915, %v1903
    %v1907 = vperm.slane %v1905, 0
    %v1908 = vperm.slane %v1905, 1
    %v1909 = vperm.slane %v1905, 2
    %v1910 = vperm.slane %v1905, 3
    %v1915 = vmul.f32 %v1814, %v1907
    %v1916 = vmul.f32 %v1815, %v1908
    %v1917 = vmul.f32 %v1816, %v1909
    %v1918 = vmul.f32 %v1817, %v1910
    %v1920 = vperm.slane %v916, 0
    %v1921 = vperm.slane %v916, 1
    %v1922 = vperm.slane %v916, 2
    %v1923 = vperm.slane %v916, 3
    %v1928 = vadd.f32 %v1915, %v1920
    %v1929 = vadd.f32 %v1916, %v1921
    %v1930 = vadd.f32 %v1917, %v1922
    %v1931 = vadd.f32 %v1918, %v1923
    %v1932 = vld [vmem:[#allocation16] sm:$0xff]
    %v1933 = vld [vmem:[#allocation16 + $0x8] sm:$0xf]
    %v1934 = vld [vmem:[#allocation16 + $0xc] sm:$0xff]
    %v1935 = vld [vmem:[#allocation16 + $0x14] sm:$0xf]
    %v1936 = vld [vmem:[#allocation16 + $0x18] sm:$0xff]
    %v1937 = vld [vmem:[#allocation16 + $0x20] sm:$0xf]
    %v1938 = vld [vmem:[#allocation16 + $0x24] sm:$0xff]
    %v1939 = vld [vmem:[#allocation16 + $0x2c] sm:$0xf]
    %v1940 = vld [vmem:[#allocation16 + $0x30] sm:$0xff]
    %v1941 = vld [vmem:[#allocation16 + $0x38] sm:$0xf]
    %v1942 = vld [vmem:[#allocation16 + $0x3c] sm:$0xff]
    %v1943 = vld [vmem:[#allocation16 + $0x44] sm:$0xf]
    %v1944 = vld [vmem:[#allocation16 + $0x48] sm:$0xff]
    %v1945 = vld [vmem:[#allocation16 + $0x50] sm:$0xf]
    %v1946 = vld [vmem:[#allocation16 + $0x54] sm:$0xff]
    %v1947 = vld [vmem:[#allocation16 + $0x5c] sm:$0xf]
    %v1948 = vld [vmem:[#allocation16 + $0x60] sm:$0xff]
    %v1949 = vld [vmem:[#allocation16 + $0x68] sm:$0xf]
    %v1950 = vld [vmem:[#allocation16 + $0x6c] sm:$0xff]
    %v1951 = vld [vmem:[#allocation16 + $0x74] sm:$0xf]
    %v1952 = vld [vmem:[#allocation16 + $0x78] sm:$0xff]
    %v1953 = vld [vmem:[#allocation16 + $0x80] sm:$0xf]
    %v1954 = vld [vmem:[#allocation16 + $0x84] sm:$0xff]
    %v1955 = vld [vmem:[#allocation16 + $0x8c] sm:$0xf]
    %v1956 = vld [vmem:[#allocation16 + $0x90] sm:$0xff]
    %v1957 = vld [vmem:[#allocation16 + $0x98] sm:$0xf]
    %v1958 = vld [vmem:[#allocation16 + $0x9c] sm:$0xff]
    %v1959 = vld [vmem:[#allocation16 + $0xa4] sm:$0xf]
    %v1960 = vld [vmem:[#allocation16 + $0xa8] sm:$0xff]
    %v1961 = vld [vmem:[#allocation16 + $0xb0] sm:$0xf]
    %v1962 = vld [vmem:[#allocation16 + $0xb4] sm:$0xff]
    %v1963 = vld [vmem:[#allocation16 + $0xbc] sm:$0xf]
    %v1964 = vld [vmem:[#allocation16 + $0xc0] sm:$0xff]
    %v1965 = vld [vmem:[#allocation16 + $0xc8] sm:$0xf]
    %v1966 = vld [vmem:[#allocation16 + $0xcc] sm:$0xff]
    %v1967 = vld [vmem:[#allocation16 + $0xd4] sm:$0xf]
    %v1968 = vld [vmem:[#allocation16 + $0xd8] sm:$0xff]
    %v1969 = vld [vmem:[#allocation16 + $0xe0] sm:$0xf]
    %v1970 = vld [vmem:[#allocation16 + $0xe4] sm:$0xff]
    %v1971 = vld [vmem:[#allocation16 + $0xec] sm:$0xf]
    %v1972 = vld [vmem:[#allocation16 + $0xf0] sm:$0xff]
    %v1973 = vld [vmem:[#allocation16 + $0xf8] sm:$0xf]
    %v1974 = vld [vmem:[#allocation16 + $0xfc] sm:$0xff]
    %v1975 = vld [vmem:[#allocation16 + $0x104] sm:$0xf]
    %v1976 = vld [vmem:[#allocation16 + $0x108] sm:$0xff]
    %v1977 = vld [vmem:[#allocation16 + $0x110] sm:$0xf]
    %v1978 = vld [vmem:[#allocation16 + $0x114] sm:$0xff]
    %v1979 = vld [vmem:[#allocation16 + $0x11c] sm:$0xf]
    %v1980 = vld [vmem:[#allocation16 + $0x120] sm:$0xff]
    %v1981 = vld [vmem:[#allocation16 + $0x128] sm:$0xf]
    %v1982 = vld [vmem:[#allocation16 + $0x12c] sm:$0xff]
    %v1983 = vld [vmem:[#allocation16 + $0x134] sm:$0xf]
    %v1984 = vld [vmem:[#allocation16 + $0x138] sm:$0xff]
    %v1985 = vld [vmem:[#allocation16 + $0x140] sm:$0xf]
    %v1986 = vld [vmem:[#allocation16 + $0x144] sm:$0xff]
    %v1987 = vld [vmem:[#allocation16 + $0x14c] sm:$0xf]
    %v1988 = vld [vmem:[#allocation16 + $0x150] sm:$0xff]
    %v1989 = vld [vmem:[#allocation16 + $0x158] sm:$0xf]
    %v1990 = vld [vmem:[#allocation16 + $0x15c] sm:$0xff]
    %v1991 = vld [vmem:[#allocation16 + $0x164] sm:$0xf]
    %v1992 = vld [vmem:[#allocation16 + $0x168] sm:$0xff]
    %v1993 = vld [vmem:[#allocation16 + $0x170] sm:$0xf]
    %v1994 = vld [vmem:[#allocation16 + $0x174] sm:$0xff]
    %v1995 = vld [vmem:[#allocation16 + $0x17c] sm:$0xf]
    %v1996 = vld [vmem:[#allocation16 + $0x180] sm:$0xff]
    %v1997 = vld [vmem:[#allocation16 + $0x188] sm:$0xf]
    %v1998 = vld [vmem:[#allocation16 + $0x18c] sm:$0xff]
    %v1999 = vld [vmem:[#allocation16 + $0x194] sm:$0xf]
    %v2000 = vld [vmem:[#allocation16 + $0x198] sm:$0xff]
    %v2001 = vld [vmem:[#allocation16 + $0x1a0] sm:$0xf]
    %v2002 = vld [vmem:[#allocation16 + $0x1a4] sm:$0xff]
    %v2003 = vld [vmem:[#allocation16 + $0x1ac] sm:$0xf]
    %v2004 = vld [vmem:[#allocation16 + $0x1b0] sm:$0xff]
    %v2005 = vld [vmem:[#allocation16 + $0x1b8] sm:$0xf]
    %v2006 = vld [vmem:[#allocation16 + $0x1bc] sm:$0xff]
    %v2007 = vld [vmem:[#allocation16 + $0x1c4] sm:$0xf]
    %v2008 = vld [vmem:[#allocation16 + $0x1c8] sm:$0xff]
    %v2009 = vld [vmem:[#allocation16 + $0x1d0] sm:$0xf]
    %v2010 = vld [vmem:[#allocation16 + $0x1d4] sm:$0xff]
    %v2011 = vld [vmem:[#allocation16 + $0x1dc] sm:$0xf]
    %v2012 = vld [vmem:[#allocation16 + $0x1e0] sm:$0xff]
    %v2013 = vld [vmem:[#allocation16 + $0x1e8] sm:$0xf]
    %v2014 = vld [vmem:[#allocation16 + $0x1ec] sm:$0xff]
    %v2015 = vld [vmem:[#allocation16 + $0x1f4] sm:$0xf]
    %v2016 = vld [vmem:[#allocation16 + $0x1f8] sm:$0xff]
    %v2017 = vld [vmem:[#allocation16 + $0x200] sm:$0xf]
    %v2018 = vld [vmem:[#allocation16 + $0x204] sm:$0xff]
    %v2019 = vld [vmem:[#allocation16 + $0x20c] sm:$0xf]
    %v2020 = vld [vmem:[#allocation16 + $0x210] sm:$0xff]
    %v2021 = vld [vmem:[#allocation16 + $0x218] sm:$0xf]
    %v2022 = vld [vmem:[#allocation16 + $0x21c] sm:$0xff]
    %v2023 = vld [vmem:[#allocation16 + $0x224] sm:$0xf]
    %v2024 = vld [vmem:[#allocation16 + $0x228] sm:$0xff]
    %v2025 = vld [vmem:[#allocation16 + $0x230] sm:$0xf]
    %v2026 = vld [vmem:[#allocation16 + $0x234] sm:$0xff]
    %v2027 = vld [vmem:[#allocation16 + $0x23c] sm:$0xf]
    %v2028 = vld [vmem:[#allocation16 + $0x240] sm:$0xff]
    %v2029 = vld [vmem:[#allocation16 + $0x248] sm:$0xf]
    %v2030 = vld [vmem:[#allocation16 + $0x24c] sm:$0xff]
    %v2031 = vld [vmem:[#allocation16 + $0x254] sm:$0xf]
    %v2032 = vld [vmem:[#allocation16 + $0x258] sm:$0xff]
    %v2033 = vld [vmem:[#allocation16 + $0x260] sm:$0xf]
    %v2034 = vld [vmem:[#allocation16 + $0x264] sm:$0xff]
    %v2035 = vld [vmem:[#allocation16 + $0x26c] sm:$0xf]
    %v2036 = vld [vmem:[#allocation16 + $0x270] sm:$0xff]
    %v2037 = vld [vmem:[#allocation16 + $0x278] sm:$0xf]
    %v2038 = vld [vmem:[#allocation16 + $0x27c] sm:$0xff]
    %v2039 = vld [vmem:[#allocation16 + $0x284] sm:$0xf]
    %v2040 = vld [vmem:[#allocation16 + $0x288] sm:$0xff]
    %v2041 = vld [vmem:[#allocation16 + $0x290] sm:$0xf]
    %v2042 = vld [vmem:[#allocation16 + $0x294] sm:$0xff]
    %v2043 = vld [vmem:[#allocation16 + $0x29c] sm:$0xf]
    %v2044 = vld [vmem:[#allocation16 + $0x2a0] sm:$0xff]
    %v2045 = vld [vmem:[#allocation16 + $0x2a8] sm:$0xf]
    %v2046 = vld [vmem:[#allocation16 + $0x2ac] sm:$0xff]
    %v2047 = vld [vmem:[#allocation16 + $0x2b4] sm:$0xf]
    %v2048 = vld [vmem:[#allocation16 + $0x2b8] sm:$0xff]
    %v2049 = vld [vmem:[#allocation16 + $0x2c0] sm:$0xf]
    %v2050 = vld [vmem:[#allocation16 + $0x2c4] sm:$0xff]
    %v2051 = vld [vmem:[#allocation16 + $0x2cc] sm:$0xf]
    %v2052 = vld [vmem:[#allocation16 + $0x2d0] sm:$0xff]
    %v2053 = vld [vmem:[#allocation16 + $0x2d8] sm:$0xf]
    %v2054 = vld [vmem:[#allocation16 + $0x2dc] sm:$0xff]
    %v2055 = vld [vmem:[#allocation16 + $0x2e4] sm:$0xf]
    %v2056 = vld [vmem:[#allocation16 + $0x2e8] sm:$0xff]
    %v2057 = vld [vmem:[#allocation16 + $0x2f0] sm:$0xf]
    %v2058 = vld [vmem:[#allocation16 + $0x2f4] sm:$0xff]
    %v2059 = vld [vmem:[#allocation16 + $0x2fc] sm:$0xf]
    %v2060 = vld [vmem:[%s21] sm:$0x7]
    %v2061 = vld [vmem:[%s23] sm:$0x7]
    %v2062 = vld [vmem:[#allocation17] sm:$0x7]
    %v2063 = vpack.c.bf16 %v1928, %v1928
    %v2064 = vpack.c.bf16 %v1929, %v1929
    %v2065 = vpack.c.bf16 %v1930, %v1930
    %v2066 = vpack.c.bf16 %v1931, %v1931
    %v2068 = vperm.slane %v2060, 0
    %v2069 = vperm.slane %v2060, 1
    %v2070 = vperm.slane %v2060, 2
    %v2202 = vunpack.c.l.b16 %v1932
    %v2203 = vunpack.c.h.b16 %v1932
    %v2204 = vunpack.c.l.b16 %v1933
    %v2205 = vunpack.c.l.b16 %v1934
    %v2206 = vunpack.c.h.b16 %v1934
    %v2207 = vunpack.c.l.b16 %v1935
    %v2208 = vunpack.c.l.b16 %v1936
    %v2209 = vunpack.c.h.b16 %v1936
    %v2210 = vunpack.c.l.b16 %v1937
    %v2211 = vunpack.c.l.b16 %v1938
    %v2212 = vunpack.c.h.b16 %v1938
    %v2213 = vunpack.c.l.b16 %v1939
    %v2214 = vunpack.c.l.b16 %v1940
    %v2215 = vunpack.c.h.b16 %v1940
    %v2216 = vunpack.c.l.b16 %v1941
    %v2217 = vunpack.c.l.b16 %v1942
    %v2218 = vunpack.c.h.b16 %v1942
    %v2219 = vunpack.c.l.b16 %v1943
    %v2220 = vunpack.c.l.b16 %v1944
    %v2221 = vunpack.c.h.b16 %v1944
    %v2222 = vunpack.c.l.b16 %v1945
    %v2223 = vunpack.c.l.b16 %v1946
    %v2224 = vunpack.c.h.b16 %v1946
    %v2225 = vunpack.c.l.b16 %v1947
    %v2226 = vunpack.c.l.b16 %v1948
    %v2227 = vunpack.c.h.b16 %v1948
    %v2228 = vunpack.c.l.b16 %v1949
    %v2229 = vunpack.c.l.b16 %v1950
    %v2230 = vunpack.c.h.b16 %v1950
    %v2231 = vunpack.c.l.b16 %v1951
    %v2232 = vunpack.c.l.b16 %v1952
    %v2233 = vunpack.c.h.b16 %v1952
    %v2234 = vunpack.c.l.b16 %v1953
    %v2235 = vunpack.c.l.b16 %v1954
    %v2236 = vunpack.c.h.b16 %v1954
    %v2237 = vunpack.c.l.b16 %v1955
    %v2238 = vunpack.c.l.b16 %v1956
    %v2239 = vunpack.c.h.b16 %v1956
    %v2240 = vunpack.c.l.b16 %v1957
    %v2241 = vunpack.c.l.b16 %v1958
    %v2242 = vunpack.c.h.b16 %v1958
    %v2243 = vunpack.c.l.b16 %v1959
    %v2244 = vunpack.c.l.b16 %v1960
    %v2245 = vunpack.c.h.b16 %v1960
    %v2246 = vunpack.c.l.b16 %v1961
    %v2247 = vunpack.c.l.b16 %v1962
    %v2248 = vunpack.c.h.b16 %v1962
    %v2249 = vunpack.c.l.b16 %v1963
    %v2250 = vunpack.c.l.b16 %v1964
    %v2251 = vunpack.c.h.b16 %v1964
    %v2252 = vunpack.c.l.b16 %v1965
    %v2253 = vunpack.c.l.b16 %v1966
    %v2254 = vunpack.c.h.b16 %v1966
    %v2255 = vunpack.c.l.b16 %v1967
    %v2256 = vunpack.c.l.b16 %v1968
    %v2257 = vunpack.c.h.b16 %v1968
    %v2258 = vunpack.c.l.b16 %v1969
    %v2259 = vunpack.c.l.b16 %v1970
    %v2260 = vunpack.c.h.b16 %v1970
    %v2261 = vunpack.c.l.b16 %v1971
    %v2262 = vunpack.c.l.b16 %v1972
    %v2263 = vunpack.c.h.b16 %v1972
    %v2264 = vunpack.c.l.b16 %v1973
    %v2265 = vunpack.c.l.b16 %v1974
    %v2266 = vunpack.c.h.b16 %v1974
    %v2267 = vunpack.c.l.b16 %v1975
    %v2268 = vunpack.c.l.b16 %v1976
    %v2269 = vunpack.c.h.b16 %v1976
    %v2270 = vunpack.c.l.b16 %v1977
    %v2271 = vunpack.c.l.b16 %v1978
    %v2272 = vunpack.c.h.b16 %v1978
    %v2273 = vunpack.c.l.b16 %v1979
    %v2274 = vunpack.c.l.b16 %v1980
    %v2275 = vunpack.c.h.b16 %v1980
    %v2276 = vunpack.c.l.b16 %v1981
    %v2277 = vunpack.c.l.b16 %v1982
    %v2278 = vunpack.c.h.b16 %v1982
    %v2279 = vunpack.c.l.b16 %v1983
    %v2280 = vunpack.c.l.b16 %v1984
    %v2281 = vunpack.c.h.b16 %v1984
    %v2282 = vunpack.c.l.b16 %v1985
    %v2283 = vunpack.c.l.b16 %v1986
    %v2284 = vunpack.c.h.b16 %v1986
    %v2285 = vunpack.c.l.b16 %v1987
    %v2286 = vunpack.c.l.b16 %v1988
    %v2287 = vunpack.c.h.b16 %v1988
    %v2288 = vunpack.c.l.b16 %v1989
    %v2289 = vunpack.c.l.b16 %v1990
    %v2290 = vunpack.c.h.b16 %v1990
    %v2291 = vunpack.c.l.b16 %v1991
    %v2292 = vunpack.c.l.b16 %v1992
    %v2293 = vunpack.c.h.b16 %v1992
    %v2294 = vunpack.c.l.b16 %v1993
    %v2295 = vunpack.c.l.b16 %v1994
    %v2296 = vunpack.c.h.b16 %v1994
    %v2297 = vunpack.c.l.b16 %v1995
    %v2298 = vunpack.c.l.b16 %v1996
    %v2299 = vunpack.c.h.b16 %v1996
    %v2300 = vunpack.c.l.b16 %v1997
    %v2301 = vunpack.c.l.b16 %v1998
    %v2302 = vunpack.c.h.b16 %v1998
    %v2303 = vunpack.c.l.b16 %v1999
    %v2304 = vunpack.c.l.b16 %v2000
    %v2305 = vunpack.c.h.b16 %v2000
    %v2306 = vunpack.c.l.b16 %v2001
    %v2307 = vunpack.c.l.b16 %v2002
    %v2308 = vunpack.c.h.b16 %v2002
    %v2309 = vunpack.c.l.b16 %v2003
    %v2310 = vunpack.c.l.b16 %v2004
    %v2311 = vunpack.c.h.b16 %v2004
    %v2312 = vunpack.c.l.b16 %v2005
    %v2313 = vunpack.c.l.b16 %v2006
    %v2314 = vunpack.c.h.b16 %v2006
    %v2315 = vunpack.c.l.b16 %v2007
    %v2316 = vunpack.c.l.b16 %v2008
    %v2317 = vunpack.c.h.b16 %v2008
    %v2318 = vunpack.c.l.b16 %v2009
    %v2319 = vunpack.c.l.b16 %v2010
    %v2320 = vunpack.c.h.b16 %v2010
    %v2321 = vunpack.c.l.b16 %v2011
    %v2322 = vunpack.c.l.b16 %v2012
    %v2323 = vunpack.c.h.b16 %v2012
    %v2324 = vunpack.c.l.b16 %v2013
    %v2325 = vunpack.c.l.b16 %v2014
    %v2326 = vunpack.c.h.b16 %v2014
    %v2327 = vunpack.c.l.b16 %v2015
    %v2328 = vunpack.c.l.b16 %v2016
    %v2329 = vunpack.c.h.b16 %v2016
    %v2330 = vunpack.c.l.b16 %v2017
    %v2331 = vunpack.c.l.b16 %v2018
    %v2332 = vunpack.c.h.b16 %v2018
    %v2333 = vunpack.c.l.b16 %v2019
    %v2334 = vunpack.c.l.b16 %v2020
    %v2335 = vunpack.c.h.b16 %v2020
    %v2336 = vunpack.c.l.b16 %v2021
    %v2337 = vunpack.c.l.b16 %v2022
    %v2338 = vunpack.c.h.b16 %v2022
    %v2339 = vunpack.c.l.b16 %v2023
    %v2340 = vunpack.c.l.b16 %v2024
    %v2341 = vunpack.c.h.b16 %v2024
    %v2342 = vunpack.c.l.b16 %v2025
    %v2343 = vunpack.c.l.b16 %v2026
    %v2344 = vunpack.c.h.b16 %v2026
    %v2345 = vunpack.c.l.b16 %v2027
    %v2346 = vunpack.c.l.b16 %v2028
    %v2347 = vunpack.c.h.b16 %v2028
    %v2348 = vunpack.c.l.b16 %v2029
    %v2349 = vunpack.c.l.b16 %v2030
    %v2350 = vunpack.c.h.b16 %v2030
    %v2351 = vunpack.c.l.b16 %v2031
    %v2352 = vunpack.c.l.b16 %v2032
    %v2353 = vunpack.c.h.b16 %v2032
    %v2354 = vunpack.c.l.b16 %v2033
    %v2355 = vunpack.c.l.b16 %v2034
    %v2356 = vunpack.c.h.b16 %v2034
    %v2357 = vunpack.c.l.b16 %v2035
    %v2358 = vunpack.c.l.b16 %v2036
    %v2359 = vunpack.c.h.b16 %v2036
    %v2360 = vunpack.c.l.b16 %v2037
    %v2361 = vunpack.c.l.b16 %v2038
    %v2362 = vunpack.c.h.b16 %v2038
    %v2363 = vunpack.c.l.b16 %v2039
    %v2364 = vunpack.c.l.b16 %v2040
    %v2365 = vunpack.c.h.b16 %v2040
    %v2366 = vunpack.c.l.b16 %v2041
    %v2367 = vunpack.c.l.b16 %v2042
    %v2368 = vunpack.c.h.b16 %v2042
    %v2369 = vunpack.c.l.b16 %v2043
    %v2370 = vunpack.c.l.b16 %v2044
    %v2371 = vunpack.c.h.b16 %v2044
    %v2372 = vunpack.c.l.b16 %v2045
    %v2373 = vunpack.c.l.b16 %v2046
    %v2374 = vunpack.c.h.b16 %v2046
    %v2375 = vunpack.c.l.b16 %v2047
    %v2376 = vunpack.c.l.b16 %v2048
    %v2377 = vunpack.c.h.b16 %v2048
    %v2378 = vunpack.c.l.b16 %v2049
    %v2379 = vunpack.c.l.b16 %v2050
    %v2380 = vunpack.c.h.b16 %v2050
    %v2381 = vunpack.c.l.b16 %v2051
    %v2382 = vunpack.c.l.b16 %v2052
    %v2383 = vunpack.c.h.b16 %v2052
    %v2384 = vunpack.c.l.b16 %v2053
    %v2385 = vunpack.c.l.b16 %v2054
    %v2386 = vunpack.c.h.b16 %v2054
    %v2387 = vunpack.c.l.b16 %v2055
    %v2388 = vunpack.c.l.b16 %v2056
    %v2389 = vunpack.c.h.b16 %v2056
    %v2390 = vunpack.c.l.b16 %v2057
    %v2391 = vunpack.c.l.b16 %v2058
    %v2392 = vunpack.c.h.b16 %v2058
    %v2393 = vunpack.c.l.b16 %v2059
    %v2394 = vpack.c.b16 %v2205, %v2202
    %v2395 = vpack.c.b16 %v2206, %v2203
    %v2396 = vpack.c.b16 %v2207, %v2204
    %v2397 = vpack.c.b16 %v2211, %v2208
    %v2398 = vpack.c.b16 %v2212, %v2209
    %v2399 = vpack.c.b16 %v2213, %v2210
    %v2400 = vpack.c.b16 %v2217, %v2214
    %v2401 = vpack.c.b16 %v2218, %v2215
    %v2402 = vpack.c.b16 %v2219, %v2216
    %v2403 = vpack.c.b16 %v2223, %v2220
    %v2404 = vpack.c.b16 %v2224, %v2221
    %v2405 = vpack.c.b16 %v2225, %v2222
    %v2406 = vpack.c.b16 %v2229, %v2226
    %v2407 = vpack.c.b16 %v2230, %v2227
    %v2408 = vpack.c.b16 %v2231, %v2228
    %v2409 = vpack.c.b16 %v2235, %v2232
    %v2410 = vpack.c.b16 %v2236, %v2233
    %v2411 = vpack.c.b16 %v2237, %v2234
    %v2412 = vpack.c.b16 %v2241, %v2238
    %v2413 = vpack.c.b16 %v2242, %v2239
    %v2414 = vpack.c.b16 %v2243, %v2240
    %v2415 = vpack.c.b16 %v2247, %v2244
    %v2416 = vpack.c.b16 %v2248, %v2245
    %v2417 = vpack.c.b16 %v2249, %v2246
    %v2418 = vpack.c.b16 %v2253, %v2250
    %v2419 = vpack.c.b16 %v2254, %v2251
    %v2420 = vpack.c.b16 %v2255, %v2252
    %v2421 = vpack.c.b16 %v2259, %v2256
    %v2422 = vpack.c.b16 %v2260, %v2257
    %v2423 = vpack.c.b16 %v2261, %v2258
    %v2424 = vpack.c.b16 %v2265, %v2262
    %v2425 = vpack.c.b16 %v2266, %v2263
    %v2426 = vpack.c.b16 %v2267, %v2264
    %v2427 = vpack.c.b16 %v2271, %v2268
    %v2428 = vpack.c.b16 %v2272, %v2269
    %v2429 = vpack.c.b16 %v2273, %v2270
    %v2430 = vpack.c.b16 %v2277, %v2274
    %v2431 = vpack.c.b16 %v2278, %v2275
    %v2432 = vpack.c.b16 %v2279, %v2276
    %v2433 = vpack.c.b16 %v2283, %v2280
    %v2434 = vpack.c.b16 %v2284, %v2281
    %v2435 = vpack.c.b16 %v2285, %v2282
    %v2436 = vpack.c.b16 %v2289, %v2286
    %v2437 = vpack.c.b16 %v2290, %v2287
    %v2438 = vpack.c.b16 %v2291, %v2288
    %v2439 = vpack.c.b16 %v2295, %v2292
    %v2440 = vpack.c.b16 %v2296, %v2293
    %v2441 = vpack.c.b16 %v2297, %v2294
    %v2442 = vpack.c.b16 %v2301, %v2298
    %v2443 = vpack.c.b16 %v2302, %v2299
    %v2444 = vpack.c.b16 %v2303, %v2300
    %v2445 = vpack.c.b16 %v2307, %v2304
    %v2446 = vpack.c.b16 %v2308, %v2305
    %v2447 = vpack.c.b16 %v2309, %v2306
    %v2448 = vpack.c.b16 %v2313, %v2310
    %v2449 = vpack.c.b16 %v2314, %v2311
    %v2450 = vpack.c.b16 %v2315, %v2312
    %v2451 = vpack.c.b16 %v2319, %v2316
    %v2452 = vpack.c.b16 %v2320, %v2317
    %v2453 = vpack.c.b16 %v2321, %v2318
    %v2454 = vpack.c.b16 %v2325, %v2322
    %v2455 = vpack.c.b16 %v2326, %v2323
    %v2456 = vpack.c.b16 %v2327, %v2324
    %v2457 = vpack.c.b16 %v2331, %v2328
    %v2458 = vpack.c.b16 %v2332, %v2329
    %v2459 = vpack.c.b16 %v2333, %v2330
    %v2460 = vpack.c.b16 %v2337, %v2334
    %v2461 = vpack.c.b16 %v2338, %v2335
    %v2462 = vpack.c.b16 %v2339, %v2336
    %v2463 = vpack.c.b16 %v2343, %v2340
    %v2464 = vpack.c.b16 %v2344, %v2341
    %v2465 = vpack.c.b16 %v2345, %v2342
    %v2466 = vpack.c.b16 %v2349, %v2346
    %v2467 = vpack.c.b16 %v2350, %v2347
    %v2468 = vpack.c.b16 %v2351, %v2348
    %v2469 = vpack.c.b16 %v2355, %v2352
    %v2470 = vpack.c.b16 %v2356, %v2353
    %v2471 = vpack.c.b16 %v2357, %v2354
    %v2472 = vpack.c.b16 %v2361, %v2358
    %v2473 = vpack.c.b16 %v2362, %v2359
    %v2474 = vpack.c.b16 %v2363, %v2360
    %v2475 = vpack.c.b16 %v2367, %v2364
    %v2476 = vpack.c.b16 %v2368, %v2365
    %v2477 = vpack.c.b16 %v2369, %v2366
    %v2478 = vpack.c.b16 %v2373, %v2370
    %v2479 = vpack.c.b16 %v2374, %v2371
    %v2480 = vpack.c.b16 %v2375, %v2372
    %v2481 = vpack.c.b16 %v2379, %v2376
    %v2482 = vpack.c.b16 %v2380, %v2377
    %v2483 = vpack.c.b16 %v2381, %v2378
    %v2484 = vpack.c.b16 %v2385, %v2382
    %v2485 = vpack.c.b16 %v2386, %v2383
    %v2486 = vpack.c.b16 %v2387, %v2384
    %v2487 = vpack.c.b16 %v2391, %v2388
    %v2488 = vpack.c.b16 %v2392, %v2389
    %v2489 = vpack.c.b16 %v2393, %v2390
    %2586 = vmatpush.bf16.msra.mxu0 %v2415
    %2587 = vmatpush.bf16.msra.mxu0 %v2412
    %2588 = vmatpush.bf16.msra.mxu0 %v2409
    %2589 = vmatpush.bf16.msra.mxu0 %v2406
    %2590 = vmatpush.bf16.msra.mxu0 %v2403
    %2591 = vmatpush.bf16.msra.mxu0 %v2400
    %2592 = vmatpush.bf16.msra.mxu0 %v2397
    %2593 = vmatpush.bf16.msra.mxu0 %v2394
    %2594 = vmatmul.bf16.gmra.mxu0 %v2063
    %v2595 = vpop.f32.mrf.mxu0
    %v2596 = vadd.f32 %v2068, %v2595
    %v2597 = vpop.f32.mrf.mxu0
    %2598 = vdwg.mxu0
    %2599 = vmatpush.bf16.msra.mxu0 %v2439
    %2600 = vmatpush.bf16.msra.mxu0 %v2436
    %2601 = vmatpush.bf16.msra.mxu0 %v2433
    %2602 = vmatpush.bf16.msra.mxu0 %v2430
    %2603 = vmatpush.bf16.msra.mxu0 %v2427
    %2604 = vmatpush.bf16.msra.mxu0 %v2424
    %2605 = vmatpush.bf16.msra.mxu0 %v2421
    %2606 = vmatpush.bf16.msra.mxu0 %v2418
    %2607 = vmatmul.bf16.gmra.mxu0 %v2064
    %v2608 = vpop.f32.mrf.mxu0
    %v2609 = vadd.f32 %v2596, %v2608
    %v2610 = vpop.f32.mrf.mxu0
    %2611 = vdwg.mxu0
    %2612 = vmatpush.bf16.msra.mxu0 %v2463
    %2613 = vmatpush.bf16.msra.mxu0 %v2460
    %2614 = vmatpush.bf16.msra.mxu0 %v2457
    %2615 = vmatpush.bf16.msra.mxu0 %v2454
    %2616 = vmatpush.bf16.msra.mxu0 %v2451
    %2617 = vmatpush.bf16.msra.mxu0 %v2448
    %2618 = vmatpush.bf16.msra.mxu0 %v2445
    %2619 = vmatpush.bf16.msra.mxu0 %v2442
    %2620 = vmatmul.bf16.gmra.mxu0 %v2065
    %v2621 = vpop.f32.mrf.mxu0
    %v2622 = vadd.f32 %v2609, %v2621
    %v2623 = vpop.f32.mrf.mxu0
    %2624 = vdwg.mxu0
    %2625 = vmatpush.bf16.msra.mxu0 %v2487
    %2626 = vmatpush.bf16.msra.mxu0 %v2484
    %2627 = vmatpush.bf16.msra.mxu0 %v2481
    %2628 = vmatpush.bf16.msra.mxu0 %v2478
    %2629 = vmatpush.bf16.msra.mxu0 %v2475
    %2630 = vmatpush.bf16.msra.mxu0 %v2472
    %2631 = vmatpush.bf16.msra.mxu0 %v2469
    %2632 = vmatpush.bf16.msra.mxu0 %v2466
    %2633 = vmatmul.bf16.gmra.mxu0 %v2066
    %v2634 = vpop.f32.mrf.mxu0
    %v2635 = vadd.f32 %v2622, %v2634
    %v2636 = vpop.f32.mrf.mxu0
    %2637 = vdwg.mxu0
    %2638 = vmatpush.bf16.msra.mxu0 %v2416
    %2639 = vmatpush.bf16.msra.mxu0 %v2413
    %2640 = vmatpush.bf16.msra.mxu0 %v2410
    %2641 = vmatpush.bf16.msra.mxu0 %v2407
    %2642 = vmatpush.bf16.msra.mxu0 %v2404
    %2643 = vmatpush.bf16.msra.mxu0 %v2401
    %2644 = vmatpush.bf16.msra.mxu0 %v2398
    %2645 = vmatpush.bf16.msra.mxu0 %v2395
    %2646 = vmatmul.bf16.gmra.mxu0 %v2063
    %v2647 = vpop.f32.mrf.mxu0
    %v2648 = vadd.f32 %v2069, %v2647
    %v2649 = vpop.f32.mrf.mxu0
    %2650 = vdwg.mxu0
    %2651 = vmatpush.bf16.msra.mxu0 %v2440
    %2652 = vmatpush.bf16.msra.mxu0 %v2437
    %2653 = vmatpush.bf16.msra.mxu0 %v2434
    %2654 = vmatpush.bf16.msra.mxu0 %v2431
    %2655 = vmatpush.bf16.msra.mxu0 %v2428
    %2656 = vmatpush.bf16.msra.mxu0 %v2425
    %2657 = vmatpush.bf16.msra.mxu0 %v2422
    %2658 = vmatpush.bf16.msra.mxu0 %v2419
    %2659 = vmatmul.bf16.gmra.mxu0 %v2064
    %v2660 = vpop.f32.mrf.mxu0
    %v2661 = vadd.f32 %v2648, %v2660
    %v2662 = vpop.f32.mrf.mxu0
    %2663 = vdwg.mxu0
    %2664 = vmatpush.bf16.msra.mxu0 %v2464
    %2665 = vmatpush.bf16.msra.mxu0 %v2461
    %2666 = vmatpush.bf16.msra.mxu0 %v2458
    %2667 = vmatpush.bf16.msra.mxu0 %v2455
    %2668 = vmatpush.bf16.msra.mxu0 %v2452
    %2669 = vmatpush.bf16.msra.mxu0 %v2449
    %2670 = vmatpush.bf16.msra.mxu0 %v2446
    %2671 = vmatpush.bf16.msra.mxu0 %v2443
    %2672 = vmatmul.bf16.gmra.mxu0 %v2065
    %v2673 = vpop.f32.mrf.mxu0
    %v2674 = vadd.f32 %v2661, %v2673
    %v2675 = vpop.f32.mrf.mxu0
    %2676 = vdwg.mxu0
    %2677 = vmatpush.bf16.msra.mxu0 %v2488
    %2678 = vmatpush.bf16.msra.mxu0 %v2485
    %2679 = vmatpush.bf16.msra.mxu0 %v2482
    %2680 = vmatpush.bf16.msra.mxu0 %v2479
    %2681 = vmatpush.bf16.msra.mxu0 %v2476
    %2682 = vmatpush.bf16.msra.mxu0 %v2473
    %2683 = vmatpush.bf16.msra.mxu0 %v2470
    %2684 = vmatpush.bf16.msra.mxu0 %v2467
    %2685 = vmatmul.bf16.gmra.mxu0 %v2066
    %v2686 = vpop.f32.mrf.mxu0
    %v2687 = vadd.f32 %v2674, %v2686
    %v2688 = vpop.f32.mrf.mxu0
    %2689 = vdwg.mxu0
    %2690 = vmatpush.bf16.msra.mxu0 %v2417
    %2691 = vmatpush.bf16.msra.mxu0 %v2414
    %2692 = vmatpush.bf16.msra.mxu0 %v2411
    %2693 = vmatpush.bf16.msra.mxu0 %v2408
    %2694 = vmatpush.bf16.msra.mxu0 %v2405
    %2695 = vmatpush.bf16.msra.mxu0 %v2402
    %2696 = vmatpush.bf16.msra.mxu0 %v2399
    %2697 = vmatpush.bf16.msra.mxu0 %v2396
    %2698 = vmatmul.bf16.gmra.mxu0 %v2063
    %v2699 = vpop.f32.mrf.mxu0
    %v2700 = vadd.f32 %v2070, %v2699
    %v2701 = vpop.f32.mrf.mxu0
    %2702 = vdwg.mxu0
    %2703 = vmatpush.bf16.msra.mxu0 %v2441
    %2704 = vmatpush.bf16.msra.mxu0 %v2438
    %2705 = vmatpush.bf16.msra.mxu0 %v2435
    %2706 = vmatpush.bf16.msra.mxu0 %v2432
    %2707 = vmatpush.bf16.msra.mxu0 %v2429
    %2708 = vmatpush.bf16.msra.mxu0 %v2426
    %2709 = vmatpush.bf16.msra.mxu0 %v2423
    %2710 = vmatpush.bf16.msra.mxu0 %v2420
    %2711 = vmatmul.bf16.gmra.mxu0 %v2064
    %v2712 = vpop.f32.mrf.mxu0
    %v2713 = vadd.f32 %v2700, %v2712
    %v2714 = vpop.f32.mrf.mxu0
    %2715 = vdwg.mxu0
    %2716 = vmatpush.bf16.msra.mxu0 %v2465
    %2717 = vmatpush.bf16.msra.mxu0 %v2462
    %2718 = vmatpush.bf16.msra.mxu0 %v2459
    %2719 = vmatpush.bf16.msra.mxu0 %v2456
    %2720 = vmatpush.bf16.msra.mxu0 %v2453
    %2721 = vmatpush.bf16.msra.mxu0 %v2450
    %2722 = vmatpush.bf16.msra.mxu0 %v2447
    %2723 = vmatpush.bf16.msra.mxu0 %v2444
    %2724 = vmatmul.bf16.gmra.mxu0 %v2065
    %v2725 = vpop.f32.mrf.mxu0
    %v2726 = vadd.f32 %v2713, %v2725
    %v2727 = vpop.f32.mrf.mxu0
    %2728 = vdwg.mxu0
    %2729 = vmatpush.bf16.msra.mxu0 %v2489
    %2730 = vmatpush.bf16.msra.mxu0 %v2486
    %2731 = vmatpush.bf16.msra.mxu0 %v2483
    %2732 = vmatpush.bf16.msra.mxu0 %v2480
    %2733 = vmatpush.bf16.msra.mxu0 %v2477
    %2734 = vmatpush.bf16.msra.mxu0 %v2474
    %2735 = vmatpush.bf16.msra.mxu0 %v2471
    %2736 = vmatpush.bf16.msra.mxu0 %v2468
    %2737 = vmatmul.bf16.gmra.mxu0 %v2066
    %v2738 = vpop.f32.mrf.mxu0
    %v2739 = vadd.f32 %v2726, %v2738
    %v2740 = vpop.f32.mrf.mxu0
    %2741 = vdwg.mxu0
    %v2742 = vmul.f32 %v2635, 0.01
    %v2743 = vmul.f32 %v2687, 0.01
    %v2744 = vmul.f32 %v2739, 0.01
    %v2745 = vmax.f32 %v2635, %v2742
    %v2746 = vmax.f32 %v2687, %v2743
    %v2747 = vmax.f32 %v2739, %v2744
    %v2748 = vrot.slane %v2745, 4
    %v2749 = vadd.f32 %v2745, %v2748
    %v2750 = vrot.slane %v2749, 2
    %v2751 = vadd.f32 %v2749, %v2750
    %v2752 = vrot.slane %v2751, 1
    %v2753 = vadd.f32 %v2751, %v2752
    %v2754 = vrot.slane %v2746, 4
    %v2755 = vadd.f32 %v2746, %v2754
    %v2756 = vrot.slane %v2755, 2
    %v2757 = vadd.f32 %v2755, %v2756
    %v2758 = vrot.slane %v2757, 1
    %v2759 = vadd.f32 %v2757, %v2758
    %v2760 = vrot.slane %v2747, 4
    %v2761 = vadd.f32 %v2747, %v2760
    %v2762 = vrot.slane %v2761, 2
    %v2763 = vadd.f32 %v2761, %v2762
    %v2764 = vrot.slane %v2763, 1
    %v2765 = vadd.f32 %v2763, %v2764
    %v2766 = vmul.f32 %v2753, %v660
    %v2767 = vmul.f32 %v2759, %v660
    %v2768 = vmul.f32 %v2765, %v660
    %v2769 = vsub.f32 %v2745, %v2766
    %v2770 = vsub.f32 %v2746, %v2767
    %v2771 = vsub.f32 %v2747, %v2768
    %v2772 = vmul.f32 %v2769, %v2769
    %v2773 = vmul.f32 %v2770, %v2770
    %v2774 = vmul.f32 %v2771, %v2771
    %v2775 = vrot.slane %v2772, 4
    %v2776 = vadd.f32 %v2772, %v2775
    %v2777 = vrot.slane %v2776, 2
    %v2778 = vadd.f32 %v2776, %v2777
    %v2779 = vrot.slane %v2778, 1
    %v2780 = vadd.f32 %v2778, %v2779
    %v2781 = vrot.slane %v2773, 4
    %v2782 = vadd.f32 %v2773, %v2781
    %v2783 = vrot.slane %v2782, 2
    %v2784 = vadd.f32 %v2782, %v2783
    %v2785 = vrot.slane %v2784, 1
    %v2786 = vadd.f32 %v2784, %v2785
    %v2787 = vrot.slane %v2774, 4
    %v2788 = vadd.f32 %v2774, %v2787
    %v2789 = vrot.slane %v2788, 2
    %v2790 = vadd.f32 %v2788, %v2789
    %v2791 = vrot.slane %v2790, 1
    %v2792 = vadd.f32 %v2790, %v2791
    %v2793 = vmul.f32 %v2780, %v660
    %v2794 = vmul.f32 %v2786, %v660
    %v2795 = vmul.f32 %v2792, %v660
    %v2796 = vadd.f32 %v2793, 1e-05
    %v2797 = vadd.f32 %v2794, 1e-05
    %v2798 = vadd.f32 %v2795, 1e-05
    %v2799 = vrsqrt.pop %v2796
    %v2800 = vmul.f32 %v2799, %v2796
    %v2801 = vmul.f32 %v2800, %v2799
    %v2802 = vmul.f32 0.5, %v2801
    %v2803 = vsub.f32 1.5, %v2802
    %v2804 = vmul.f32 %v2799, %v2803
    %vm2805 = vweird.f32 %v2796
    %vm2806 = vweird.f32 %v2799
    %vm2807 = vmor %vm2805, %vm2806
    %v2808 = vsel %vm2807, %v2799, %v2804
    %v2809 = vrsqrt.pop %v2797
    %v2810 = vmul.f32 %v2809, %v2797
    %v2811 = vmul.f32 %v2810, %v2809
    %v2812 = vmul.f32 0.5, %v2811
    %v2813 = vsub.f32 1.5, %v2812
    %v2814 = vmul.f32 %v2809, %v2813
    %vm2815 = vweird.f32 %v2797
    %vm2816 = vweird.f32 %v2809
    %vm2817 = vmor %vm2815, %vm2816
    %v2818 = vsel %vm2817, %v2809, %v2814
    %v2819 = vrsqrt.pop %v2798
    %v2820 = vmul.f32 %v2819, %v2798
    %v2821 = vmul.f32 %v2820, %v2819
    %v2822 = vmul.f32 0.5, %v2821
    %v2823 = vsub.f32 1.5, %v2822
    %v2824 = vmul.f32 %v2819, %v2823
    %vm2825 = vweird.f32 %v2798
    %vm2826 = vweird.f32 %v2819
    %vm2827 = vmor %vm2825, %vm2826
    %v2828 = vsel %vm2827, %v2819, %v2824
    %v2832 = vrot.slane %v2818, 7
    %v2833 = vrot.slane %v2828, 6
    %v2834 = vsel %vm752, %v2808, %v2832
    %v2835 = vsel %vm756, %v2834, %v2833
    %v2837 = vmul.f32 %v2061, %v2835
    %v2839 = vperm.slane %v2837, 0
    %v2840 = vperm.slane %v2837, 1
    %v2841 = vperm.slane %v2837, 2
    %v2845 = vmul.f32 %v2769, %v2839
    %v2846 = vmul.f32 %v2770, %v2840
    %v2847 = vmul.f32 %v2771, %v2841
    %v2849 = vperm.slane %v2062, 0
    %v2850 = vperm.slane %v2062, 1
    %v2851 = vperm.slane %v2062, 2
    %v2855 = vadd.f32 %v2845, %v2849
    %v2856 = vadd.f32 %v2846, %v2850
    %v2857 = vadd.f32 %v2847, %v2851
    %v2858 = vld [vmem:[#allocation19] sm:$0xff]
    %v2859 = vld [vmem:[#allocation19 + $0x8] sm:$0xff]
    %v2860 = vld [vmem:[#allocation19 + $0x10] sm:$0xff]
    %v2861 = vld [vmem:[#allocation19 + $0x18] sm:$0xff]
    %v2862 = vld [vmem:[#allocation19 + $0x20] sm:$0xff]
    %v2863 = vld [vmem:[#allocation19 + $0x28] sm:$0xff]
    %v2864 = vld [vmem:[#allocation19 + $0x30] sm:$0xff]
    %v2865 = vld [vmem:[#allocation19 + $0x38] sm:$0xff]
    %v2866 = vld [vmem:[#allocation19 + $0x40] sm:$0xff]
    %v2867 = vld [vmem:[#allocation19 + $0x48] sm:$0xff]
    %v2868 = vld [vmem:[#allocation19 + $0x50] sm:$0xff]
    %v2869 = vld [vmem:[#allocation19 + $0x58] sm:$0xff]
    %v2870 = vld [vmem:[#allocation19 + $0x60] sm:$0xff]
    %v2871 = vld [vmem:[#allocation19 + $0x68] sm:$0xff]
    %v2872 = vld [vmem:[#allocation19 + $0x70] sm:$0xff]
    %v2873 = vld [vmem:[#allocation19 + $0x78] sm:$0xff]
    %v2874 = vld [vmem:[#allocation19 + $0x80] sm:$0xff]
    %v2875 = vld [vmem:[#allocation19 + $0x88] sm:$0xff]
    %v2876 = vld [vmem:[#allocation19 + $0x90] sm:$0xff]
    %v2877 = vld [vmem:[#allocation19 + $0x98] sm:$0xff]
    %v2878 = vld [vmem:[#allocation19 + $0xa0] sm:$0xff]
    %v2879 = vld [vmem:[#allocation19 + $0xa8] sm:$0xff]
    %v2880 = vld [vmem:[#allocation19 + $0xb0] sm:$0xff]
    %v2881 = vld [vmem:[#allocation19 + $0xb8] sm:$0xff]
    %v2882 = vld [vmem:[#allocation19 + $0xc0] sm:$0xff]
    %v2883 = vld [vmem:[#allocation19 + $0xc8] sm:$0xff]
    %v2884 = vld [vmem:[#allocation19 + $0xd0] sm:$0xff]
    %v2885 = vld [vmem:[#allocation19 + $0xd8] sm:$0xff]
    %v2886 = vld [vmem:[#allocation19 + $0xe0] sm:$0xff]
    %v2887 = vld [vmem:[#allocation19 + $0xe8] sm:$0xff]
    %v2888 = vld [vmem:[#allocation19 + $0xf0] sm:$0xff]
    %v2889 = vld [vmem:[#allocation19 + $0xf8] sm:$0xff]
    %v2890 = vld [vmem:[#allocation19 + $0x100] sm:$0xff]
    %v2891 = vld [vmem:[#allocation19 + $0x108] sm:$0xff]
    %v2892 = vld [vmem:[#allocation19 + $0x110] sm:$0xff]
    %v2893 = vld [vmem:[#allocation19 + $0x118] sm:$0xff]
    %v2894 = vld [vmem:[#allocation19 + $0x120] sm:$0xff]
    %v2895 = vld [vmem:[#allocation19 + $0x128] sm:$0xff]
    %v2896 = vld [vmem:[#allocation19 + $0x130] sm:$0xff]
    %v2897 = vld [vmem:[#allocation19 + $0x138] sm:$0xff]
    %v2898 = vld [vmem:[#allocation19 + $0x140] sm:$0xff]
    %v2899 = vld [vmem:[#allocation19 + $0x148] sm:$0xff]
    %v2900 = vld [vmem:[#allocation19 + $0x150] sm:$0xff]
    %v2901 = vld [vmem:[#allocation19 + $0x158] sm:$0xff]
    %v2902 = vld [vmem:[#allocation19 + $0x160] sm:$0xff]
    %v2903 = vld [vmem:[#allocation19 + $0x168] sm:$0xff]
    %v2904 = vld [vmem:[#allocation19 + $0x170] sm:$0xff]
    %v2905 = vld [vmem:[#allocation19 + $0x178] sm:$0xff]
    %v2906 = vld [vmem:[%s29] sm:$0x3]
    %v2907 = vld [vmem:[%s31] sm:$0x3]
    %v2908 = vld [vmem:[#allocation20] sm:$0x3]
    %v2909 = vpack.c.bf16 %v2855, %v2855
    %v2910 = vpack.c.bf16 %v2856, %v2856
    %v2911 = vpack.c.bf16 %v2857, %v2857
    %v2913 = vperm.slane %v2906, 0
    %v2914 = vperm.slane %v2906, 1
    %v2965 = vunpack.c.l.b16 %v2858
    %v2966 = vunpack.c.h.b16 %v2858
    %v2967 = vunpack.c.l.b16 %v2859
    %v2968 = vunpack.c.h.b16 %v2859
    %v2969 = vunpack.c.l.b16 %v2860
    %v2970 = vunpack.c.h.b16 %v2860
    %v2971 = vunpack.c.l.b16 %v2861
    %v2972 = vunpack.c.h.b16 %v2861
    %v2973 = vunpack.c.l.b16 %v2862
    %v2974 = vunpack.c.h.b16 %v2862
    %v2975 = vunpack.c.l.b16 %v2863
    %v2976 = vunpack.c.h.b16 %v2863
    %v2977 = vunpack.c.l.b16 %v2864
    %v2978 = vunpack.c.h.b16 %v2864
    %v2979 = vunpack.c.l.b16 %v2865
    %v2980 = vunpack.c.h.b16 %v2865
    %v2981 = vunpack.c.l.b16 %v2866
    %v2982 = vunpack.c.h.b16 %v2866
    %v2983 = vunpack.c.l.b16 %v2867
    %v2984 = vunpack.c.h.b16 %v2867
    %v2985 = vunpack.c.l.b16 %v2868
    %v2986 = vunpack.c.h.b16 %v2868
    %v2987 = vunpack.c.l.b16 %v2869
    %v2988 = vunpack.c.h.b16 %v2869
    %v2989 = vunpack.c.l.b16 %v2870
    %v2990 = vunpack.c.h.b16 %v2870
    %v2991 = vunpack.c.l.b16 %v2871
    %v2992 = vunpack.c.h.b16 %v2871
    %v2993 = vunpack.c.l.b16 %v2872
    %v2994 = vunpack.c.h.b16 %v2872
    %v2995 = vunpack.c.l.b16 %v2873
    %v2996 = vunpack.c.h.b16 %v2873
    %v2997 = vunpack.c.l.b16 %v2874
    %v2998 = vunpack.c.h.b16 %v2874
    %v2999 = vunpack.c.l.b16 %v2875
    %v3000 = vunpack.c.h.b16 %v2875
    %v3001 = vunpack.c.l.b16 %v2876
    %v3002 = vunpack.c.h.b16 %v2876
    %v3003 = vunpack.c.l.b16 %v2877
    %v3004 = vunpack.c.h.b16 %v2877
    %v3005 = vunpack.c.l.b16 %v2878
    %v3006 = vunpack.c.h.b16 %v2878
    %v3007 = vunpack.c.l.b16 %v2879
    %v3008 = vunpack.c.h.b16 %v2879
    %v3009 = vunpack.c.l.b16 %v2880
    %v3010 = vunpack.c.h.b16 %v2880
    %v3011 = vunpack.c.l.b16 %v2881
    %v3012 = vunpack.c.h.b16 %v2881
    %v3013 = vunpack.c.l.b16 %v2882
    %v3014 = vunpack.c.h.b16 %v2882
    %v3015 = vunpack.c.l.b16 %v2883
    %v3016 = vunpack.c.h.b16 %v2883
    %v3017 = vunpack.c.l.b16 %v2884
    %v3018 = vunpack.c.h.b16 %v2884
    %v3019 = vunpack.c.l.b16 %v2885
    %v3020 = vunpack.c.h.b16 %v2885
    %v3021 = vunpack.c.l.b16 %v2886
    %v3022 = vunpack.c.h.b16 %v2886
    %v3023 = vunpack.c.l.b16 %v2887
    %v3024 = vunpack.c.h.b16 %v2887
    %v3025 = vunpack.c.l.b16 %v2888
    %v3026 = vunpack.c.h.b16 %v2888
    %v3027 = vunpack.c.l.b16 %v2889
    %v3028 = vunpack.c.h.b16 %v2889
    %v3029 = vunpack.c.l.b16 %v2890
    %v3030 = vunpack.c.h.b16 %v2890
    %v3031 = vunpack.c.l.b16 %v2891
    %v3032 = vunpack.c.h.b16 %v2891
    %v3033 = vunpack.c.l.b16 %v2892
    %v3034 = vunpack.c.h.b16 %v2892
    %v3035 = vunpack.c.l.b16 %v2893
    %v3036 = vunpack.c.h.b16 %v2893
    %v3037 = vunpack.c.l.b16 %v2894
    %v3038 = vunpack.c.h.b16 %v2894
    %v3039 = vunpack.c.l.b16 %v2895
    %v3040 = vunpack.c.h.b16 %v2895
    %v3041 = vunpack.c.l.b16 %v2896
    %v3042 = vunpack.c.h.b16 %v2896
    %v3043 = vunpack.c.l.b16 %v2897
    %v3044 = vunpack.c.h.b16 %v2897
    %v3045 = vunpack.c.l.b16 %v2898
    %v3046 = vunpack.c.h.b16 %v2898
    %v3047 = vunpack.c.l.b16 %v2899
    %v3048 = vunpack.c.h.b16 %v2899
    %v3049 = vunpack.c.l.b16 %v2900
    %v3050 = vunpack.c.h.b16 %v2900
    %v3051 = vunpack.c.l.b16 %v2901
    %v3052 = vunpack.c.h.b16 %v2901
    %v3053 = vunpack.c.l.b16 %v2902
    %v3054 = vunpack.c.h.b16 %v2902
    %v3055 = vunpack.c.l.b16 %v2903
    %v3056 = vunpack.c.h.b16 %v2903
    %v3057 = vunpack.c.l.b16 %v2904
    %v3058 = vunpack.c.h.b16 %v2904
    %v3059 = vunpack.c.l.b16 %v2905
    %v3060 = vunpack.c.h.b16 %v2905
    %v3061 = vpack.c.b16 %v2967, %v2965
    %v3062 = vpack.c.b16 %v2968, %v2966
    %v3063 = vpack.c.b16 %v2971, %v2969
    %v3064 = vpack.c.b16 %v2972, %v2970
    %v3065 = vpack.c.b16 %v2975, %v2973
    %v3066 = vpack.c.b16 %v2976, %v2974
    %v3067 = vpack.c.b16 %v2979, %v2977
    %v3068 = vpack.c.b16 %v2980, %v2978
    %v3069 = vpack.c.b16 %v2983, %v2981
    %v3070 = vpack.c.b16 %v2984, %v2982
    %v3071 = vpack.c.b16 %v2987, %v2985
    %v3072 = vpack.c.b16 %v2988, %v2986
    %v3073 = vpack.c.b16 %v2991, %v2989
    %v3074 = vpack.c.b16 %v2992, %v2990
    %v3075 = vpack.c.b16 %v2995, %v2993
    %v3076 = vpack.c.b16 %v2996, %v2994
    %v3077 = vpack.c.b16 %v2999, %v2997
    %v3078 = vpack.c.b16 %v3000, %v2998
    %v3079 = vpack.c.b16 %v3003, %v3001
    %v3080 = vpack.c.b16 %v3004, %v3002
    %v3081 = vpack.c.b16 %v3007, %v3005
    %v3082 = vpack.c.b16 %v3008, %v3006
    %v3083 = vpack.c.b16 %v3011, %v3009
    %v3084 = vpack.c.b16 %v3012, %v3010
    %v3085 = vpack.c.b16 %v3015, %v3013
    %v3086 = vpack.c.b16 %v3016, %v3014
    %v3087 = vpack.c.b16 %v3019, %v3017
    %v3088 = vpack.c.b16 %v3020, %v3018
    %v3089 = vpack.c.b16 %v3023, %v3021
    %v3090 = vpack.c.b16 %v3024, %v3022
    %v3091 = vpack.c.b16 %v3027, %v3025
    %v3092 = vpack.c.b16 %v3028, %v3026
    %v3093 = vpack.c.b16 %v3031, %v3029
    %v3094 = vpack.c.b16 %v3032, %v3030
    %v3095 = vpack.c.b16 %v3035, %v3033
    %v3096 = vpack.c.b16 %v3036, %v3034
    %v3097 = vpack.c.b16 %v3039, %v3037
    %v3098 = vpack.c.b16 %v3040, %v3038
    %v3099 = vpack.c.b16 %v3043, %v3041
    %v3100 = vpack.c.b16 %v3044, %v3042
    %v3101 = vpack.c.b16 %v3047, %v3045
    %v3102 = vpack.c.b16 %v3048, %v3046
    %v3103 = vpack.c.b16 %v3051, %v3049
    %v3104 = vpack.c.b16 %v3052, %v3050
    %v3105 = vpack.c.b16 %v3055, %v3053
    %v3106 = vpack.c.b16 %v3056, %v3054
    %v3107 = vpack.c.b16 %v3059, %v3057
    %v3108 = vpack.c.b16 %v3060, %v3058
    %3157 = vmatpush.bf16.msra.mxu0 %v3075
    %3158 = vmatpush.bf16.msra.mxu0 %v3073
    %3159 = vmatpush.bf16.msra.mxu0 %v3071
    %3160 = vmatpush.bf16.msra.mxu0 %v3069
    %3161 = vmatpush.bf16.msra.mxu0 %v3067
    %3162 = vmatpush.bf16.msra.mxu0 %v3065
    %3163 = vmatpush.bf16.msra.mxu0 %v3063
    %3164 = vmatpush.bf16.msra.mxu0 %v3061
    %3165 = vmatmul.bf16.gmra.mxu0 %v2909
    %v3166 = vpop.f32.mrf.mxu0
    %v3167 = vadd.f32 %v2913, %v3166
    %v3168 = vpop.f32.mrf.mxu0
    %3169 = vdwg.mxu0
    %3170 = vmatpush.bf16.msra.mxu0 %v3091
    %3171 = vmatpush.bf16.msra.mxu0 %v3089
    %3172 = vmatpush.bf16.msra.mxu0 %v3087
    %3173 = vmatpush.bf16.msra.mxu0 %v3085
    %3174 = vmatpush.bf16.msra.mxu0 %v3083
    %3175 = vmatpush.bf16.msra.mxu0 %v3081
    %3176 = vmatpush.bf16.msra.mxu0 %v3079
    %3177 = vmatpush.bf16.msra.mxu0 %v3077
    %3178 = vmatmul.bf16.gmra.mxu0 %v2910
    %v3179 = vpop.f32.mrf.mxu0
    %v3180 = vadd.f32 %v3167, %v3179
    %v3181 = vpop.f32.mrf.mxu0
    %3182 = vdwg.mxu0
    %3183 = vmatpush.bf16.msra.mxu0 %v3107
    %3184 = vmatpush.bf16.msra.mxu0 %v3105
    %3185 = vmatpush.bf16.msra.mxu0 %v3103
    %3186 = vmatpush.bf16.msra.mxu0 %v3101
    %3187 = vmatpush.bf16.msra.mxu0 %v3099
    %3188 = vmatpush.bf16.msra.mxu0 %v3097
    %3189 = vmatpush.bf16.msra.mxu0 %v3095
    %3190 = vmatpush.bf16.msra.mxu0 %v3093
    %3191 = vmatmul.bf16.gmra.mxu0 %v2911
    %v3192 = vpop.f32.mrf.mxu0
    %v3193 = vadd.f32 %v3180, %v3192
    %v3194 = vpop.f32.mrf.mxu0
    %3195 = vdwg.mxu0
    %3196 = vmatpush.bf16.msra.mxu0 %v3076
    %3197 = vmatpush.bf16.msra.mxu0 %v3074
    %3198 = vmatpush.bf16.msra.mxu0 %v3072
    %3199 = vmatpush.bf16.msra.mxu0 %v3070
    %3200 = vmatpush.bf16.msra.mxu0 %v3068
    %3201 = vmatpush.bf16.msra.mxu0 %v3066
    %3202 = vmatpush.bf16.msra.mxu0 %v3064
    %3203 = vmatpush.bf16.msra.mxu0 %v3062
    %3204 = vmatmul.bf16.gmra.mxu0 %v2909
    %v3205 = vpop.f32.mrf.mxu0
    %v3206 = vadd.f32 %v2914, %v3205
    %v3207 = vpop.f32.mrf.mxu0
    %3208 = vdwg.mxu0
    %3209 = vmatpush.bf16.msra.mxu0 %v3092
    %3210 = vmatpush.bf16.msra.mxu0 %v3090
    %3211 = vmatpush.bf16.msra.mxu0 %v3088
    %3212 = vmatpush.bf16.msra.mxu0 %v3086
    %3213 = vmatpush.bf16.msra.mxu0 %v3084
    %3214 = vmatpush.bf16.msra.mxu0 %v3082
    %3215 = vmatpush.bf16.msra.mxu0 %v3080
    %3216 = vmatpush.bf16.msra.mxu0 %v3078
    %3217 = vmatmul.bf16.gmra.mxu0 %v2910
    %v3218 = vpop.f32.mrf.mxu0
    %v3219 = vadd.f32 %v3206, %v3218
    %v3220 = vpop.f32.mrf.mxu0
    %3221 = vdwg.mxu0
    %3222 = vmatpush.bf16.msra.mxu0 %v3108
    %3223 = vmatpush.bf16.msra.mxu0 %v3106
    %3224 = vmatpush.bf16.msra.mxu0 %v3104
    %3225 = vmatpush.bf16.msra.mxu0 %v3102
    %3226 = vmatpush.bf16.msra.mxu0 %v3100
    %3227 = vmatpush.bf16.msra.mxu0 %v3098
    %3228 = vmatpush.bf16.msra.mxu0 %v3096
    %3229 = vmatpush.bf16.msra.mxu0 %v3094
    %3230 = vmatmul.bf16.gmra.mxu0 %v2911
    %v3231 = vpop.f32.mrf.mxu0
    %v3232 = vadd.f32 %v3219, %v3231
    %v3233 = vpop.f32.mrf.mxu0
    %3234 = vdwg.mxu0
    %v3235 = vmul.f32 %v3193, 0.01
    %v3236 = vmul.f32 %v3232, 0.01
    %v3237 = vmax.f32 %v3193, %v3235
    %v3238 = vmax.f32 %v3232, %v3236
    %v3239 = vrot.slane %v3237, 4
    %v3240 = vadd.f32 %v3237, %v3239
    %v3241 = vrot.slane %v3240, 2
    %v3242 = vadd.f32 %v3240, %v3241
    %v3243 = vrot.slane %v3242, 1
    %v3244 = vadd.f32 %v3242, %v3243
    %v3245 = vrot.slane %v3238, 4
    %v3246 = vadd.f32 %v3238, %v3245
    %v3247 = vrot.slane %v3246, 2
    %v3248 = vadd.f32 %v3246, %v3247
    %v3249 = vrot.slane %v3248, 1
    %v3250 = vadd.f32 %v3248, %v3249
    %v3251 = vmul.f32 %v3244, %v660
    %v3252 = vmul.f32 %v3250, %v660
    %v3253 = vsub.f32 %v3237, %v3251
    %v3254 = vsub.f32 %v3238, %v3252
    %v3255 = vmul.f32 %v3253, %v3253
    %v3256 = vmul.f32 %v3254, %v3254
    %v3257 = vrot.slane %v3255, 4
    %v3258 = vadd.f32 %v3255, %v3257
    %v3259 = vrot.slane %v3258, 2
    %v3260 = vadd.f32 %v3258, %v3259
    %v3261 = vrot.slane %v3260, 1
    %v3262 = vadd.f32 %v3260, %v3261
    %v3263 = vrot.slane %v3256, 4
    %v3264 = vadd.f32 %v3256, %v3263
    %v3265 = vrot.slane %v3264, 2
    %v3266 = vadd.f32 %v3264, %v3265
    %v3267 = vrot.slane %v3266, 1
    %v3268 = vadd.f32 %v3266, %v3267
    %v3269 = vmul.f32 %v3262, %v660
    %v3270 = vmul.f32 %v3268, %v660
    %v3271 = vadd.f32 %v3269, 1e-05
    %v3272 = vadd.f32 %v3270, 1e-05
    %v3273 = vrsqrt.pop %v3271
    %v3274 = vmul.f32 %v3273, %v3271
    %v3275 = vmul.f32 %v3274, %v3273
    %v3276 = vmul.f32 0.5, %v3275
    %v3277 = vsub.f32 1.5, %v3276
    %v3278 = vmul.f32 %v3273, %v3277
    %vm3279 = vweird.f32 %v3271
    %vm3280 = vweird.f32 %v3273
    %vm3281 = vmor %vm3279, %vm3280
    %v3282 = vsel %vm3281, %v3273, %v3278
    %v3283 = vrsqrt.pop %v3272
    %v3284 = vmul.f32 %v3283, %v3272
    %v3285 = vmul.f32 %v3284, %v3283
    %v3286 = vmul.f32 0.5, %v3285
    %v3287 = vsub.f32 1.5, %v3286
    %v3288 = vmul.f32 %v3283, %v3287
    %vm3289 = vweird.f32 %v3272
    %vm3290 = vweird.f32 %v3283
    %vm3291 = vmor %vm3289, %vm3290
    %v3292 = vsel %vm3291, %v3283, %v3288
    %v3295 = vrot.slane %v3292, 7
    %v3296 = vsel %vm752, %v3282, %v3295
    %v3298 = vmul.f32 %v2907, %v3296
    %v3300 = vperm.slane %v3298, 0
    %v3301 = vperm.slane %v3298, 1
    %v3304 = vmul.f32 %v3253, %v3300
    %v3305 = vmul.f32 %v3254, %v3301
    %v3307 = vperm.slane %v2908, 0
    %v3308 = vperm.slane %v2908, 1
    %v3311 = vadd.f32 %v3304, %v3307
    %v3312 = vadd.f32 %v3305, %v3308
    %v3313 = vld [vmem:[#allocation22] sm:$0xf]
    %v3314 = vld [vmem:[#allocation22 + $0x4] sm:$0xf]
    %v3315 = vld [vmem:[#allocation22 + $0x8] sm:$0xf]
    %v3316 = vld [vmem:[#allocation22 + $0xc] sm:$0xf]
    %v3317 = vld [vmem:[#allocation22 + $0x10] sm:$0xf]
    %v3318 = vld [vmem:[#allocation22 + $0x14] sm:$0xf]
    %v3319 = vld [vmem:[#allocation22 + $0x18] sm:$0xf]
    %v3320 = vld [vmem:[#allocation22 + $0x1c] sm:$0xf]
    %v3321 = vld [vmem:[#allocation22 + $0x20] sm:$0xf]
    %v3322 = vld [vmem:[#allocation22 + $0x24] sm:$0xf]
    %v3323 = vld [vmem:[#allocation22 + $0x28] sm:$0xf]
    %v3324 = vld [vmem:[#allocation22 + $0x2c] sm:$0xf]
    %v3325 = vld [vmem:[#allocation22 + $0x30] sm:$0xf]
    %v3326 = vld [vmem:[#allocation22 + $0x34] sm:$0xf]
    %v3327 = vld [vmem:[#allocation22 + $0x38] sm:$0xf]
    %v3328 = vld [vmem:[#allocation22 + $0x3c] sm:$0xf]
    %v3329 = vld [vmem:[#allocation22 + $0x40] sm:$0xf]
    %v3330 = vld [vmem:[#allocation22 + $0x44] sm:$0xf]
    %v3331 = vld [vmem:[#allocation22 + $0x48] sm:$0xf]
    %v3332 = vld [vmem:[#allocation22 + $0x4c] sm:$0xf]
    %v3333 = vld [vmem:[#allocation22 + $0x50] sm:$0xf]
    %v3334 = vld [vmem:[#allocation22 + $0x54] sm:$0xf]
    %v3335 = vld [vmem:[#allocation22 + $0x58] sm:$0xf]
    %v3336 = vld [vmem:[#allocation22 + $0x5c] sm:$0xf]
    %v3337 = vld [vmem:[#allocation22 + $0x60] sm:$0xf]
    %v3338 = vld [vmem:[#allocation22 + $0x64] sm:$0xf]
    %v3339 = vld [vmem:[#allocation22 + $0x68] sm:$0xf]
    %v3340 = vld [vmem:[#allocation22 + $0x6c] sm:$0xf]
    %v3341 = vld [vmem:[#allocation22 + $0x70] sm:$0xf]
    %v3342 = vld [vmem:[#allocation22 + $0x74] sm:$0xf]
    %v3343 = vld [vmem:[#allocation22 + $0x78] sm:$0xf]
    %v3344 = vld [vmem:[#allocation22 + $0x7c] sm:$0xf]
    %v3345 = vld [vmem:[%s37] sm:$0x1]
    %v3346 = vld [vmem:[%s39] sm:$0x1]
    %v3347 = vld [vmem:[%s41] sm:$0x1]
    %v3348 = vpack.c.bf16 %v3311, %v3311
    %v3349 = vpack.c.bf16 %v3312, %v3312
    %v3351 = vperm.slane %v3345, 0
    %v3385 = vunpack.c.l.b16 %v3313
    %v3386 = vunpack.c.l.b16 %v3314
    %v3387 = vunpack.c.l.b16 %v3315
    %v3388 = vunpack.c.l.b16 %v3316
    %v3389 = vunpack.c.l.b16 %v3317
    %v3390 = vunpack.c.l.b16 %v3318
    %v3391 = vunpack.c.l.b16 %v3319
    %v3392 = vunpack.c.l.b16 %v3320
    %v3393 = vunpack.c.l.b16 %v3321
    %v3394 = vunpack.c.l.b16 %v3322
    %v3395 = vunpack.c.l.b16 %v3323
    %v3396 = vunpack.c.l.b16 %v3324
    %v3397 = vunpack.c.l.b16 %v3325
    %v3398 = vunpack.c.l.b16 %v3326
    %v3399 = vunpack.c.l.b16 %v3327
    %v3400 = vunpack.c.l.b16 %v3328
    %v3401 = vunpack.c.l.b16 %v3329
    %v3402 = vunpack.c.l.b16 %v3330
    %v3403 = vunpack.c.l.b16 %v3331
    %v3404 = vunpack.c.l.b16 %v3332
    %v3405 = vunpack.c.l.b16 %v3333
    %v3406 = vunpack.c.l.b16 %v3334
    %v3407 = vunpack.c.l.b16 %v3335
    %v3408 = vunpack.c.l.b16 %v3336
    %v3409 = vunpack.c.l.b16 %v3337
    %v3410 = vunpack.c.l.b16 %v3338
    %v3411 = vunpack.c.l.b16 %v3339
    %v3412 = vunpack.c.l.b16 %v3340
    %v3413 = vunpack.c.l.b16 %v3341
    %v3414 = vunpack.c.l.b16 %v3342
    %v3415 = vunpack.c.l.b16 %v3343
    %v3416 = vunpack.c.l.b16 %v3344
    %v3417 = vpack.c.b16 %v3386, %v3385
    %v3418 = vpack.c.b16 %v3388, %v3387
    %v3419 = vpack.c.b16 %v3390, %v3389
    %v3420 = vpack.c.b16 %v3392, %v3391
    %v3421 = vpack.c.b16 %v3394, %v3393
    %v3422 = vpack.c.b16 %v3396, %v3395
    %v3423 = vpack.c.b16 %v3398, %v3397
    %v3424 = vpack.c.b16 %v3400, %v3399
    %v3425 = vpack.c.b16 %v3402, %v3401
    %v3426 = vpack.c.b16 %v3404, %v3403
    %v3427 = vpack.c.b16 %v3406, %v3405
    %v3428 = vpack.c.b16 %v3408, %v3407
    %v3429 = vpack.c.b16 %v3410, %v3409
    %v3430 = vpack.c.b16 %v3412, %v3411
    %v3431 = vpack.c.b16 %v3414, %v3413
    %v3432 = vpack.c.b16 %v3416, %v3415
    %3449 = vmatpush.bf16.msra.mxu0 %v3424
    %3450 = vmatpush.bf16.msra.mxu0 %v3423
    %3451 = vmatpush.bf16.msra.mxu0 %v3422
    %3452 = vmatpush.bf16.msra.mxu0 %v3421
    %3453 = vmatpush.bf16.msra.mxu0 %v3420
    %3454 = vmatpush.bf16.msra.mxu0 %v3419
    %3455 = vmatpush.bf16.msra.mxu0 %v3418
    %3456 = vmatpush.bf16.msra.mxu0 %v3417
    %3457 = vmatmul.bf16.gmra.mxu0 %v3348
    %v3458 = vpop.f32.mrf.mxu0
    %v3459 = vadd.f32 %v3351, %v3458
    %v3460 = vpop.f32.mrf.mxu0
    %3461 = vdwg.mxu0
    %3462 = vmatpush.bf16.msra.mxu0 %v3432
    %3463 = vmatpush.bf16.msra.mxu0 %v3431
    %3464 = vmatpush.bf16.msra.mxu0 %v3430
    %3465 = vmatpush.bf16.msra.mxu0 %v3429
    %3466 = vmatpush.bf16.msra.mxu0 %v3428
    %3467 = vmatpush.bf16.msra.mxu0 %v3427
    %3468 = vmatpush.bf16.msra.mxu0 %v3426
    %3469 = vmatpush.bf16.msra.mxu0 %v3425
    %3470 = vmatmul.bf16.gmra.mxu0 %v3349
    %v3471 = vpop.f32.mrf.mxu0
    %v3472 = vadd.f32 %v3459, %v3471
    %v3473 = vpop.f32.mrf.mxu0
    %3474 = vdwg.mxu0
    %v3475 = vmul.f32 %v3472, 0.01
    %v3476 = vmax.f32 %v3472, %v3475
    %v3477 = vrot.slane %v3476, 4
    %v3478 = vadd.f32 %v3476, %v3477
    %v3479 = vrot.slane %v3478, 2
    %v3480 = vadd.f32 %v3478, %v3479
    %v3481 = vrot.slane %v3480, 1
    %v3482 = vadd.f32 %v3480, %v3481
    %v3483 = vmul.f32 %v3482, %v660
    %v3484 = vsub.f32 %v3476, %v3483
    %v3485 = vmul.f32 %v3484, %v3484
    %v3486 = vrot.slane %v3485, 4
    %v3487 = vadd.f32 %v3485, %v3486
    %v3488 = vrot.slane %v3487, 2
    %v3489 = vadd.f32 %v3487, %v3488
    %v3490 = vrot.slane %v3489, 1
    %v3491 = vadd.f32 %v3489, %v3490
    %v3492 = vmul.f32 %v3491, %v660
    %v3493 = vadd.f32 %v3492, 1e-05
    %v3494 = vrsqrt.pop %v3493
    %v3495 = vmul.f32 %v3494, %v3493
    %v3496 = vmul.f32 %v3495, %v3494
    %v3497 = vmul.f32 0.5, %v3496
    %v3498 = vsub.f32 1.5, %v3497
    %v3499 = vmul.f32 %v3494, %v3498
    %vm3500 = vweird.f32 %v3493
    %vm3501 = vweird.f32 %v3494
    %vm3502 = vmor %vm3500, %vm3501
    %v3503 = vsel %vm3502, %v3494, %v3499
    %v3504 = vmul.f32 %v3346, %v3503
    %v3506 = vperm.slane %v3504, 0
    %v3508 = vmul.f32 %v3484, %v3506
    %v3510 = vperm.slane %v3347, 0
    %v3512 = vadd.f32 %v3508, %v3510
    %v3513 = vld [vmem:[#allocation23] sm:$0xf]
    %v3514 = vld [vmem:[#allocation23 + $0x4] sm:$0xf]
    %v3515 = vld [vmem:[#allocation23 + $0x8] sm:$0xf]
    %v3516 = vld [vmem:[#allocation23 + $0xc] sm:$0xf]
    %v3517 = vld [vmem:[#allocation23 + $0x10] sm:$0xf]
    %v3518 = vld [vmem:[#allocation23 + $0x14] sm:$0xf]
    %v3519 = vld [vmem:[#allocation23 + $0x18] sm:$0xf]
    %v3520 = vld [vmem:[#allocation23 + $0x1c] sm:$0xf]
    %v3521 = vld [vmem:[#allocation23 + $0x20] sm:$0xf]
    %v3522 = vld [vmem:[#allocation23 + $0x24] sm:$0xf]
    %v3523 = vld [vmem:[#allocation23 + $0x28] sm:$0xf]
    %v3524 = vld [vmem:[#allocation23 + $0x2c] sm:$0xf]
    %v3525 = vld [vmem:[#allocation23 + $0x30] sm:$0xf]
    %v3526 = vld [vmem:[#allocation23 + $0x34] sm:$0xf]
    %v3527 = vld [vmem:[#allocation23 + $0x38] sm:$0xf]
    %v3528 = vld [vmem:[#allocation23 + $0x3c] sm:$0xf]
    %v3529 = vld [vmem:[%s45] sm:$0x1]
    %v3530 = vld [vmem:[%s47] sm:$0x1]
    %v3531 = vld [vmem:[%s49] sm:$0x1]
    %v3532 = vpack.c.bf16 %v3512, %v3512
    %v3534 = vperm.slane %v3529, 0
    %v3552 = vunpack.c.l.b16 %v3513
    %v3553 = vunpack.c.l.b16 %v3514
    %v3554 = vunpack.c.l.b16 %v3515
    %v3555 = vunpack.c.l.b16 %v3516
    %v3556 = vunpack.c.l.b16 %v3517
    %v3557 = vunpack.c.l.b16 %v3518
    %v3558 = vunpack.c.l.b16 %v3519
    %v3559 = vunpack.c.l.b16 %v3520
    %v3560 = vunpack.c.l.b16 %v3521
    %v3561 = vunpack.c.l.b16 %v3522
    %v3562 = vunpack.c.l.b16 %v3523
    %v3563 = vunpack.c.l.b16 %v3524
    %v3564 = vunpack.c.l.b16 %v3525
    %v3565 = vunpack.c.l.b16 %v3526
    %v3566 = vunpack.c.l.b16 %v3527
    %v3567 = vunpack.c.l.b16 %v3528
    %v3568 = vpack.c.b16 %v3553, %v3552
    %v3569 = vpack.c.b16 %v3555, %v3554
    %v3570 = vpack.c.b16 %v3557, %v3556
    %v3571 = vpack.c.b16 %v3559, %v3558
    %v3572 = vpack.c.b16 %v3561, %v3560
    %v3573 = vpack.c.b16 %v3563, %v3562
    %v3574 = vpack.c.b16 %v3565, %v3564
    %v3575 = vpack.c.b16 %v3567, %v3566
    %3584 = vmatpush.bf16.msra.mxu0 %v3575
    %3585 = vmatpush.bf16.msra.mxu0 %v3574
    %3586 = vmatpush.bf16.msra.mxu0 %v3573
    %3587 = vmatpush.bf16.msra.mxu0 %v3572
    %3588 = vmatpush.bf16.msra.mxu0 %v3571
    %3589 = vmatpush.bf16.msra.mxu0 %v3570
    %3590 = vmatpush.bf16.msra.mxu0 %v3569
    %3591 = vmatpush.bf16.msra.mxu0 %v3568
    %3592 = vmatmul.bf16.gmra.mxu0 %v3532
    %v3593 = vpop.f32.mrf.mxu0
    %v3594 = vadd.f32 %v3534, %v3593
    %v3595 = vpop.f32.mrf.mxu0
    %3596 = vdwg.mxu0
    %v3597 = vmul.f32 %v3594, 0.01
    %v3598 = vmax.f32 %v3594, %v3597
    %v3599 = vrot.slane %v3598, 4
    %v3600 = vadd.f32 %v3598, %v3599
    %v3601 = vrot.slane %v3600, 2
    %v3602 = vadd.f32 %v3600, %v3601
    %v3603 = vrot.slane %v3602, 1
    %v3604 = vadd.f32 %v3602, %v3603
    %v3605 = vmul.f32 %v3604, %v660
    %v3606 = vsub.f32 %v3598, %v3605
    %v3607 = vmul.f32 %v3606, %v3606
    %v3608 = vrot.slane %v3607, 4
    %v3609 = vadd.f32 %v3607, %v3608
    %v3610 = vrot.slane %v3609, 2
    %v3611 = vadd.f32 %v3609, %v3610
    %v3612 = vrot.slane %v3611, 1
    %v3613 = vadd.f32 %v3611, %v3612
    %v3614 = vmul.f32 %v3613, %v660
    %v3615 = vadd.f32 %v3614, 1e-05
    %v3616 = vrsqrt.pop %v3615
    %v3617 = vmul.f32 %v3616, %v3615
    %v3618 = vmul.f32 %v3617, %v3616
    %v3619 = vmul.f32 0.5, %v3618
    %v3620 = vsub.f32 1.5, %v3619
    %v3621 = vmul.f32 %v3616, %v3620
    %vm3622 = vweird.f32 %v3615
    %vm3623 = vweird.f32 %v3616
    %vm3624 = vmor %vm3622, %vm3623
    %v3625 = vsel %vm3624, %v3616, %v3621
    %v3626 = vmul.f32 %v3530, %v3625
    %v3628 = vperm.slane %v3626, 0
    %v3630 = vmul.f32 %v3606, %v3628
    %v3632 = vperm.slane %v3531, 0
    %v3634 = vadd.f32 %v3630, %v3632
    %v3635 = vld [vmem:[#allocation25] sm:$0xf]
    %v3636 = vld [vmem:[#allocation25 + $0x4] sm:$0xf]
    %v3637 = vld [vmem:[#allocation25 + $0x8] sm:$0xf]
    %v3638 = vld [vmem:[#allocation25 + $0xc] sm:$0xf]
    %v3639 = vld [vmem:[#allocation25 + $0x10] sm:$0xf]
    %v3640 = vld [vmem:[#allocation25 + $0x14] sm:$0xf]
    %v3641 = vld [vmem:[#allocation25 + $0x18] sm:$0xf]
    %v3642 = vld [vmem:[#allocation25 + $0x1c] sm:$0xf]
    %v3643 = vld [vmem:[#allocation25 + $0x20] sm:$0xf]
    %v3644 = vld [vmem:[#allocation25 + $0x24] sm:$0xf]
    %v3645 = vld [vmem:[#allocation25 + $0x28] sm:$0xf]
    %v3646 = vld [vmem:[#allocation25 + $0x2c] sm:$0xf]
    %v3647 = vld [vmem:[#allocation25 + $0x30] sm:$0xf]
    %v3648 = vld [vmem:[#allocation25 + $0x34] sm:$0xf]
    %v3649 = vld [vmem:[#allocation25 + $0x38] sm:$0xf]
    %v3650 = vld [vmem:[#allocation25 + $0x3c] sm:$0xf]
    %v3651 = vld [vmem:[%s53] sm:$0x1]
    %v3652 = vld [vmem:[%s55] sm:$0x1]
    %v3653 = vld [vmem:[%s57] sm:$0x1]
    %v3654 = vpack.c.bf16 %v3634, %v3634
    %v3656 = vperm.slane %v3651, 0
    %v3674 = vunpack.c.l.b16 %v3635
    %v3675 = vunpack.c.l.b16 %v3636
    %v3676 = vunpack.c.l.b16 %v3637
    %v3677 = vunpack.c.l.b16 %v3638
    %v3678 = vunpack.c.l.b16 %v3639
    %v3679 = vunpack.c.l.b16 %v3640
    %v3680 = vunpack.c.l.b16 %v3641
    %v3681 = vunpack.c.l.b16 %v3642
    %v3682 = vunpack.c.l.b16 %v3643
    %v3683 = vunpack.c.l.b16 %v3644
    %v3684 = vunpack.c.l.b16 %v3645
    %v3685 = vunpack.c.l.b16 %v3646
    %v3686 = vunpack.c.l.b16 %v3647
    %v3687 = vunpack.c.l.b16 %v3648
    %v3688 = vunpack.c.l.b16 %v3649
    %v3689 = vunpack.c.l.b16 %v3650
    %v3690 = vpack.c.b16 %v3675, %v3674
    %v3691 = vpack.c.b16 %v3677, %v3676
    %v3692 = vpack.c.b16 %v3679, %v3678
    %v3693 = vpack.c.b16 %v3681, %v3680
    %v3694 = vpack.c.b16 %v3683, %v3682
    %v3695 = vpack.c.b16 %v3685, %v3684
    %v3696 = vpack.c.b16 %v3687, %v3686
    %v3697 = vpack.c.b16 %v3689, %v3688
    %3706 = vmatpush.bf16.msra.mxu0 %v3697
    %3707 = vmatpush.bf16.msra.mxu0 %v3696
    %3708 = vmatpush.bf16.msra.mxu0 %v3695
    %3709 = vmatpush.bf16.msra.mxu0 %v3694
    %3710 = vmatpush.bf16.msra.mxu0 %v3693
    %3711 = vmatpush.bf16.msra.mxu0 %v3692
    %3712 = vmatpush.bf16.msra.mxu0 %v3691
    %3713 = vmatpush.bf16.msra.mxu0 %v3690
    %3714 = vmatmul.bf16.gmra.mxu0 %v3654
    %v3715 = vpop.f32.mrf.mxu0
    %v3716 = vadd.f32 %v3656, %v3715
    %v3717 = vpop.f32.mrf.mxu0
    %3718 = vdwg.mxu0
    %v3719 = vmul.f32 %v3716, 0.01
    %v3720 = vmax.f32 %v3716, %v3719
    %v3721 = vrot.slane %v3720, 4
    %v3722 = vadd.f32 %v3720, %v3721
    %v3723 = vrot.slane %v3722, 2
    %v3724 = vadd.f32 %v3722, %v3723
    %v3725 = vrot.slane %v3724, 1
    %v3726 = vadd.f32 %v3724, %v3725
    %v3727 = vmul.f32 %v3726, %v660
    %v3728 = vsub.f32 %v3720, %v3727
    %v3729 = vmul.f32 %v3728, %v3728
    %v3730 = vrot.slane %v3729, 4
    %v3731 = vadd.f32 %v3729, %v3730
    %v3732 = vrot.slane %v3731, 2
    %v3733 = vadd.f32 %v3731, %v3732
    %v3734 = vrot.slane %v3733, 1
    %v3735 = vadd.f32 %v3733, %v3734
    %v3736 = vmul.f32 %v3735, %v660
    %v3737 = vadd.f32 %v3736, 1e-05
    %v3738 = vrsqrt.pop %v3737
    %v3739 = vmul.f32 %v3738, %v3737
    %v3740 = vmul.f32 %v3739, %v3738
    %v3741 = vmul.f32 0.5, %v3740
    %v3742 = vsub.f32 1.5, %v3741
    %v3743 = vmul.f32 %v3738, %v3742
    %vm3744 = vweird.f32 %v3737
    %vm3745 = vweird.f32 %v3738
    %vm3746 = vmor %vm3744, %vm3745
    %v3747 = vsel %vm3746, %v3738, %v3743
    %v3748 = vmul.f32 %v3652, %v3747
    %v3750 = vperm.slane %v3748, 0
    %v3752 = vmul.f32 %v3728, %v3750
    %v3754 = vperm.slane %v3653, 0
    %v3756 = vadd.f32 %v3752, %v3754
    %v3757 = vld [vmem:[#allocation26] sm:$0xf]
    %v3758 = vld [vmem:[#allocation26 + $0x4] sm:$0xf]
    %v3759 = vld [vmem:[#allocation26 + $0x8] sm:$0xf]
    %v3760 = vld [vmem:[#allocation26 + $0xc] sm:$0xf]
    %v3761 = vld [vmem:[#allocation26 + $0x10] sm:$0xf]
    %v3762 = vld [vmem:[#allocation26 + $0x14] sm:$0xf]
    %v3763 = vld [vmem:[#allocation26 + $0x18] sm:$0xf]
    %v3764 = vld [vmem:[#allocation26 + $0x1c] sm:$0xf]
    %v3765 = vld [vmem:[#allocation26 + $0x20] sm:$0xf]
    %v3766 = vld [vmem:[#allocation26 + $0x24] sm:$0xf]
    %v3767 = vld [vmem:[#allocation26 + $0x28] sm:$0xf]
    %v3768 = vld [vmem:[#allocation26 + $0x2c] sm:$0xf]
    %v3769 = vld [vmem:[#allocation26 + $0x30] sm:$0xf]
    %v3770 = vld [vmem:[#allocation26 + $0x34] sm:$0xf]
    %v3771 = vld [vmem:[#allocation26 + $0x38] sm:$0xf]
    %v3772 = vld [vmem:[#allocation26 + $0x3c] sm:$0xf]
    %v3773 = vld [vmem:[%s61] sm:$0x1]
    %v3774 = vpack.c.bf16 %v3756, %v3756
    %v3776 = vperm.slane %v3773, 0
    %v3794 = vunpack.c.l.b16 %v3757
    %v3795 = vunpack.c.l.b16 %v3758
    %v3796 = vunpack.c.l.b16 %v3759
    %v3797 = vunpack.c.l.b16 %v3760
    %v3798 = vunpack.c.l.b16 %v3761
    %v3799 = vunpack.c.l.b16 %v3762
    %v3800 = vunpack.c.l.b16 %v3763
    %v3801 = vunpack.c.l.b16 %v3764
    %v3802 = vunpack.c.l.b16 %v3765
    %v3803 = vunpack.c.l.b16 %v3766
    %v3804 = vunpack.c.l.b16 %v3767
    %v3805 = vunpack.c.l.b16 %v3768
    %v3806 = vunpack.c.l.b16 %v3769
    %v3807 = vunpack.c.l.b16 %v3770
    %v3808 = vunpack.c.l.b16 %v3771
    %v3809 = vunpack.c.l.b16 %v3772
    %v3810 = vpack.c.b16 %v3795, %v3794
    %v3811 = vpack.c.b16 %v3797, %v3796
    %v3812 = vpack.c.b16 %v3799, %v3798
    %v3813 = vpack.c.b16 %v3801, %v3800
    %v3814 = vpack.c.b16 %v3803, %v3802
    %v3815 = vpack.c.b16 %v3805, %v3804
    %v3816 = vpack.c.b16 %v3807, %v3806
    %v3817 = vpack.c.b16 %v3809, %v3808
    %3826 = vmatpush.bf16.msra.mxu0 %v3817
    %3827 = vmatpush.bf16.msra.mxu0 %v3816
    %3828 = vmatpush.bf16.msra.mxu0 %v3815
    %3829 = vmatpush.bf16.msra.mxu0 %v3814
    %3830 = vmatpush.bf16.msra.mxu0 %v3813
    %3831 = vmatpush.bf16.msra.mxu0 %v3812
    %3832 = vmatpush.bf16.msra.mxu0 %v3811
    %3833 = vmatpush.bf16.msra.mxu0 %v3810
    %3834 = vmatmul.bf16.gmra.mxu0 %v3774
    %v3835 = vpop.f32.mrf.mxu0
    %v3836 = vadd.f32 %v3776, %v3835
    %v3837 = vpop.f32.mrf.mxu0
    %3838 = vdwg.mxu0
    %v3839 = vlaneseq
    %v3840 = vand.u32 %v3839, 127
    %vm3841 = vcmp.lt.s32.totalorder %v3840, 10
    %v3842 = vsel %vm3841, %v3836, -1e+30
    %3843 = vmax.xlane.f32.xlu0 %v3842
    %v3844 = vpop.xlane.xlu0 %3843
    %v3845 = vsub.f32 %v3842, %v3844
    %v3846 = vmul.f32 %v3845, 1.442695
    %v3847 = vpow.pop %v3846
    %3848 = vadd.xlane.f32.xlu0 %v3847
    %v3849 = vpop.xlane.xlu0 %3848
    %v3850 = vlog2.pop %v3849
    %v3851 = vmul.f32 %v3850, 0.6931472
    %v3852 = vsub.f32 %v3845, %v3851
    %3853 = vst [vmem:[#allocation28] sm:$0xff] %v3852
    // Predicated region
    $region190: #{tpu_custom_call.1} parent=1 // pred_check
      _
    $region191: #{tpu_custom_call.1} parent=1 // pred_check_branch
      %3855 = sbr.rel (0) target = $region193
    $region192: #{tpu_custom_call.1} parent=1 // pred_region
      %3857 = vsyncadd [#allocation4], 0
      %s3859 = sshll.u32 [#allocation28], 4
      %s3860 = int_to_ptr.vmem [resolvable:$true] %s3859
      %s3861 = sshll.u32 %s63, 4
      %s3862 = int_to_ptr.hbm [resolvable:$true] %s3861
      %3864 = dma.vmem_to_hbm [thread:$0]  %s3860, 128, %s3862, [#allocation4]
    $region193: #{tpu_custom_call.1} parent=1 // pred_fallthru
      _
    // Predicated region
    $region194: #{tpu_custom_call.1} parent=1 // pred_check
      _
    $region195: #{tpu_custom_call.1} parent=1 // pred_check_branch
      %3866 = sbr.rel (0) target = $region197
    $region196: #{tpu_custom_call.1} parent=1 // pred_region
      %3868 = dma.done [#allocation4], 128
    $region197: #{tpu_custom_call.1} parent=1 // pred_fallthru
      _
    %3869 = vsyncpa [#allocation3], 1
    %3870 = vsyncpa [#allocation6], 1
    %3871 = vsyncpa [#allocation9], 1
    %3872 = vsyncpa [#allocation12], 1
    %3873 = vsyncpa [#allocation15], 1
    %3874 = vsyncpa [#allocation18], 1
    %3875 = vsyncpa [#allocation21], 1
    %3876 = vsyncpa [#allocation24], 1
    %3877 = vsyncpa [#allocation27], 1
    %3878 = vsyncpa [#allocation4], 1

</llo_original>
